<compile_context>
chip_gen: v5e
topology: v5e:2x2
jax: 0.10.0
libtpu: 0.0.40
codegen_flags: <defaults>
</compile_context>

<pallas_src>
import math

import jax
import jax.numpy as jnp
from jax.experimental import pallas as pl
from jax.experimental.pallas import tpu as pltpu

# Scoped-VMEM limit: safe on v5e/v6e/v7x; actual usage here is far below it.
# (v6e can go toward 64 MiB; keep <= ~48 MiB on v7x when scaling shapes up.)
_VMEM_LIMIT = 32 * 1024 * 1024


# ----------------------------- kernel helpers -----------------------------

def _im2col_build(pad_ref, col_ref):
    """Gather the 9 shifted 3x3 taps of a spatially padded (Bb, H+2, W+2, Cin)
    ref into an im2col scratch (Bb*H*W, 9*Cin), casting to the scratch dtype.
    Column order (tap-major, then channel) matches the (3,3,Cin,Cout) ->
    (9*Cin, Cout) row-major weight reshape done in the wrapper."""
    Bb, Hp, Wp, C = pad_ref.shape
    H, W = Hp - 2, Wp - 2
    M = Bb * H * W
    k = 0
    for di in range(3):
        for dj in range(3):
            col_ref[:, k * C:(k + 1) * C] = (
                pad_ref[:, di:di + H, dj:dj + W, :]
                .reshape(M, C).astype(col_ref.dtype))
            k += 1


# ------------------------------ pre-pass kernel ------------------------------
# Parallel over (T, batch blocks):
#   a = conv(x, w_ax) + b_a   with  a[..., :2C] = pre-sigmoid r|z x-half,
#                                    a[..., 2C:] = pre-tanh   c   x-half.

def _x_prepass_kernel(x_ref, wa_ref, ba_ref, a_ref, xpad, xcol):
    Bb, H, W, C = x_ref.shape
    M = Bb * H * W
    Hp, Wp = H + 2, W + 2
    dt = xpad.dtype

    # Zero the 1-pixel border (parallel grid -> no reliable "first" step; cheap).
    xpad[:, 0:1, :, :] = jnp.zeros((Bb, 1, Wp, C), dt)
    xpad[:, Hp - 1:Hp, :, :] = jnp.zeros((Bb, 1, Wp, C), dt)
    xpad[:, :, 0:1, :] = jnp.zeros((Bb, Hp, 1, C), dt)
    xpad[:, :, Wp - 1:Wp, :] = jnp.zeros((Bb, Hp, 1, C), dt)
    xpad[:, 1:H + 1, 1:W + 1, :] = x_ref[...].astype(dt)

    _im2col_build(xpad, xcol)
    acc = jnp.dot(xcol[...], wa_ref[...], preferred_element_type=jnp.float32)
    acc = acc + ba_ref[...]                       # bias folded here, once per frame
    a_ref[...] = acc.astype(a_ref.dtype).reshape(Bb, H, W, 3 * C)


# ----------------------------- recurrent kernel -----------------------------
# Grid (num_batch_blocks, T): batch blocks parallel, t sequential carry.
# Hidden state lives in a single padded f32 VMEM scratch across the t axis.

def _recurrent_kernel(a_ref, h0_ref, wrz_ref, wc_ref, o_ref, hpad, gpad, hcol):
    t = pl.program_id(1)
    Bb, Hp, Wp, C = hpad.shape
    H, W = Hp - 2, Wp - 2
    M = Bb * H * W
    C2 = 2 * C
    mxu = gpad.dtype

    @pl.when(t == 0)
    def _init():
        hpad[...] = jnp.zeros_like(hpad)          # zero border (+interior)
        gpad[...] = jnp.zeros_like(gpad)          # only its border must stay zero
        hpad[:, 1:H + 1, 1:W + 1, :] = h0_ref[...].astype(jnp.float32)

    a = a_ref[...].reshape(M, 3 * C).astype(jnp.float32)

    # r, z = sigmoid( a_rz + conv(h) )  — one K=9C, N=2C matmul.
    _im2col_build(hpad, hcol)
    rz = jax.nn.sigmoid(
        a[:, :C2] + jnp.dot(hcol[...], wrz_ref[...],
                            preferred_element_type=jnp.float32))
    r = rz[:, :C]
    z = rz[:, C:]

    # c = tanh( a_c + conv(r*h) )  — reuse the im2col scratch for r*h.
    h = hpad[:, 1:H + 1, 1:W + 1, :].reshape(M, C)          # f32 carry
    gpad[:, 1:H + 1, 1:W + 1, :] = (r * h).astype(mxu).reshape(Bb, H, W, C)
    _im2col_build(gpad, hcol)
    c = jnp.tanh(
        a[:, C2:] + jnp.dot(hcol[...], wc_ref[...],
                            preferred_element_type=jnp.float32))

    # h_new = (1 - z) * h + z * c, fused form (3 VALU ops).
    h_new = h + z * (c - h)

    hpad[:, 1:H + 1, 1:W + 1, :] = h_new.reshape(Bb, H, W, C)
    o_ref[...] = h_new.reshape(Bb, H, W, C).astype(o_ref.dtype)


# --------------------------------- wrappers ---------------------------------

def convgru_pallas(x_seq, h0, w_ih, b_ih, w_hh, b_hh, *,
                   mxu_dtype=jnp.bfloat16, batch_block=None):
    """x_seq: (T,B,H,W,C), h0: (B,H,W,C). Returns (o (T,B,H,W,C), hT (B,H,W,C)).

    batch_block: batch elements per recurrent grid block. Default = B (best on
    single-TensorCore v5e/v6e). On v7x use ceil(B/2) so both cores are fed.
    """
    T, B, H, W, C = x_seq.shape
    out_dtype = x_seq.dtype
    C2, C3, K9 = 2 * C, 3 * C, 9 * C

    if batch_block is None or batch_block >= B:
        batch_block = B
    assert B % batch_block == 0, "batch_block must divide B"
    Bb = batch_block
    nb = B // Bb
    M = Bb * H * W

    # --- weight / bias prepacking into im2col layout (rows = (di, dj, cin)) ---
    # ih conv: cin = [x | h],   cout = [r | z]
    # hh conv: cin = [x | r*h], cout = c
    w_ax = jnp.concatenate([w_ih[:, :, :C, :], w_hh[:, :, :C, :]], axis=-1)
    w_ax = w_ax.reshape(K9, C3).astype(mxu_dtype)            # x -> [r|z|c] pre-acts
    b_a = jnp.concatenate([b_ih, b_hh], axis=-1).astype(jnp.float32)     # (1, 3C)
    w_rzh = w_ih[:, :, C:, :].reshape(K9, C2).astype(mxu_dtype)          # h   -> [r|z]
    w_ch = w_hh[:, :, C:, :].reshape(K9, C).astype(mxu_dtype)            # r*h -> c

    x_mxu = x_seq.astype(mxu_dtype)

    # ---------- parallel x pre-pass ----------
    x_blk = pl.BlockSpec((pl.Squeezed(), Bb, H, W, C), lambda t, b: (t, b, 0, 0, 0))
    a_blk = pl.BlockSpec((pl.Squeezed(), Bb, H, W, C3), lambda t, b: (t, b, 0, 0, 0))

    a = pl.pallas_call(
        _x_prepass_kernel,
        out_shape=jax.ShapeDtypeStruct((T, B, H, W, C3), mxu_dtype),
        grid_spec=pltpu.PrefetchScalarGridSpec(
            num_scalar_prefetch=0,
            grid=(T, nb),
            in_specs=[x_blk,
                      pl.BlockSpec((K9, C3), lambda t, b: (0, 0)),
                      pl.BlockSpec((1, C3), lambda t, b: (0, 0))],
            out_specs=a_blk,
            scratch_shapes=[pltpu.VMEM((Bb, H + 2, W + 2, C), mxu_dtype),
                            pltpu.VMEM((M, K9), mxu_dtype)]),
        compiler_params=pltpu.CompilerParams(
            dimension_semantics=("parallel", "parallel"),
            vmem_limit_bytes=_VMEM_LIMIT),
    )(x_mxu, w_ax, b_a)

    # ---------- sequential recurrence ----------
    a_seq = pl.BlockSpec((pl.Squeezed(), Bb, H, W, C3), lambda b, t: (t, b, 0, 0, 0))
    o_seq = pl.BlockSpec((pl.Squeezed(), Bb, H, W, C), lambda b, t: (t, b, 0, 0, 0))
    h0_blk = pl.BlockSpec((Bb, H, W, C), lambda b, t: (b, 0, 0, 0))

    o = pl.pallas_call(
        _recurrent_kernel,
        out_shape=jax.ShapeDtypeStruct((T, B, H, W, C), out_dtype),
        grid_spec=pltpu.PrefetchScalarGridSpec(
            num_scalar_prefetch=0,
            grid=(nb, T),                          # batch blocks outer, t inner carry
            in_specs=[a_seq, h0_blk,
                      pl.BlockSpec((K9, C2), lambda b, t: (0, 0)),
                      pl.BlockSpec((K9, C), lambda b, t: (0, 0))],
            out_specs=o_seq,
            scratch_shapes=[
                pltpu.VMEM((Bb, H + 2, W + 2, C), jnp.float32),  # padded f32 h carry
                pltpu.VMEM((Bb, H + 2, W + 2, C), mxu_dtype),    # padded r*h
                pltpu.VMEM((M, K9), mxu_dtype),                  # shared im2col
            ]),
        compiler_params=pltpu.CompilerParams(
            dimension_semantics=("parallel", "arbitrary"),
            vmem_limit_bytes=_VMEM_LIMIT),
    )(a, h0, w_rzh, w_ch)

    return o, o[-1]                                # hT == last output frame


def convgru_forward(x, h, params, mxu_dtype=jnp.bfloat16, batch_block=None):
    """Mirrors ConvGRU.forward. x: (B,T,C,H,W) or (B,C,H,W); h: (B,C,H,W) or None."""
    w_ih, b_ih, w_hh, b_hh = params
    time_series = (x.ndim == 5)
    if time_series:
        B, T, C, H, W = x.shape
        x_seq = jnp.transpose(x, (1, 0, 3, 4, 2))          # (T, B, H, W, C)
    else:
        B, C, H, W = x.shape
        x_seq = jnp.transpose(x, (0, 2, 3, 1))[None]       # (1, B, H, W, C)
    if h is None:
        h0 = jnp.zeros((B, H, W, C), x.dtype)
    else:
        h0 = jnp.transpose(h, (0, 2, 3, 1))

    o, hT = convgru_pallas(x_seq, h0, w_ih, b_ih, w_hh, b_hh,
                           mxu_dtype=mxu_dtype, batch_block=batch_block)

    hT_nchw = jnp.transpose(hT, (0, 3, 1, 2))              # (B, C, H, W)
    if time_series:
        o_out = jnp.transpose(o, (1, 0, 4, 2, 3))          # (B, T, C, H, W)
        return o_out, hT_nchw
    return hT_nchw, hT_nchw


# ----------------------- pure-JAX reference (for checking) -----------------------

def _ref_conv(inp_nhwc, w, b):
    out = jax.lax.conv_general_dilated(
        inp_nhwc, w, (1, 1), "SAME",
        dimension_numbers=("NHWC", "HWIO", "NHWC"))
    return out + b.reshape(1, 1, 1, -1)


def reference_forward(x, h, params):
    w_ih, b_ih, w_hh, b_hh = params
    time_series = (x.ndim == 5)
    if time_series:
        B, T, C, H, W = x.shape
        x_seq = jnp.transpose(x, (1, 0, 3, 4, 2))
    else:
        B, C, H, W = x.shape
        x_seq = jnp.transpose(x, (0, 2, 3, 1))[None]
    h0 = jnp.zeros((B, H, W, C), x.dtype) if h is None else jnp.transpose(h, (0, 2, 3, 1))

    def step(hc, xt):
        rz = jax.nn.sigmoid(_ref_conv(jnp.concatenate([xt, hc], -1), w_ih, b_ih))
        r, z = rz[..., :C], rz[..., C:]
        c = jnp.tanh(_ref_conv(jnp.concatenate([xt, r * hc], -1), w_hh, b_hh))
        hn = (1.0 - z) * hc + z * c
        return hn, hn

    hT, o = jax.lax.scan(step, h0, x_seq)
    hT_nchw = jnp.transpose(hT, (0, 3, 1, 2))
    if time_series:
        return jnp.transpose(o, (1, 0, 4, 2, 3)), hT_nchw
    return hT_nchw, hT_nchw


def init_params(channels, key):
    """Deterministic params matching nn.Conv2d shapes (stored HWIO + (1,Cout) bias)."""
    k1, k2, k3, k4 = jax.random.split(key, 4)
    cin = 2 * channels
    bound = 1.0 / math.sqrt(cin * 3 * 3)
    w_ih = jax.random.uniform(k1, (3, 3, cin, 2 * channels), jnp.float32, -bound, bound)
    b_ih = jax.random.uniform(k2, (1, 2 * channels), jnp.float32, -bound, bound)
    w_hh = jax.random.uniform(k3, (3, 3, cin, channels), jnp.float32, -bound, bound)
    b_hh = jax.random.uniform(k4, (1, channels), jnp.float32, -bound, bound)
    return w_ih, b_ih, w_hh, b_hh


if __name__ == "__main__":
    B, T, C, H, W = 2, 8, 4, 16, 16
    key = jax.random.PRNGKey(0)
    kx, kp = jax.random.split(key)
    x = jax.random.normal(kx, (B, T, C, H, W), jnp.float32)   # PyTorch (B, T, C, H, W)
    params = init_params(C, kp)

    o_ref, hT_ref = reference_forward(x, None, params)

    # Exact path (f32 MXU operands, f32 pre-activations): close to the f32 reference.
    o32, hT32 = convgru_forward(x, None, params, mxu_dtype=jnp.float32)
    jax.block_until_ready((o32, hT32))
    assert o32.shape == (B, T, C, H, W) and hT32.shape == (B, C, H, W)
    assert jnp.allclose(o32, o_ref, rtol=1e-4, atol=1e-4)
    assert jnp.allclose(hT32, hT_ref, rtol=1e-4, atol=1e-4)

    # Default fast path (bf16 MXU operands / bf16 a-stream, f32 accumulation & carry).
    o16, hT16 = convgru_forward(x, None, params)
    jax.block_until_ready((o16, hT16))
    assert jnp.allclose(o16, o_ref, rtol=5e-2, atol=5e-2)
    assert jnp.allclose(hT16, hT_ref, rtol=5e-2, atol=5e-2)

    # Explicit batch blocking (v7x-style: 2 batch blocks feeding both cores).
    ob, hTb = convgru_forward(x, None, params, mxu_dtype=jnp.float32, batch_block=1)
    jax.block_until_ready(ob)
    assert jnp.allclose(ob, o_ref, rtol=1e-4, atol=1e-4)

    # Single-frame path (h=None -> zeros, like the module).
    x1 = x[:, 0]                                              # (B, C, H, W)
    h1, h1b = convgru_forward(x1, None, params, mxu_dtype=jnp.float32)
    jax.block_until_ready(h1)
    h1_ref, _ = reference_forward(x1, None, params)
    assert jnp.allclose(h1, h1_ref, rtol=1e-4, atol=1e-4)
    assert jnp.allclose(h1, h1b)

    print("KERNEL_OK")
</pallas_src>

<mosaic_0001>
module attributes {stable_mosaic.version = 11 : i64} {
  func.func @_x_prepass_kernel(%arg0: i32, %arg1: i32, %arg2: memref<1x2x16x16x4xf32, #tpu.memory_space<vmem>>, %arg3: memref<36x12xf32, #tpu.memory_space<vmem>>, %arg4: memref<1x12xf32, #tpu.memory_space<vmem>>, %arg5: memref<1x2x16x16x12xf32, #tpu.memory_space<vmem>>, %arg6: memref<2x18x18x4xf32, #tpu.memory_space<vmem>>, %arg7: memref<512x36xf32, #tpu.memory_space<vmem>>) attributes {dimension_semantics = [#tpu.dimension_semantics<parallel>, #tpu.dimension_semantics<parallel>], iteration_bounds = array<i64: 8, 1>, scalar_prefetch = 0 : i64, scratch_operands = 2 : i64, tpu.core_type = #tpu.core_type<tc>, window_params = [{transform_indices = @transform_0, window_bounds = array<i64: 1, 2, 16, 16, 4>}, {pipeline_mode = #tpu.pipeline_mode<synchronous>, transform_indices = @transform_1, window_bounds = array<i64: 36, 12>}, {pipeline_mode = #tpu.pipeline_mode<synchronous>, transform_indices = @transform_2, window_bounds = array<i64: 1, 12>}, {transform_indices = @transform_3, window_bounds = array<i64: 1, 2, 16, 16, 12>}]} {
    %cst = arith.constant 0.000000e+00 : f32
    %0 = vector.broadcast %cst : f32 to vector<2x1x18x4xf32>
    %c0 = arith.constant 0 : index
    %c0_0 = arith.constant 0 : index
    %c0_1 = arith.constant 0 : index
    %c0_2 = arith.constant 0 : index
    %1 = vector.load %arg6[%c0, %c0_0, %c0_1, %c0_2] : memref<2x18x18x4xf32, #tpu.memory_space<vmem>>, vector<2x1x18x4xf32>
    tpu.vector_store %arg6[%c0, %c0_0, %c0_1, %c0_2], %0 {strides = array<i32>} : memref<2x18x18x4xf32, #tpu.memory_space<vmem>>, vector<2x1x18x4xf32>,
    %cst_3 = arith.constant 0.000000e+00 : f32
    %2 = vector.broadcast %cst_3 : f32 to vector<2x1x18x4xf32>
    %c0_4 = arith.constant 0 : index
    %c17 = arith.constant 17 : index
    %c0_5 = arith.constant 0 : index
    %c0_6 = arith.constant 0 : index
    %3 = vector.load %arg6[%c0_4, %c17, %c0_5, %c0_6] : memref<2x18x18x4xf32, #tpu.memory_space<vmem>>, vector<2x1x18x4xf32>
    tpu.vector_store %arg6[%c0_4, %c17, %c0_5, %c0_6], %2 {strides = array<i32>} : memref<2x18x18x4xf32, #tpu.memory_space<vmem>>, vector<2x1x18x4xf32>,
    %cst_7 = arith.constant 0.000000e+00 : f32
    %4 = vector.broadcast %cst_7 : f32 to vector<2x18x1x4xf32>
    %c0_8 = arith.constant 0 : index
    %c0_9 = arith.constant 0 : index
    %c0_10 = arith.constant 0 : index
    %c0_11 = arith.constant 0 : index
    %5 = vector.load %arg6[%c0_8, %c0_9, %c0_10, %c0_11] : memref<2x18x18x4xf32, #tpu.memory_space<vmem>>, vector<2x18x1x4xf32>
    tpu.vector_store %arg6[%c0_8, %c0_9, %c0_10, %c0_11], %4 {strides = array<i32>} : memref<2x18x18x4xf32, #tpu.memory_space<vmem>>, vector<2x18x1x4xf32>,
    %cst_12 = arith.constant 0.000000e+00 : f32
    %6 = vector.broadcast %cst_12 : f32 to vector<2x18x1x4xf32>
    %c0_13 = arith.constant 0 : index
    %c0_14 = arith.constant 0 : index
    %c17_15 = arith.constant 17 : index
    %c0_16 = arith.constant 0 : index
    %7 = vector.load %arg6[%c0_13, %c0_14, %c17_15, %c0_16] : memref<2x18x18x4xf32, #tpu.memory_space<vmem>>, vector<2x18x1x4xf32>
    tpu.vector_store %arg6[%c0_13, %c0_14, %c17_15, %c0_16], %6 {strides = array<i32>} : memref<2x18x18x4xf32, #tpu.memory_space<vmem>>, vector<2x18x1x4xf32>,
    %c0_17 = arith.constant 0 : index
    %c0_18 = arith.constant 0 : index
    %c0_19 = arith.constant 0 : index
    %c0_20 = arith.constant 0 : index
    %c0_21 = arith.constant 0 : index
    %8 = vector.load %arg2[%c0_17, %c0_18, %c0_19, %c0_20, %c0_21] : memref<1x2x16x16x4xf32, #tpu.memory_space<vmem>>, vector<1x2x16x16x4xf32>
    %9 = vector.shape_cast %8 : vector<1x2x16x16x4xf32> to vector<2x16x16x4xf32>
    %c0_22 = arith.constant 0 : index
    %c1 = arith.constant 1 : index
    %c1_23 = arith.constant 1 : index
    %c0_24 = arith.constant 0 : index
    %10 = vector.load %arg6[%c0_22, %c1, %c1_23, %c0_24] : memref<2x18x18x4xf32, #tpu.memory_space<vmem>>, vector<2x16x16x4xf32>
    tpu.vector_store %arg6[%c0_22, %c1, %c1_23, %c0_24], %9 {strides = array<i32>} : memref<2x18x18x4xf32, #tpu.memory_space<vmem>>, vector<2x16x16x4xf32>,
    %c0_25 = arith.constant 0 : index
    %c0_26 = arith.constant 0 : index
    %c0_27 = arith.constant 0 : index
    %c0_28 = arith.constant 0 : index
    %11 = vector.load %arg6[%c0_25, %c0_26, %c0_27, %c0_28] : memref<2x18x18x4xf32, #tpu.memory_space<vmem>>, vector<2x16x16x4xf32>
    %12 = vector.shape_cast %11 : vector<2x16x16x4xf32> to vector<512x4xf32>
    %c0_29 = arith.constant 0 : index
    %c0_30 = arith.constant 0 : index
    %13 = vector.load %arg7[%c0_29, %c0_30] : memref<512x36xf32, #tpu.memory_space<vmem>>, vector<512x4xf32>
    tpu.vector_store %arg7[%c0_29, %c0_30], %12 {strides = array<i32>} : memref<512x36xf32, #tpu.memory_space<vmem>>, vector<512x4xf32>,
    %c0_31 = arith.constant 0 : index
    %c0_32 = arith.constant 0 : index
    %c1_33 = arith.constant 1 : index
    %c0_34 = arith.constant 0 : index
    %14 = vector.load %arg6[%c0_31, %c0_32, %c1_33, %c0_34] : memref<2x18x18x4xf32, #tpu.memory_space<vmem>>, vector<2x16x16x4xf32>
    %15 = vector.shape_cast %14 : vector<2x16x16x4xf32> to vector<512x4xf32>
    %c0_35 = arith.constant 0 : index
    %c4 = arith.constant 4 : index
    %16 = vector.load %arg7[%c0_35, %c4] : memref<512x36xf32, #tpu.memory_space<vmem>>, vector<512x4xf32>
    tpu.vector_store %arg7[%c0_35, %c4], %15 {strides = array<i32>} : memref<512x36xf32, #tpu.memory_space<vmem>>, vector<512x4xf32>,
    %c0_36 = arith.constant 0 : index
    %c0_37 = arith.constant 0 : index
    %c2 = arith.constant 2 : index
    %c0_38 = arith.constant 0 : index
    %17 = vector.load %arg6[%c0_36, %c0_37, %c2, %c0_38] : memref<2x18x18x4xf32, #tpu.memory_space<vmem>>, vector<2x16x16x4xf32>
    %18 = vector.shape_cast %17 : vector<2x16x16x4xf32> to vector<512x4xf32>
    %c0_39 = arith.constant 0 : index
    %c8 = arith.constant 8 : index
    %19 = vector.load %arg7[%c0_39, %c8] : memref<512x36xf32, #tpu.memory_space<vmem>>, vector<512x4xf32>
    tpu.vector_store %arg7[%c0_39, %c8], %18 {strides = array<i32>} : memref<512x36xf32, #tpu.memory_space<vmem>>, vector<512x4xf32>,
    %c0_40 = arith.constant 0 : index
    %c1_41 = arith.constant 1 : index
    %c0_42 = arith.constant 0 : index
    %c0_43 = arith.constant 0 : index
    %20 = vector.load %arg6[%c0_40, %c1_41, %c0_42, %c0_43] : memref<2x18x18x4xf32, #tpu.memory_space<vmem>>, vector<2x16x16x4xf32>
    %21 = vector.shape_cast %20 : vector<2x16x16x4xf32> to vector<512x4xf32>
    %c0_44 = arith.constant 0 : index
    %c12 = arith.constant 12 : index
    %22 = vector.load %arg7[%c0_44, %c12] : memref<512x36xf32, #tpu.memory_space<vmem>>, vector<512x4xf32>
    tpu.vector_store %arg7[%c0_44, %c12], %21 {strides = array<i32>} : memref<512x36xf32, #tpu.memory_space<vmem>>, vector<512x4xf32>,
    %c0_45 = arith.constant 0 : index
    %c1_46 = arith.constant 1 : index
    %c1_47 = arith.constant 1 : index
    %c0_48 = arith.constant 0 : index
    %23 = vector.load %arg6[%c0_45, %c1_46, %c1_47, %c0_48] : memref<2x18x18x4xf32, #tpu.memory_space<vmem>>, vector<2x16x16x4xf32>
    %24 = vector.shape_cast %23 : vector<2x16x16x4xf32> to vector<512x4xf32>
    %c0_49 = arith.constant 0 : index
    %c16 = arith.constant 16 : index
    %25 = vector.load %arg7[%c0_49, %c16] : memref<512x36xf32, #tpu.memory_space<vmem>>, vector<512x4xf32>
    tpu.vector_store %arg7[%c0_49, %c16], %24 {strides = array<i32>} : memref<512x36xf32, #tpu.memory_space<vmem>>, vector<512x4xf32>,
    %c0_50 = arith.constant 0 : index
    %c1_51 = arith.constant 1 : index
    %c2_52 = arith.constant 2 : index
    %c0_53 = arith.constant 0 : index
    %26 = vector.load %arg6[%c0_50, %c1_51, %c2_52, %c0_53] : memref<2x18x18x4xf32, #tpu.memory_space<vmem>>, vector<2x16x16x4xf32>
    %27 = vector.shape_cast %26 : vector<2x16x16x4xf32> to vector<512x4xf32>
    %c0_54 = arith.constant 0 : index
    %c20 = arith.constant 20 : index
    %28 = vector.load %arg7[%c0_54, %c20] : memref<512x36xf32, #tpu.memory_space<vmem>>, vector<512x4xf32>
    tpu.vector_store %arg7[%c0_54, %c20], %27 {strides = array<i32>} : memref<512x36xf32, #tpu.memory_space<vmem>>, vector<512x4xf32>,
    %c0_55 = arith.constant 0 : index
    %c2_56 = arith.constant 2 : index
    %c0_57 = arith.constant 0 : index
    %c0_58 = arith.constant 0 : index
    %29 = vector.load %arg6[%c0_55, %c2_56, %c0_57, %c0_58] : memref<2x18x18x4xf32, #tpu.memory_space<vmem>>, vector<2x16x16x4xf32>
    %30 = vector.shape_cast %29 : vector<2x16x16x4xf32> to vector<512x4xf32>
    %c0_59 = arith.constant 0 : index
    %c24 = arith.constant 24 : index
    %31 = vector.load %arg7[%c0_59, %c24] : memref<512x36xf32, #tpu.memory_space<vmem>>, vector<512x4xf32>
    tpu.vector_store %arg7[%c0_59, %c24], %30 {strides = array<i32>} : memref<512x36xf32, #tpu.memory_space<vmem>>, vector<512x4xf32>,
    %c0_60 = arith.constant 0 : index
    %c2_61 = arith.constant 2 : index
    %c1_62 = arith.constant 1 : index
    %c0_63 = arith.constant 0 : index
    %32 = vector.load %arg6[%c0_60, %c2_61, %c1_62, %c0_63] : memref<2x18x18x4xf32, #tpu.memory_space<vmem>>, vector<2x16x16x4xf32>
    %33 = vector.shape_cast %32 : vector<2x16x16x4xf32> to vector<512x4xf32>
    %c0_64 = arith.constant 0 : index
    %c28 = arith.constant 28 : index
    %34 = vector.load %arg7[%c0_64, %c28] : memref<512x36xf32, #tpu.memory_space<vmem>>, vector<512x4xf32>
    tpu.vector_store %arg7[%c0_64, %c28], %33 {strides = array<i32>} : memref<512x36xf32, #tpu.memory_space<vmem>>, vector<512x4xf32>,
    %c0_65 = arith.constant 0 : index
    %c2_66 = arith.constant 2 : index
    %c2_67 = arith.constant 2 : index
    %c0_68 = arith.constant 0 : index
    %35 = vector.load %arg6[%c0_65, %c2_66, %c2_67, %c0_68] : memref<2x18x18x4xf32, #tpu.memory_space<vmem>>, vector<2x16x16x4xf32>
    %36 = vector.shape_cast %35 : vector<2x16x16x4xf32> to vector<512x4xf32>
    %c0_69 = arith.constant 0 : index
    %c32 = arith.constant 32 : index
    %37 = vector.load %arg7[%c0_69, %c32] : memref<512x36xf32, #tpu.memory_space<vmem>>, vector<512x4xf32>
    tpu.vector_store %arg7[%c0_69, %c32], %36 {strides = array<i32>} : memref<512x36xf32, #tpu.memory_space<vmem>>, vector<512x4xf32>,
    %c0_70 = arith.constant 0 : index
    %c0_71 = arith.constant 0 : index
    %38 = vector.load %arg7[%c0_70, %c0_71] : memref<512x36xf32, #tpu.memory_space<vmem>>, vector<512x36xf32>
    %c0_72 = arith.constant 0 : index
    %c0_73 = arith.constant 0 : index
    %39 = vector.load %arg3[%c0_72, %c0_73] : memref<36x12xf32, #tpu.memory_space<vmem>>, vector<36x12xf32>
    %cst_74 = arith.constant dense<0.000000e+00> : vector<512x12xf32>
    %40 = tpu.matmul %38, %39, %cst_74 {dimension_numbers = #tpu.dot_dimension_numbers<[1], [0], [0], [1], [0, 0, 1, 1], [], []>} : vector<512x36xf32>, vector<36x12xf32>, vector<512x12xf32> -> vector<512x12xf32>
    %c0_75 = arith.constant 0 : index
    %c0_76 = arith.constant 0 : index
    %41 = vector.load %arg4[%c0_75, %c0_76] : memref<1x12xf32, #tpu.memory_space<vmem>>, vector<1x12xf32>
    %42 = vector.broadcast %41 : vector<1x12xf32> to vector<512x12xf32>
    %43 = arith.addf %40, %42 : vector<512x12xf32>
    %44 = vector.shape_cast %43 : vector<512x12xf32> to vector<2x16x16x12xf32>
    %c0_77 = arith.constant 0 : index
    %c0_78 = arith.constant 0 : index
    %c0_79 = arith.constant 0 : index
    %c0_80 = arith.constant 0 : index
    %c0_81 = arith.constant 0 : index
    %45 = vector.load %arg5[%c0_77, %c0_78, %c0_79, %c0_80, %c0_81] : memref<1x2x16x16x12xf32, #tpu.memory_space<vmem>>, vector<1x2x16x16x12xf32>
    %46 = vector.shape_cast %45 : vector<1x2x16x16x12xf32> to vector<2x16x16x12xf32>
    %47 = vector.shape_cast %44 : vector<2x16x16x12xf32> to vector<1x2x16x16x12xf32>
    tpu.vector_store %arg5[%c0_77, %c0_78, %c0_79, %c0_80, %c0_81], %47 {strides = array<i32>} : memref<1x2x16x16x12xf32, #tpu.memory_space<vmem>>, vector<1x2x16x16x12xf32>,
    return
  }
  func.func @transform_0(%arg0: i32, %arg1: i32) -> (i32, i32, i32, i32, i32) {
    %c0_i32 = arith.constant 0 : i32
    %c0_i32_0 = arith.constant 0 : i32
    %c0_i32_1 = arith.constant 0 : i32
    %c0_i32_2 = arith.constant 0 : i32
    return %arg0, %arg1, %c0_i32, %c0_i32_0, %c0_i32_1 : i32, i32, i32, i32, i32
  }
  func.func @transform_1(%arg0: i32, %arg1: i32) -> (i32, i32) {
    %c0_i32 = arith.constant 0 : i32
    %c0_i32_0 = arith.constant 0 : i32
    %c0_i32_1 = arith.constant 0 : i32
    return %c0_i32, %c0_i32_0 : i32, i32
  }
  func.func @transform_2(%arg0: i32, %arg1: i32) -> (i32, i32) {
    %c0_i32 = arith.constant 0 : i32
    %c0_i32_0 = arith.constant 0 : i32
    %c0_i32_1 = arith.constant 0 : i32
    return %c0_i32, %c0_i32_0 : i32, i32
  }
  func.func @transform_3(%arg0: i32, %arg1: i32) -> (i32, i32, i32, i32, i32) {
    %c0_i32 = arith.constant 0 : i32
    %c0_i32_0 = arith.constant 0 : i32
    %c0_i32_1 = arith.constant 0 : i32
    %c0_i32_2 = arith.constant 0 : i32
    return %arg0, %arg1, %c0_i32, %c0_i32_0, %c0_i32_1 : i32, i32, i32, i32, i32
  }
}

</mosaic_0001>

<llo_original>
// kernel: tpu_custom_call.1
$region0: #{tpu_custom_call.1}
  #allocation0 [shape = 'u32[]', space=smem, size = 0x4, offset = 0x4, fixed_abs, tag = 'smem constant byte address 0x4 - core index']
  #allocation1 [shape = 'u32[72,128]{1,0:T(1,128)}', space=vmem, size = 0x9000, scoped, tag = 'internal scratch']
  #allocation2 [shape = 'f32[2,18,18,4]{3,2,1,0:T(8,128)}', space=vmem, size = 0x6c000, scoped, tag = 'scratch operand']
  #allocation3 [shape = 'f32[512,36]{1,0:T(8,128)}', space=vmem, size = 0x40000, scoped, tag = 'scratch operand']
  %s0 = inlined_call_operand.vmem [shape: f32[8,2,16,16,4], index: 0, kind: input, shape index: {}]
  %s1 = inlined_call_operand.vmem [shape: f32[36,12], index: 1, kind: input, shape index: {}]
  %s2 = inlined_call_operand.vmem [shape: f32[1,12], index: 2, kind: input, shape index: {}]
  %s3 = inlined_call_operand.vmem [shape: f32[8,2,16,16,12], index: 3, kind: output, shape index: {}]
  %s4 = sld [smem:[#allocation0]]
  $region45: #{tpu_custom_call.1} parent=0
    _
  %s6 = ssub.s32 1, %s4
  %s7 = scalar_select 0, %s6, %s4
  loop: start=0, step=1, limit=10
  $region2: #{tpu_custom_call.1} parent=0 // loop_pre_header
    _
  $region3: #{tpu_custom_call.1} parent=0 // loop_header
    %s9 = sphi 0, %s13
    %p10 = scmp.ge.s32.totalorder %s9, 10
    %s16 = sphi 0, %s28
    %s17 = sphi 0, %s24
    %s18 = sphi 0, %s16
    %s19 = sphi 0, %s17
    %s20 = sphi 0, %s18
    %s21 = sphi 0, %s19
    %s33 = sphi 0, %s35
    %s36 = sphi 0, %s33
    %s37 = sphi 0, %s36
    %s53 = sphi 0, %s37
    %s57 = sphi 0, %s57
    %s59 = sphi 0, %s57
    %s60 = sphi 0, %s59
    %s74 = sphi 0, %s60
    %s78 = sphi 0, %s78
    %s80 = sphi 0, %s78
    %s81 = sphi 0, %s80
    %s95 = sphi 0, %s81
    %s103 = sphi 0, %s105
    %s106 = sphi 0, %s103
    %s107 = sphi 0, %s106
    %s123 = sphi 0, %s107
  $region4: #{tpu_custom_call.1} parent=0 // loop_header_branch
    %12 = sbr.rel (%p10) target = $region8
  $region5: #{tpu_custom_call.1} parent=0 // loop_body
    %s14 = ssub.s32 %s9, 1
    %s15 = ssub.s32 %s9, 2
    %s22 = sadd.s32 1, %s17
    %p23 = scmp.ge.s32.totalorder %s22, 1
    %s24 = scalar_select %p23, 0, %s22
    %s25 = sadd.s32 1, %s16
    %s26 = scalar_select %p23, %s25, %s16
    %p27 = scmp.ge.s32.totalorder %s26, 8
    %s28 = scalar_select %p27, 0, %s26
    %s29 = ssub.s32 %s16, %s28
    %s30 = ssub.s32 %s17, %s24
    %s31 = sor.u32 %s29, %s30
    %p32 = scmp.eq.s32.totalorder %s31, 0
    %s34 = sadd.s32 %s33, 1
    %s35 = scalar_select %p32, %s33, %s34
    %p38 = pneg %p32
    %p39 = scmp.eq.s32.totalorder %s9, 7
    %p40 = por %p38, %p39
    %p41 = scmp.ne.s32.totalorder %s33, %s36
    %p42 = scmp.eq.s32.totalorder %s9, 0
    %p43 = por %p41, %p42
    %p44 = scmp.ne.s32.totalorder %s33, %s36
    %p45 = scmp.eq.s32.totalorder %s14, 7
    %p46 = por %p44, %p45
    %p47 = scmp.ne.s32.totalorder %s36, %s37
    %p48 = scmp.eq.s32.totalorder %s14, 0
    %p49 = por %p47, %p48
    %p50 = scmp.ne.s32.totalorder %s36, %s37
    %p51 = scmp.eq.s32.totalorder %s15, 7
    %p52 = por %p50, %p51
    %p54 = scmp.ne.s32.totalorder %s37, %s53
    %p55 = scmp.eq.s32.totalorder %s15, 0
    %p56 = por %p54, %p55
    %s58 = sadd.s32 %s57, 1
    %p61 = scmp.eq.s32.totalorder %s9, 7
    %p62 = scmp.ne.s32.totalorder %s57, %s59
    %p63 = scmp.eq.s32.totalorder %s9, 0
    %p64 = por %p62, %p63
    %p65 = scmp.ne.s32.totalorder %s57, %s59
    %p66 = scmp.eq.s32.totalorder %s14, 7
    %p67 = por %p65, %p66
    %p68 = scmp.ne.s32.totalorder %s59, %s60
    %p69 = scmp.eq.s32.totalorder %s14, 0
    %p70 = por %p68, %p69
    %p71 = scmp.ne.s32.totalorder %s59, %s60
    %p72 = scmp.eq.s32.totalorder %s15, 7
    %p73 = por %p71, %p72
    %p75 = scmp.ne.s32.totalorder %s60, %s74
    %p76 = scmp.eq.s32.totalorder %s15, 0
    %p77 = por %p75, %p76
    %s79 = sadd.s32 %s78, 1
    %p82 = scmp.eq.s32.totalorder %s9, 7
    %p83 = scmp.ne.s32.totalorder %s78, %s80
    %p84 = scmp.eq.s32.totalorder %s9, 0
    %p85 = por %p83, %p84
    %p86 = scmp.ne.s32.totalorder %s78, %s80
    %p87 = scmp.eq.s32.totalorder %s14, 7
    %p88 = por %p86, %p87
    %p89 = scmp.ne.s32.totalorder %s80, %s81
    %p90 = scmp.eq.s32.totalorder %s14, 0
    %p91 = por %p89, %p90
    %p92 = scmp.ne.s32.totalorder %s80, %s81
    %p93 = scmp.eq.s32.totalorder %s15, 7
    %p94 = por %p92, %p93
    %p96 = scmp.ne.s32.totalorder %s81, %s95
    %p97 = scmp.eq.s32.totalorder %s15, 0
    %p98 = por %p96, %p97
    %s99 = ssub.s32 %s16, %s28
    %s100 = ssub.s32 %s17, %s24
    %s101 = sor.u32 %s99, %s100
    %p102 = scmp.eq.s32.totalorder %s101, 0
    %s104 = sadd.s32 %s103, 1
    %s105 = scalar_select %p102, %s103, %s104
    %p108 = pneg %p102
    %p109 = scmp.eq.s32.totalorder %s9, 7
    %p110 = por %p108, %p109
    %p111 = scmp.ne.s32.totalorder %s103, %s106
    %p112 = scmp.eq.s32.totalorder %s9, 0
    %p113 = por %p111, %p112
    %p114 = scmp.ne.s32.totalorder %s103, %s106
    %p115 = scmp.eq.s32.totalorder %s14, 7
    %p116 = por %p114, %p115
    %p117 = scmp.ne.s32.totalorder %s106, %s107
    %p118 = scmp.eq.s32.totalorder %s14, 0
    %p119 = por %p117, %p118
    %p120 = scmp.ne.s32.totalorder %s106, %s107
    %p121 = scmp.eq.s32.totalorder %s15, 7
    %p122 = por %p120, %p121
    %p124 = scmp.ne.s32.totalorder %s107, %s123
    %p125 = scmp.eq.s32.totalorder %s15, 0
    %p126 = por %p124, %p125
    %p127 = scmp.le.s32.totalorder 1, %s9
    %p128 = scmp.lt.s32.totalorder %s9, 9
    %p129 = pnand %p127, %p128
    %p130 = pneg %p129
    // Predicated region
    $region9: #{tpu_custom_call.1} parent=5 // pred_check
      _
    $region10: #{tpu_custom_call.1} parent=5 // pred_check_branch
      %132 = sbr.rel (%p129) target = $region12
    $region11: #{tpu_custom_call.1} parent=5 // pred_region
      %s133 = ssub.s32 %s9, 1
      // Predicated region
      $region13: #{tpu_custom_call.1} parent=11 // pred_check
        %p134 = pneg %p70
      $region14: #{tpu_custom_call.1} parent=11 // pred_check_branch
        %136 = sbr.rel (%p134) target = $region16
      $region15: #{tpu_custom_call.1} parent=11 // pred_region
        _
      $region16: #{tpu_custom_call.1} parent=11 // pred_fallthru
        _
      // Predicated region
      $region17: #{tpu_custom_call.1} parent=11 // pred_check
        %p137 = pneg %p91
      $region18: #{tpu_custom_call.1} parent=11 // pred_check_branch
        %139 = sbr.rel (%p137) target = $region20
      $region19: #{tpu_custom_call.1} parent=11 // pred_region
        _
      $region20: #{tpu_custom_call.1} parent=11 // pred_fallthru
        _
    $region12: #{tpu_custom_call.1} parent=5 // pred_fallthru
      _
    %p140 = scmp.lt.s32.totalorder %s9, 8
    // Predicated region
    $region21: #{tpu_custom_call.1} parent=5 // pred_check
      %p141 = pneg %p140
    $region22: #{tpu_custom_call.1} parent=5 // pred_check_branch
      %143 = sbr.rel (%p141) target = $region24
    $region23: #{tpu_custom_call.1} parent=5 // pred_region
      // Predicated region
      $region25: #{tpu_custom_call.1} parent=23 // pred_check
        %p144 = pneg %p43
      $region26: #{tpu_custom_call.1} parent=23 // pred_check_branch
        %146 = sbr.rel (%p144) target = $region28
      $region27: #{tpu_custom_call.1} parent=23 // pred_region
        %s147 = smul.u32 2, %s17
        %p148 = scmp.lt.s32.totalorder %s16, 7
        %s149 = scalar_select %p148, %s16, 7
        %p150 = scmp.lt.s32.totalorder %s147, 1
        %s151 = scalar_select %p150, %s147, 1
        %s152 = smul.addr %s151, 32
        %s153 = smul.addr %s149, 64
        %s154 = sadd.s32 %s152, %s153
        %s155 = smul.addr %s154, 8
        %s156 = scalar_lea.vmem %s0, %s155
        %s157 = smul.u32 2, %s17
      $region28: #{tpu_custom_call.1} parent=23 // pred_fallthru
        _
    $region24: #{tpu_custom_call.1} parent=5 // pred_fallthru
      _
    %p158 = scmp.le.s32.totalorder 1, %s9
    %p159 = scmp.lt.s32.totalorder %s9, 9
    %p160 = pnand %p158, %p159
    %p161 = pneg %p160
    // Predicated region
    $region29: #{tpu_custom_call.1} parent=5 // pred_check
      _
    $region30: #{tpu_custom_call.1} parent=5 // pred_check_branch
      %163 = sbr.rel (%p160) target = $region32
    $region31: #{tpu_custom_call.1} parent=5 // pred_region
      %s164 = ssub.s32 %s9, 1
      %s165 = smul.u32 2, %s19
      %p166 = scmp.lt.s32.totalorder %s18, 7
      %s167 = scalar_select %p166, %s18, 7
      %p168 = scmp.lt.s32.totalorder %s165, 1
      %s169 = scalar_select %p168, %s165, 1
      %s170 = smul.addr %s169, 32
      %s171 = smul.addr %s167, 64
      %s172 = sadd.s32 %s170, %s171
      %s173 = smul.addr %s172, 8
      %s174 = scalar_lea.vmem %s0, %s173
      %p175 = pneg %p49
      %p176 = pneg %p46
      %p177 = pneg %p70
      %p178 = pneg %p67
      %p179 = pneg %p91
      %p180 = pneg %p88
      %p181 = pneg %p119
      %p182 = pneg %p116
      %s183 = smul.u32 2, %s19
      %p184 = scmp.lt.s32.totalorder %s18, 7
      %s185 = scalar_select %p184, %s18, 7
      %p186 = scmp.lt.s32.totalorder %s183, 1
      %s187 = scalar_select %p186, %s183, 1
      %s188 = smul.addr %s187, 32
      %s189 = smul.addr %s185, 64
      %s190 = sadd.s32 %s188, %s189
      %s191 = smul.addr %s190, 8
      %s192 = scalar_lea.vmem %s3, %s191
      %s193 = smul.u32 2, %s19
      %p194 = scmp.lt.s32.totalorder %s18, 7
      %s195 = scalar_select %p194, %s18, 7
      %p196 = scmp.lt.s32.totalorder %s193, 1
      %s197 = scalar_select %p196, %s193, 1
      %s198 = smul.addr %s197, 32
      %s199 = smul.addr %s195, 64
      %s200 = sadd.s32 %s198, %s199
      %s201 = smul.addr %s200, 8
      %s202 = scalar_lea.vmem %s0, %s201
      %s203 = smul.u32 2, %s19
      %s204 = smul.u32 2, %s19
      %p205 = scmp.lt.s32.totalorder %s18, 7
      %s206 = scalar_select %p205, %s18, 7
      %p207 = scmp.lt.s32.totalorder %s204, 1
      %s208 = scalar_select %p207, %s204, 1
      %s209 = smul.addr %s208, 32
      %s210 = smul.addr %s206, 64
      %s211 = sadd.s32 %s209, %s210
      %s212 = smul.addr %s211, 8
      %s213 = scalar_lea.vmem %s3, %s212
      %s214 = smul.u32 2, %s19
      %vm215 = vcmask 31744
      %216 = vst.msk [vmem:[#allocation2] sm:$0xff] %vm215, 0.0
      %217 = vst.msk [vmem:[#allocation2 + $0x8] sm:$0xff] %vm215, 0.0
      %vm218 = vcmask 25600
      %219 = vst.msk [vmem:[#allocation2 + $0x10] sm:$0x3] %vm218, 0.0
      %220 = vst.msk [vmem:[#allocation2 + $0x1b0] sm:$0xff] %vm215, 0.0
      %221 = vst.msk [vmem:[#allocation2 + $0x1b8] sm:$0xff] %vm215, 0.0
      %222 = vst.msk [vmem:[#allocation2 + $0x1c0] sm:$0x3] %vm218, 0.0
      %s223 = scalar_lea.vmem [#allocation2], 408
      %224 = vst.msk [vmem:[%s223] sm:$0xff] %vm215, 0.0
      %225 = vst.msk [vmem:[%s223 + $0x8] sm:$0xff] %vm215, 0.0
      %226 = vst.msk [vmem:[%s223 + $0x10] sm:$0x3] %vm218, 0.0
      %227 = vst.msk [vmem:[%s223 + $0x1b0] sm:$0xff] %vm215, 0.0
      %228 = vst.msk [vmem:[%s223 + $0x1b8] sm:$0xff] %vm215, 0.0
      %229 = vst.msk [vmem:[%s223 + $0x1c0] sm:$0x3] %vm218, 0.0
      %vm230 = vcmask 24576
      %231 = vst.msk [vmem:[#allocation2] sm:$0x1] %vm230, 0.0
      %232 = vst.msk [vmem:[#allocation2 + $0x18] sm:$0x1] %vm230, 0.0
      %233 = vst.msk [vmem:[#allocation2 + $0x30] sm:$0x1] %vm230, 0.0
      %234 = vst.msk [vmem:[#allocation2 + $0x48] sm:$0x1] %vm230, 0.0
      %235 = vst.msk [vmem:[#allocation2 + $0x60] sm:$0x1] %vm230, 0.0
      %236 = vst.msk [vmem:[#allocation2 + $0x78] sm:$0x1] %vm230, 0.0
      %237 = vst.msk [vmem:[#allocation2 + $0x90] sm:$0x1] %vm230, 0.0
      %238 = vst.msk [vmem:[#allocation2 + $0xa8] sm:$0x1] %vm230, 0.0
      %239 = vst.msk [vmem:[#allocation2 + $0xc0] sm:$0x1] %vm230, 0.0
      %240 = vst.msk [vmem:[#allocation2 + $0xd8] sm:$0x1] %vm230, 0.0
      %241 = vst.msk [vmem:[#allocation2 + $0xf0] sm:$0x1] %vm230, 0.0
      %242 = vst.msk [vmem:[#allocation2 + $0x108] sm:$0x1] %vm230, 0.0
      %243 = vst.msk [vmem:[#allocation2 + $0x120] sm:$0x1] %vm230, 0.0
      %244 = vst.msk [vmem:[#allocation2 + $0x138] sm:$0x1] %vm230, 0.0
      %245 = vst.msk [vmem:[#allocation2 + $0x150] sm:$0x1] %vm230, 0.0
      %246 = vst.msk [vmem:[#allocation2 + $0x168] sm:$0x1] %vm230, 0.0
      %247 = vst.msk [vmem:[#allocation2 + $0x180] sm:$0x1] %vm230, 0.0
      %248 = vst.msk [vmem:[#allocation2 + $0x198] sm:$0x1] %vm230, 0.0
      %249 = vst.msk [vmem:[#allocation2 + $0x1b0] sm:$0x1] %vm230, 0.0
      %250 = vst.msk [vmem:[#allocation2 + $0x1c8] sm:$0x1] %vm230, 0.0
      %251 = vst.msk [vmem:[#allocation2 + $0x1e0] sm:$0x1] %vm230, 0.0
      %252 = vst.msk [vmem:[#allocation2 + $0x1f8] sm:$0x1] %vm230, 0.0
      %253 = vst.msk [vmem:[#allocation2 + $0x210] sm:$0x1] %vm230, 0.0
      %254 = vst.msk [vmem:[#allocation2 + $0x228] sm:$0x1] %vm230, 0.0
      %255 = vst.msk [vmem:[#allocation2 + $0x240] sm:$0x1] %vm230, 0.0
      %256 = vst.msk [vmem:[#allocation2 + $0x258] sm:$0x1] %vm230, 0.0
      %257 = vst.msk [vmem:[#allocation2 + $0x270] sm:$0x1] %vm230, 0.0
      %258 = vst.msk [vmem:[#allocation2 + $0x288] sm:$0x1] %vm230, 0.0
      %259 = vst.msk [vmem:[#allocation2 + $0x2a0] sm:$0x1] %vm230, 0.0
      %260 = vst.msk [vmem:[#allocation2 + $0x2b8] sm:$0x1] %vm230, 0.0
      %261 = vst.msk [vmem:[#allocation2 + $0x2d0] sm:$0x1] %vm230, 0.0
      %262 = vst.msk [vmem:[#allocation2 + $0x2e8] sm:$0x1] %vm230, 0.0
      %263 = vst.msk [vmem:[#allocation2 + $0x300] sm:$0x1] %vm230, 0.0
      %264 = vst.msk [vmem:[#allocation2 + $0x318] sm:$0x1] %vm230, 0.0
      %265 = vst.msk [vmem:[#allocation2 + $0x330] sm:$0x1] %vm230, 0.0
      %266 = vst.msk [vmem:[#allocation2 + $0x348] sm:$0x1] %vm230, 0.0
      %267 = vst.msk [vmem:[#allocation2 + $0x11] sm:$0x1] %vm230, 0.0
      %268 = vst.msk [vmem:[#allocation2 + $0x29] sm:$0x1] %vm230, 0.0
      %269 = vst.msk [vmem:[#allocation2 + $0x41] sm:$0x1] %vm230, 0.0
      %270 = vst.msk [vmem:[#allocation2 + $0x59] sm:$0x1] %vm230, 0.0
      %271 = vst.msk [vmem:[#allocation2 + $0x71] sm:$0x1] %vm230, 0.0
      %272 = vst.msk [vmem:[#allocation2 + $0x89] sm:$0x1] %vm230, 0.0
      %273 = vst.msk [vmem:[#allocation2 + $0xa1] sm:$0x1] %vm230, 0.0
      %274 = vst.msk [vmem:[#allocation2 + $0xb9] sm:$0x1] %vm230, 0.0
      %275 = vst.msk [vmem:[#allocation2 + $0xd1] sm:$0x1] %vm230, 0.0
      %276 = vst.msk [vmem:[#allocation2 + $0xe9] sm:$0x1] %vm230, 0.0
      %277 = vst.msk [vmem:[#allocation2 + $0x101] sm:$0x1] %vm230, 0.0
      %278 = vst.msk [vmem:[#allocation2 + $0x119] sm:$0x1] %vm230, 0.0
      %279 = vst.msk [vmem:[#allocation2 + $0x131] sm:$0x1] %vm230, 0.0
      %280 = vst.msk [vmem:[#allocation2 + $0x149] sm:$0x1] %vm230, 0.0
      %281 = vst.msk [vmem:[#allocation2 + $0x161] sm:$0x1] %vm230, 0.0
      %282 = vst.msk [vmem:[#allocation2 + $0x179] sm:$0x1] %vm230, 0.0
      %283 = vst.msk [vmem:[#allocation2 + $0x191] sm:$0x1] %vm230, 0.0
      %284 = vst.msk [vmem:[#allocation2 + $0x1a9] sm:$0x1] %vm230, 0.0
      %285 = vst.msk [vmem:[#allocation2 + $0x1c1] sm:$0x1] %vm230, 0.0
      %286 = vst.msk [vmem:[#allocation2 + $0x1d9] sm:$0x1] %vm230, 0.0
      %287 = vst.msk [vmem:[#allocation2 + $0x1f1] sm:$0x1] %vm230, 0.0
      %288 = vst.msk [vmem:[#allocation2 + $0x209] sm:$0x1] %vm230, 0.0
      %289 = vst.msk [vmem:[#allocation2 + $0x221] sm:$0x1] %vm230, 0.0
      %290 = vst.msk [vmem:[#allocation2 + $0x239] sm:$0x1] %vm230, 0.0
      %291 = vst.msk [vmem:[#allocation2 + $0x251] sm:$0x1] %vm230, 0.0
      %292 = vst.msk [vmem:[#allocation2 + $0x269] sm:$0x1] %vm230, 0.0
      %293 = vst.msk [vmem:[#allocation2 + $0x281] sm:$0x1] %vm230, 0.0
      %294 = vst.msk [vmem:[#allocation2 + $0x299] sm:$0x1] %vm230, 0.0
      %295 = vst.msk [vmem:[#allocation2 + $0x2b1] sm:$0x1] %vm230, 0.0
      %296 = vst.msk [vmem:[#allocation2 + $0x2c9] sm:$0x1] %vm230, 0.0
      %297 = vst.msk [vmem:[#allocation2 + $0x2e1] sm:$0x1] %vm230, 0.0
      %298 = vst.msk [vmem:[#allocation2 + $0x2f9] sm:$0x1] %vm230, 0.0
      %299 = vst.msk [vmem:[#allocation2 + $0x311] sm:$0x1] %vm230, 0.0
      %300 = vst.msk [vmem:[#allocation2 + $0x329] sm:$0x1] %vm230, 0.0
      %301 = vst.msk [vmem:[#allocation2 + $0x341] sm:$0x1] %vm230, 0.0
      %302 = vst.msk [vmem:[#allocation2 + $0x359] sm:$0x1] %vm230, 0.0
      %v303 = vld [vmem:[%s202] sm:$0xff]
      %v304 = vld [vmem:[%s202 + $0x8] sm:$0xff]
      %v305 = vld [vmem:[%s202 + $0x10] sm:$0xff]
      %v306 = vld [vmem:[%s202 + $0x18] sm:$0xff]
      %v307 = vld [vmem:[%s202 + $0x20] sm:$0xff]
      %v308 = vld [vmem:[%s202 + $0x28] sm:$0xff]
      %v309 = vld [vmem:[%s202 + $0x30] sm:$0xff]
      %v310 = vld [vmem:[%s202 + $0x38] sm:$0xff]
      %v311 = vld [vmem:[%s202 + $0x40] sm:$0xff]
      %v312 = vld [vmem:[%s202 + $0x48] sm:$0xff]
      %v313 = vld [vmem:[%s202 + $0x50] sm:$0xff]
      %v314 = vld [vmem:[%s202 + $0x58] sm:$0xff]
      %v315 = vld [vmem:[%s202 + $0x60] sm:$0xff]
      %v316 = vld [vmem:[%s202 + $0x68] sm:$0xff]
      %v317 = vld [vmem:[%s202 + $0x70] sm:$0xff]
      %v318 = vld [vmem:[%s202 + $0x78] sm:$0xff]
      %v319 = vld [vmem:[%s202 + $0x80] sm:$0xff]
      %v320 = vld [vmem:[%s202 + $0x88] sm:$0xff]
      %v321 = vld [vmem:[%s202 + $0x90] sm:$0xff]
      %v322 = vld [vmem:[%s202 + $0x98] sm:$0xff]
      %v323 = vld [vmem:[%s202 + $0xa0] sm:$0xff]
      %v324 = vld [vmem:[%s202 + $0xa8] sm:$0xff]
      %v325 = vld [vmem:[%s202 + $0xb0] sm:$0xff]
      %v326 = vld [vmem:[%s202 + $0xb8] sm:$0xff]
      %v327 = vld [vmem:[%s202 + $0xc0] sm:$0xff]
      %v328 = vld [vmem:[%s202 + $0xc8] sm:$0xff]
      %v329 = vld [vmem:[%s202 + $0xd0] sm:$0xff]
      %v330 = vld [vmem:[%s202 + $0xd8] sm:$0xff]
      %v331 = vld [vmem:[%s202 + $0xe0] sm:$0xff]
      %v332 = vld [vmem:[%s202 + $0xe8] sm:$0xff]
      %v333 = vld [vmem:[%s202 + $0xf0] sm:$0xff]
      %v334 = vld [vmem:[%s202 + $0xf8] sm:$0xff]
      %v335 = vld [vmem:[%s202 + $0x100] sm:$0xff]
      %v336 = vld [vmem:[%s202 + $0x108] sm:$0xff]
      %v337 = vld [vmem:[%s202 + $0x110] sm:$0xff]
      %v338 = vld [vmem:[%s202 + $0x118] sm:$0xff]
      %v339 = vld [vmem:[%s202 + $0x120] sm:$0xff]
      %v340 = vld [vmem:[%s202 + $0x128] sm:$0xff]
      %v341 = vld [vmem:[%s202 + $0x130] sm:$0xff]
      %v342 = vld [vmem:[%s202 + $0x138] sm:$0xff]
      %v343 = vld [vmem:[%s202 + $0x140] sm:$0xff]
      %v344 = vld [vmem:[%s202 + $0x148] sm:$0xff]
      %v345 = vld [vmem:[%s202 + $0x150] sm:$0xff]
      %v346 = vld [vmem:[%s202 + $0x158] sm:$0xff]
      %v347 = vld [vmem:[%s202 + $0x160] sm:$0xff]
      %v348 = vld [vmem:[%s202 + $0x168] sm:$0xff]
      %v349 = vld [vmem:[%s202 + $0x170] sm:$0xff]
      %v350 = vld [vmem:[%s202 + $0x178] sm:$0xff]
      %v351 = vld [vmem:[%s202 + $0x180] sm:$0xff]
      %v352 = vld [vmem:[%s202 + $0x188] sm:$0xff]
      %v353 = vld [vmem:[%s202 + $0x190] sm:$0xff]
      %v354 = vld [vmem:[%s202 + $0x198] sm:$0xff]
      %v355 = vld [vmem:[%s202 + $0x1a0] sm:$0xff]
      %v356 = vld [vmem:[%s202 + $0x1a8] sm:$0xff]
      %v357 = vld [vmem:[%s202 + $0x1b0] sm:$0xff]
      %v358 = vld [vmem:[%s202 + $0x1b8] sm:$0xff]
      %v359 = vld [vmem:[%s202 + $0x1c0] sm:$0xff]
      %v360 = vld [vmem:[%s202 + $0x1c8] sm:$0xff]
      %v361 = vld [vmem:[%s202 + $0x1d0] sm:$0xff]
      %v362 = vld [vmem:[%s202 + $0x1d8] sm:$0xff]
      %v363 = vld [vmem:[%s202 + $0x1e0] sm:$0xff]
      %v364 = vld [vmem:[%s202 + $0x1e8] sm:$0xff]
      %v365 = vld [vmem:[%s202 + $0x1f0] sm:$0xff]
      %v366 = vld [vmem:[%s202 + $0x1f8] sm:$0xff]
      %s367 = scalar_lea.vmem [#allocation2], 24
      %368 = vst.msk [vmem:[%s367 + $0x1] sm:$0xff] %vm215, %v303
      %369 = vst.msk [vmem:[%s367 + $0x9] sm:$0xff] %vm215, %v304
      %370 = vst.msk [vmem:[%s367 + $0x19] sm:$0xff] %vm215, %v305
      %371 = vst.msk [vmem:[%s367 + $0x21] sm:$0xff] %vm215, %v306
      %372 = vst.msk [vmem:[%s367 + $0x31] sm:$0xff] %vm215, %v307
      %373 = vst.msk [vmem:[%s367 + $0x39] sm:$0xff] %vm215, %v308
      %374 = vst.msk [vmem:[%s367 + $0x49] sm:$0xff] %vm215, %v309
      %375 = vst.msk [vmem:[%s367 + $0x51] sm:$0xff] %vm215, %v310
      %376 = vst.msk [vmem:[%s367 + $0x61] sm:$0xff] %vm215, %v311
      %377 = vst.msk [vmem:[%s367 + $0x69] sm:$0xff] %vm215, %v312
      %378 = vst.msk [vmem:[%s367 + $0x79] sm:$0xff] %vm215, %v313
      %379 = vst.msk [vmem:[%s367 + $0x81] sm:$0xff] %vm215, %v314
      %380 = vst.msk [vmem:[%s367 + $0x91] sm:$0xff] %vm215, %v315
      %381 = vst.msk [vmem:[%s367 + $0x99] sm:$0xff] %vm215, %v316
      %382 = vst.msk [vmem:[%s367 + $0xa9] sm:$0xff] %vm215, %v317
      %383 = vst.msk [vmem:[%s367 + $0xb1] sm:$0xff] %vm215, %v318
      %384 = vst.msk [vmem:[%s367 + $0xc1] sm:$0xff] %vm215, %v319
      %385 = vst.msk [vmem:[%s367 + $0xc9] sm:$0xff] %vm215, %v320
      %386 = vst.msk [vmem:[%s367 + $0xd9] sm:$0xff] %vm215, %v321
      %387 = vst.msk [vmem:[%s367 + $0xe1] sm:$0xff] %vm215, %v322
      %388 = vst.msk [vmem:[%s367 + $0xf1] sm:$0xff] %vm215, %v323
      %389 = vst.msk [vmem:[%s367 + $0xf9] sm:$0xff] %vm215, %v324
      %390 = vst.msk [vmem:[%s367 + $0x109] sm:$0xff] %vm215, %v325
      %391 = vst.msk [vmem:[%s367 + $0x111] sm:$0xff] %vm215, %v326
      %392 = vst.msk [vmem:[%s367 + $0x121] sm:$0xff] %vm215, %v327
      %393 = vst.msk [vmem:[%s367 + $0x129] sm:$0xff] %vm215, %v328
      %394 = vst.msk [vmem:[%s367 + $0x139] sm:$0xff] %vm215, %v329
      %395 = vst.msk [vmem:[%s367 + $0x141] sm:$0xff] %vm215, %v330
      %396 = vst.msk [vmem:[%s367 + $0x151] sm:$0xff] %vm215, %v331
      %397 = vst.msk [vmem:[%s367 + $0x159] sm:$0xff] %vm215, %v332
      %398 = vst.msk [vmem:[%s367 + $0x169] sm:$0xff] %vm215, %v333
      %399 = vst.msk [vmem:[%s367 + $0x171] sm:$0xff] %vm215, %v334
      %400 = vst.msk [vmem:[%s367 + $0x1b1] sm:$0xff] %vm215, %v335
      %401 = vst.msk [vmem:[%s367 + $0x1b9] sm:$0xff] %vm215, %v336
      %402 = vst.msk [vmem:[%s367 + $0x1c9] sm:$0xff] %vm215, %v337
      %403 = vst.msk [vmem:[%s367 + $0x1d1] sm:$0xff] %vm215, %v338
      %404 = vst.msk [vmem:[%s367 + $0x1e1] sm:$0xff] %vm215, %v339
      %405 = vst.msk [vmem:[%s367 + $0x1e9] sm:$0xff] %vm215, %v340
      %406 = vst.msk [vmem:[%s367 + $0x1f9] sm:$0xff] %vm215, %v341
      %407 = vst.msk [vmem:[%s367 + $0x201] sm:$0xff] %vm215, %v342
      %408 = vst.msk [vmem:[%s367 + $0x211] sm:$0xff] %vm215, %v343
      %409 = vst.msk [vmem:[%s367 + $0x219] sm:$0xff] %vm215, %v344
      %410 = vst.msk [vmem:[%s367 + $0x229] sm:$0xff] %vm215, %v345
      %411 = vst.msk [vmem:[%s367 + $0x231] sm:$0xff] %vm215, %v346
      %412 = vst.msk [vmem:[%s367 + $0x241] sm:$0xff] %vm215, %v347
      %413 = vst.msk [vmem:[%s367 + $0x249] sm:$0xff] %vm215, %v348
      %414 = vst.msk [vmem:[%s367 + $0x259] sm:$0xff] %vm215, %v349
      %415 = vst.msk [vmem:[%s367 + $0x261] sm:$0xff] %vm215, %v350
      %416 = vst.msk [vmem:[%s367 + $0x271] sm:$0xff] %vm215, %v351
      %417 = vst.msk [vmem:[%s367 + $0x279] sm:$0xff] %vm215, %v352
      %418 = vst.msk [vmem:[%s367 + $0x289] sm:$0xff] %vm215, %v353
      %419 = vst.msk [vmem:[%s367 + $0x291] sm:$0xff] %vm215, %v354
      %420 = vst.msk [vmem:[%s367 + $0x2a1] sm:$0xff] %vm215, %v355
      %421 = vst.msk [vmem:[%s367 + $0x2a9] sm:$0xff] %vm215, %v356
      %422 = vst.msk [vmem:[%s367 + $0x2b9] sm:$0xff] %vm215, %v357
      %423 = vst.msk [vmem:[%s367 + $0x2c1] sm:$0xff] %vm215, %v358
      %424 = vst.msk [vmem:[%s367 + $0x2d1] sm:$0xff] %vm215, %v359
      %425 = vst.msk [vmem:[%s367 + $0x2d9] sm:$0xff] %vm215, %v360
      %426 = vst.msk [vmem:[%s367 + $0x2e9] sm:$0xff] %vm215, %v361
      %427 = vst.msk [vmem:[%s367 + $0x2f1] sm:$0xff] %vm215, %v362
      %428 = vst.msk [vmem:[%s367 + $0x301] sm:$0xff] %vm215, %v363
      %429 = vst.msk [vmem:[%s367 + $0x309] sm:$0xff] %vm215, %v364
      %430 = vst.msk [vmem:[%s367 + $0x319] sm:$0xff] %vm215, %v365
      %431 = vst.msk [vmem:[%s367 + $0x321] sm:$0xff] %vm215, %v366
      %v432 = vld [vmem:[#allocation2] sm:$0xff]
      %v433 = vld [vmem:[#allocation2 + $0x8] sm:$0xff]
      %v434 = vld [vmem:[#allocation2 + $0x18] sm:$0xff]
      %v435 = vld [vmem:[#allocation2 + $0x20] sm:$0xff]
      %v436 = vld [vmem:[#allocation2 + $0x30] sm:$0xff]
      %v437 = vld [vmem:[#allocation2 + $0x38] sm:$0xff]
      %v438 = vld [vmem:[#allocation2 + $0x48] sm:$0xff]
      %v439 = vld [vmem:[#allocation2 + $0x50] sm:$0xff]
      %v440 = vld [vmem:[#allocation2 + $0x60] sm:$0xff]
      %v441 = vld [vmem:[#allocation2 + $0x68] sm:$0xff]
      %v442 = vld [vmem:[#allocation2 + $0x78] sm:$0xff]
      %v443 = vld [vmem:[#allocation2 + $0x80] sm:$0xff]
      %v444 = vld [vmem:[#allocation2 + $0x90] sm:$0xff]
      %v445 = vld [vmem:[#allocation2 + $0x98] sm:$0xff]
      %v446 = vld [vmem:[#allocation2 + $0xa8] sm:$0xff]
      %v447 = vld [vmem:[#allocation2 + $0xb0] sm:$0xff]
      %v448 = vld [vmem:[#allocation2 + $0xc0] sm:$0xff]
      %v449 = vld [vmem:[#allocation2 + $0xc8] sm:$0xff]
      %v450 = vld [vmem:[#allocation2 + $0xd8] sm:$0xff]
      %v451 = vld [vmem:[#allocation2 + $0xe0] sm:$0xff]
      %v452 = vld [vmem:[#allocation2 + $0xf0] sm:$0xff]
      %v453 = vld [vmem:[#allocation2 + $0xf8] sm:$0xff]
      %v454 = vld [vmem:[#allocation2 + $0x108] sm:$0xff]
      %v455 = vld [vmem:[#allocation2 + $0x110] sm:$0xff]
      %v456 = vld [vmem:[#allocation2 + $0x120] sm:$0xff]
      %v457 = vld [vmem:[#allocation2 + $0x128] sm:$0xff]
      %v458 = vld [vmem:[#allocation2 + $0x138] sm:$0xff]
      %v459 = vld [vmem:[#allocation2 + $0x140] sm:$0xff]
      %v460 = vld [vmem:[#allocation2 + $0x150] sm:$0xff]
      %v461 = vld [vmem:[#allocation2 + $0x158] sm:$0xff]
      %v462 = vld [vmem:[#allocation2 + $0x168] sm:$0xff]
      %v463 = vld [vmem:[#allocation2 + $0x170] sm:$0xff]
      %v464 = vld [vmem:[#allocation2 + $0x1b0] sm:$0xff]
      %v465 = vld [vmem:[#allocation2 + $0x1b8] sm:$0xff]
      %v466 = vld [vmem:[#allocation2 + $0x1c8] sm:$0xff]
      %v467 = vld [vmem:[#allocation2 + $0x1d0] sm:$0xff]
      %v468 = vld [vmem:[#allocation2 + $0x1e0] sm:$0xff]
      %v469 = vld [vmem:[#allocation2 + $0x1e8] sm:$0xff]
      %v470 = vld [vmem:[#allocation2 + $0x1f8] sm:$0xff]
      %v471 = vld [vmem:[#allocation2 + $0x200] sm:$0xff]
      %v472 = vld [vmem:[#allocation2 + $0x210] sm:$0xff]
      %v473 = vld [vmem:[#allocation2 + $0x218] sm:$0xff]
      %v474 = vld [vmem:[#allocation2 + $0x228] sm:$0xff]
      %v475 = vld [vmem:[#allocation2 + $0x230] sm:$0xff]
      %v476 = vld [vmem:[#allocation2 + $0x240] sm:$0xff]
      %v477 = vld [vmem:[#allocation2 + $0x248] sm:$0xff]
      %v478 = vld [vmem:[#allocation2 + $0x258] sm:$0xff]
      %v479 = vld [vmem:[#allocation2 + $0x260] sm:$0xff]
      %v480 = vld [vmem:[#allocation2 + $0x270] sm:$0xff]
      %v481 = vld [vmem:[#allocation2 + $0x278] sm:$0xff]
      %v482 = vld [vmem:[#allocation2 + $0x288] sm:$0xff]
      %v483 = vld [vmem:[#allocation2 + $0x290] sm:$0xff]
      %v484 = vld [vmem:[#allocation2 + $0x2a0] sm:$0xff]
      %v485 = vld [vmem:[#allocation2 + $0x2a8] sm:$0xff]
      %v486 = vld [vmem:[#allocation2 + $0x2b8] sm:$0xff]
      %v487 = vld [vmem:[#allocation2 + $0x2c0] sm:$0xff]
      %v488 = vld [vmem:[#allocation2 + $0x2d0] sm:$0xff]
      %v489 = vld [vmem:[#allocation2 + $0x2d8] sm:$0xff]
      %v490 = vld [vmem:[#allocation2 + $0x2e8] sm:$0xff]
      %v491 = vld [vmem:[#allocation2 + $0x2f0] sm:$0xff]
      %v492 = vld [vmem:[#allocation2 + $0x300] sm:$0xff]
      %v493 = vld [vmem:[#allocation2 + $0x308] sm:$0xff]
      %v494 = vld [vmem:[#allocation2 + $0x318] sm:$0xff]
      %v495 = vld [vmem:[#allocation2 + $0x320] sm:$0xff]
      %496 = vst.msk [vmem:[#allocation3] sm:$0xff] %vm215, %v432
      %497 = vst.msk [vmem:[#allocation3 + $0x8] sm:$0xff] %vm215, %v433
      %498 = vst.msk [vmem:[#allocation3 + $0x10] sm:$0xff] %vm215, %v434
      %499 = vst.msk [vmem:[#allocation3 + $0x18] sm:$0xff] %vm215, %v435
      %500 = vst.msk [vmem:[#allocation3 + $0x20] sm:$0xff] %vm215, %v436
      %501 = vst.msk [vmem:[#allocation3 + $0x28] sm:$0xff] %vm215, %v437
      %502 = vst.msk [vmem:[#allocation3 + $0x30] sm:$0xff] %vm215, %v438
      %503 = vst.msk [vmem:[#allocation3 + $0x38] sm:$0xff] %vm215, %v439
      %504 = vst.msk [vmem:[#allocation3 + $0x40] sm:$0xff] %vm215, %v440
      %505 = vst.msk [vmem:[#allocation3 + $0x48] sm:$0xff] %vm215, %v441
      %506 = vst.msk [vmem:[#allocation3 + $0x50] sm:$0xff] %vm215, %v442
      %507 = vst.msk [vmem:[#allocation3 + $0x58] sm:$0xff] %vm215, %v443
      %508 = vst.msk [vmem:[#allocation3 + $0x60] sm:$0xff] %vm215, %v444
      %509 = vst.msk [vmem:[#allocation3 + $0x68] sm:$0xff] %vm215, %v445
      %510 = vst.msk [vmem:[#allocation3 + $0x70] sm:$0xff] %vm215, %v446
      %511 = vst.msk [vmem:[#allocation3 + $0x78] sm:$0xff] %vm215, %v447
      %512 = vst.msk [vmem:[#allocation3 + $0x80] sm:$0xff] %vm215, %v448
      %513 = vst.msk [vmem:[#allocation3 + $0x88] sm:$0xff] %vm215, %v449
      %514 = vst.msk [vmem:[#allocation3 + $0x90] sm:$0xff] %vm215, %v450
      %515 = vst.msk [vmem:[#allocation3 + $0x98] sm:$0xff] %vm215, %v451
      %516 = vst.msk [vmem:[#allocation3 + $0xa0] sm:$0xff] %vm215, %v452
      %517 = vst.msk [vmem:[#allocation3 + $0xa8] sm:$0xff] %vm215, %v453
      %518 = vst.msk [vmem:[#allocation3 + $0xb0] sm:$0xff] %vm215, %v454
      %519 = vst.msk [vmem:[#allocation3 + $0xb8] sm:$0xff] %vm215, %v455
      %520 = vst.msk [vmem:[#allocation3 + $0xc0] sm:$0xff] %vm215, %v456
      %521 = vst.msk [vmem:[#allocation3 + $0xc8] sm:$0xff] %vm215, %v457
      %522 = vst.msk [vmem:[#allocation3 + $0xd0] sm:$0xff] %vm215, %v458
      %523 = vst.msk [vmem:[#allocation3 + $0xd8] sm:$0xff] %vm215, %v459
      %524 = vst.msk [vmem:[#allocation3 + $0xe0] sm:$0xff] %vm215, %v460
      %525 = vst.msk [vmem:[#allocation3 + $0xe8] sm:$0xff] %vm215, %v461
      %526 = vst.msk [vmem:[#allocation3 + $0xf0] sm:$0xff] %vm215, %v462
      %527 = vst.msk [vmem:[#allocation3 + $0xf8] sm:$0xff] %vm215, %v463
      %528 = vst.msk [vmem:[#allocation3 + $0x100] sm:$0xff] %vm215, %v464
      %529 = vst.msk [vmem:[#allocation3 + $0x108] sm:$0xff] %vm215, %v465
      %530 = vst.msk [vmem:[#allocation3 + $0x110] sm:$0xff] %vm215, %v466
      %531 = vst.msk [vmem:[#allocation3 + $0x118] sm:$0xff] %vm215, %v467
      %532 = vst.msk [vmem:[#allocation3 + $0x120] sm:$0xff] %vm215, %v468
      %533 = vst.msk [vmem:[#allocation3 + $0x128] sm:$0xff] %vm215, %v469
      %534 = vst.msk [vmem:[#allocation3 + $0x130] sm:$0xff] %vm215, %v470
      %535 = vst.msk [vmem:[#allocation3 + $0x138] sm:$0xff] %vm215, %v471
      %536 = vst.msk [vmem:[#allocation3 + $0x140] sm:$0xff] %vm215, %v472
      %537 = vst.msk [vmem:[#allocation3 + $0x148] sm:$0xff] %vm215, %v473
      %538 = vst.msk [vmem:[#allocation3 + $0x150] sm:$0xff] %vm215, %v474
      %539 = vst.msk [vmem:[#allocation3 + $0x158] sm:$0xff] %vm215, %v475
      %540 = vst.msk [vmem:[#allocation3 + $0x160] sm:$0xff] %vm215, %v476
      %541 = vst.msk [vmem:[#allocation3 + $0x168] sm:$0xff] %vm215, %v477
      %542 = vst.msk [vmem:[#allocation3 + $0x170] sm:$0xff] %vm215, %v478
      %543 = vst.msk [vmem:[#allocation3 + $0x178] sm:$0xff] %vm215, %v479
      %544 = vst.msk [vmem:[#allocation3 + $0x180] sm:$0xff] %vm215, %v480
      %545 = vst.msk [vmem:[#allocation3 + $0x188] sm:$0xff] %vm215, %v481
      %546 = vst.msk [vmem:[#allocation3 + $0x190] sm:$0xff] %vm215, %v482
      %547 = vst.msk [vmem:[#allocation3 + $0x198] sm:$0xff] %vm215, %v483
      %548 = vst.msk [vmem:[#allocation3 + $0x1a0] sm:$0xff] %vm215, %v484
      %549 = vst.msk [vmem:[#allocation3 + $0x1a8] sm:$0xff] %vm215, %v485
      %550 = vst.msk [vmem:[#allocation3 + $0x1b0] sm:$0xff] %vm215, %v486
      %551 = vst.msk [vmem:[#allocation3 + $0x1b8] sm:$0xff] %vm215, %v487
      %552 = vst.msk [vmem:[#allocation3 + $0x1c0] sm:$0xff] %vm215, %v488
      %553 = vst.msk [vmem:[#allocation3 + $0x1c8] sm:$0xff] %vm215, %v489
      %554 = vst.msk [vmem:[#allocation3 + $0x1d0] sm:$0xff] %vm215, %v490
      %555 = vst.msk [vmem:[#allocation3 + $0x1d8] sm:$0xff] %vm215, %v491
      %556 = vst.msk [vmem:[#allocation3 + $0x1e0] sm:$0xff] %vm215, %v492
      %557 = vst.msk [vmem:[#allocation3 + $0x1e8] sm:$0xff] %vm215, %v493
      %558 = vst.msk [vmem:[#allocation3 + $0x1f0] sm:$0xff] %vm215, %v494
      %559 = vst.msk [vmem:[#allocation3 + $0x1f8] sm:$0xff] %vm215, %v495
      %v560 = vld [vmem:[#allocation2 + $0x1] sm:$0xff]
      %v561 = vld [vmem:[#allocation2 + $0x9] sm:$0xff]
      %v562 = vld [vmem:[#allocation2 + $0x19] sm:$0xff]
      %v563 = vld [vmem:[#allocation2 + $0x21] sm:$0xff]
      %v564 = vld [vmem:[#allocation2 + $0x31] sm:$0xff]
      %v565 = vld [vmem:[#allocation2 + $0x39] sm:$0xff]
      %v566 = vld [vmem:[#allocation2 + $0x49] sm:$0xff]
      %v567 = vld [vmem:[#allocation2 + $0x51] sm:$0xff]
      %v568 = vld [vmem:[#allocation2 + $0x61] sm:$0xff]
      %v569 = vld [vmem:[#allocation2 + $0x69] sm:$0xff]
      %v570 = vld [vmem:[#allocation2 + $0x79] sm:$0xff]
      %v571 = vld [vmem:[#allocation2 + $0x81] sm:$0xff]
      %v572 = vld [vmem:[#allocation2 + $0x91] sm:$0xff]
      %v573 = vld [vmem:[#allocation2 + $0x99] sm:$0xff]
      %v574 = vld [vmem:[#allocation2 + $0xa9] sm:$0xff]
      %v575 = vld [vmem:[#allocation2 + $0xb1] sm:$0xff]
      %v576 = vld [vmem:[#allocation2 + $0xc1] sm:$0xff]
      %v577 = vld [vmem:[#allocation2 + $0xc9] sm:$0xff]
      %v578 = vld [vmem:[#allocation2 + $0xd9] sm:$0xff]
      %v579 = vld [vmem:[#allocation2 + $0xe1] sm:$0xff]
      %v580 = vld [vmem:[#allocation2 + $0xf1] sm:$0xff]
      %v581 = vld [vmem:[#allocation2 + $0xf9] sm:$0xff]
      %v582 = vld [vmem:[#allocation2 + $0x109] sm:$0xff]
      %v583 = vld [vmem:[#allocation2 + $0x111] sm:$0xff]
      %v584 = vld [vmem:[#allocation2 + $0x121] sm:$0xff]
      %v585 = vld [vmem:[#allocation2 + $0x129] sm:$0xff]
      %v586 = vld [vmem:[#allocation2 + $0x139] sm:$0xff]
      %v587 = vld [vmem:[#allocation2 + $0x141] sm:$0xff]
      %v588 = vld [vmem:[#allocation2 + $0x151] sm:$0xff]
      %v589 = vld [vmem:[#allocation2 + $0x159] sm:$0xff]
      %v590 = vld [vmem:[#allocation2 + $0x169] sm:$0xff]
      %v591 = vld [vmem:[#allocation2 + $0x171] sm:$0xff]
      %v592 = vld [vmem:[#allocation2 + $0x1b1] sm:$0xff]
      %v593 = vld [vmem:[#allocation2 + $0x1b9] sm:$0xff]
      %v594 = vld [vmem:[#allocation2 + $0x1c9] sm:$0xff]
      %v595 = vld [vmem:[#allocation2 + $0x1d1] sm:$0xff]
      %v596 = vld [vmem:[#allocation2 + $0x1e1] sm:$0xff]
      %v597 = vld [vmem:[#allocation2 + $0x1e9] sm:$0xff]
      %v598 = vld [vmem:[#allocation2 + $0x1f9] sm:$0xff]
      %v599 = vld [vmem:[#allocation2 + $0x201] sm:$0xff]
      %v600 = vld [vmem:[#allocation2 + $0x211] sm:$0xff]
      %v601 = vld [vmem:[#allocation2 + $0x219] sm:$0xff]
      %v602 = vld [vmem:[#allocation2 + $0x229] sm:$0xff]
      %v603 = vld [vmem:[#allocation2 + $0x231] sm:$0xff]
      %v604 = vld [vmem:[#allocation2 + $0x241] sm:$0xff]
      %v605 = vld [vmem:[#allocation2 + $0x249] sm:$0xff]
      %v606 = vld [vmem:[#allocation2 + $0x259] sm:$0xff]
      %v607 = vld [vmem:[#allocation2 + $0x261] sm:$0xff]
      %v608 = vld [vmem:[#allocation2 + $0x271] sm:$0xff]
      %v609 = vld [vmem:[#allocation2 + $0x279] sm:$0xff]
      %v610 = vld [vmem:[#allocation2 + $0x289] sm:$0xff]
      %v611 = vld [vmem:[#allocation2 + $0x291] sm:$0xff]
      %v612 = vld [vmem:[#allocation2 + $0x2a1] sm:$0xff]
      %v613 = vld [vmem:[#allocation2 + $0x2a9] sm:$0xff]
      %v614 = vld [vmem:[#allocation2 + $0x2b9] sm:$0xff]
      %v615 = vld [vmem:[#allocation2 + $0x2c1] sm:$0xff]
      %v616 = vld [vmem:[#allocation2 + $0x2d1] sm:$0xff]
      %v617 = vld [vmem:[#allocation2 + $0x2d9] sm:$0xff]
      %v618 = vld [vmem:[#allocation2 + $0x2e9] sm:$0xff]
      %v619 = vld [vmem:[#allocation2 + $0x2f1] sm:$0xff]
      %v620 = vld [vmem:[#allocation2 + $0x301] sm:$0xff]
      %v621 = vld [vmem:[#allocation2 + $0x309] sm:$0xff]
      %v622 = vld [vmem:[#allocation2 + $0x319] sm:$0xff]
      %v623 = vld [vmem:[#allocation2 + $0x321] sm:$0xff]
      %688 = vrot.lane.b32.xlu0 %v560, 4
      %v689 = vpop.permute.xlu0 %688
      %690 = vrot.lane.b32.xlu0 %v561, 4
      %v691 = vpop.permute.xlu0 %690
      %692 = vrot.lane.b32.xlu0 %v562, 4
      %v693 = vpop.permute.xlu0 %692
      %694 = vrot.lane.b32.xlu0 %v563, 4
      %v695 = vpop.permute.xlu0 %694
      %696 = vrot.lane.b32.xlu0 %v564, 4
      %v697 = vpop.permute.xlu0 %696
      %698 = vrot.lane.b32.xlu0 %v565, 4
      %v699 = vpop.permute.xlu0 %698
      %700 = vrot.lane.b32.xlu0 %v566, 4
      %v701 = vpop.permute.xlu0 %700
      %702 = vrot.lane.b32.xlu0 %v567, 4
      %v703 = vpop.permute.xlu0 %702
      %704 = vrot.lane.b32.xlu0 %v568, 4
      %v705 = vpop.permute.xlu0 %704
      %706 = vrot.lane.b32.xlu0 %v569, 4
      %v707 = vpop.permute.xlu0 %706
      %708 = vrot.lane.b32.xlu0 %v570, 4
      %v709 = vpop.permute.xlu0 %708
      %710 = vrot.lane.b32.xlu0 %v571, 4
      %v711 = vpop.permute.xlu0 %710
      %712 = vrot.lane.b32.xlu0 %v572, 4
      %v713 = vpop.permute.xlu0 %712
      %714 = vrot.lane.b32.xlu0 %v573, 4
      %v715 = vpop.permute.xlu0 %714
      %716 = vrot.lane.b32.xlu0 %v574, 4
      %v717 = vpop.permute.xlu0 %716
      %718 = vrot.lane.b32.xlu0 %v575, 4
      %v719 = vpop.permute.xlu0 %718
      %720 = vrot.lane.b32.xlu0 %v576, 4
      %v721 = vpop.permute.xlu0 %720
      %722 = vrot.lane.b32.xlu0 %v577, 4
      %v723 = vpop.permute.xlu0 %722
      %724 = vrot.lane.b32.xlu0 %v578, 4
      %v725 = vpop.permute.xlu0 %724
      %726 = vrot.lane.b32.xlu0 %v579, 4
      %v727 = vpop.permute.xlu0 %726
      %728 = vrot.lane.b32.xlu0 %v580, 4
      %v729 = vpop.permute.xlu0 %728
      %730 = vrot.lane.b32.xlu0 %v581, 4
      %v731 = vpop.permute.xlu0 %730
      %732 = vrot.lane.b32.xlu0 %v582, 4
      %v733 = vpop.permute.xlu0 %732
      %734 = vrot.lane.b32.xlu0 %v583, 4
      %v735 = vpop.permute.xlu0 %734
      %736 = vrot.lane.b32.xlu0 %v584, 4
      %v737 = vpop.permute.xlu0 %736
      %738 = vrot.lane.b32.xlu0 %v585, 4
      %v739 = vpop.permute.xlu0 %738
      %740 = vrot.lane.b32.xlu0 %v586, 4
      %v741 = vpop.permute.xlu0 %740
      %742 = vrot.lane.b32.xlu0 %v587, 4
      %v743 = vpop.permute.xlu0 %742
      %744 = vrot.lane.b32.xlu0 %v588, 4
      %v745 = vpop.permute.xlu0 %744
      %746 = vrot.lane.b32.xlu0 %v589, 4
      %v747 = vpop.permute.xlu0 %746
      %748 = vrot.lane.b32.xlu0 %v590, 4
      %v749 = vpop.permute.xlu0 %748
      %750 = vrot.lane.b32.xlu0 %v591, 4
      %v751 = vpop.permute.xlu0 %750
      %752 = vrot.lane.b32.xlu0 %v592, 4
      %v753 = vpop.permute.xlu0 %752
      %754 = vrot.lane.b32.xlu0 %v593, 4
      %v755 = vpop.permute.xlu0 %754
      %756 = vrot.lane.b32.xlu0 %v594, 4
      %v757 = vpop.permute.xlu0 %756
      %758 = vrot.lane.b32.xlu0 %v595, 4
      %v759 = vpop.permute.xlu0 %758
      %760 = vrot.lane.b32.xlu0 %v596, 4
      %v761 = vpop.permute.xlu0 %760
      %762 = vrot.lane.b32.xlu0 %v597, 4
      %v763 = vpop.permute.xlu0 %762
      %764 = vrot.lane.b32.xlu0 %v598, 4
      %v765 = vpop.permute.xlu0 %764
      %766 = vrot.lane.b32.xlu0 %v599, 4
      %v767 = vpop.permute.xlu0 %766
      %768 = vrot.lane.b32.xlu0 %v600, 4
      %v769 = vpop.permute.xlu0 %768
      %770 = vrot.lane.b32.xlu0 %v601, 4
      %v771 = vpop.permute.xlu0 %770
      %772 = vrot.lane.b32.xlu0 %v602, 4
      %v773 = vpop.permute.xlu0 %772
      %774 = vrot.lane.b32.xlu0 %v603, 4
      %v775 = vpop.permute.xlu0 %774
      %776 = vrot.lane.b32.xlu0 %v604, 4
      %v777 = vpop.permute.xlu0 %776
      %778 = vrot.lane.b32.xlu0 %v605, 4
      %v779 = vpop.permute.xlu0 %778
      %780 = vrot.lane.b32.xlu0 %v606, 4
      %v781 = vpop.permute.xlu0 %780
      %782 = vrot.lane.b32.xlu0 %v607, 4
      %v783 = vpop.permute.xlu0 %782
      %784 = vrot.lane.b32.xlu0 %v608, 4
      %v785 = vpop.permute.xlu0 %784
      %786 = vrot.lane.b32.xlu0 %v609, 4
      %v787 = vpop.permute.xlu0 %786
      %788 = vrot.lane.b32.xlu0 %v610, 4
      %v789 = vpop.permute.xlu0 %788
      %790 = vrot.lane.b32.xlu0 %v611, 4
      %v791 = vpop.permute.xlu0 %790
      %792 = vrot.lane.b32.xlu0 %v612, 4
      %v793 = vpop.permute.xlu0 %792
      %794 = vrot.lane.b32.xlu0 %v613, 4
      %v795 = vpop.permute.xlu0 %794
      %796 = vrot.lane.b32.xlu0 %v614, 4
      %v797 = vpop.permute.xlu0 %796
      %798 = vrot.lane.b32.xlu0 %v615, 4
      %v799 = vpop.permute.xlu0 %798
      %800 = vrot.lane.b32.xlu0 %v616, 4
      %v801 = vpop.permute.xlu0 %800
      %802 = vrot.lane.b32.xlu0 %v617, 4
      %v803 = vpop.permute.xlu0 %802
      %804 = vrot.lane.b32.xlu0 %v618, 4
      %v805 = vpop.permute.xlu0 %804
      %806 = vrot.lane.b32.xlu0 %v619, 4
      %v807 = vpop.permute.xlu0 %806
      %808 = vrot.lane.b32.xlu0 %v620, 4
      %v809 = vpop.permute.xlu0 %808
      %810 = vrot.lane.b32.xlu0 %v621, 4
      %v811 = vpop.permute.xlu0 %810
      %812 = vrot.lane.b32.xlu0 %v622, 4
      %v813 = vpop.permute.xlu0 %812
      %814 = vrot.lane.b32.xlu0 %v623, 4
      %v815 = vpop.permute.xlu0 %814
      %vm880 = vcmask 64544
      %881 = vst.msk [vmem:[#allocation3] sm:$0xff] %vm880, %v689
      %882 = vst.msk [vmem:[#allocation3 + $0x8] sm:$0xff] %vm880, %v691
      %883 = vst.msk [vmem:[#allocation3 + $0x10] sm:$0xff] %vm880, %v693
      %884 = vst.msk [vmem:[#allocation3 + $0x18] sm:$0xff] %vm880, %v695
      %885 = vst.msk [vmem:[#allocation3 + $0x20] sm:$0xff] %vm880, %v697
      %886 = vst.msk [vmem:[#allocation3 + $0x28] sm:$0xff] %vm880, %v699
      %887 = vst.msk [vmem:[#allocation3 + $0x30] sm:$0xff] %vm880, %v701
      %888 = vst.msk [vmem:[#allocation3 + $0x38] sm:$0xff] %vm880, %v703
      %889 = vst.msk [vmem:[#allocation3 + $0x40] sm:$0xff] %vm880, %v705
      %890 = vst.msk [vmem:[#allocation3 + $0x48] sm:$0xff] %vm880, %v707
      %891 = vst.msk [vmem:[#allocation3 + $0x50] sm:$0xff] %vm880, %v709
      %892 = vst.msk [vmem:[#allocation3 + $0x58] sm:$0xff] %vm880, %v711
      %893 = vst.msk [vmem:[#allocation3 + $0x60] sm:$0xff] %vm880, %v713
      %894 = vst.msk [vmem:[#allocation3 + $0x68] sm:$0xff] %vm880, %v715
      %895 = vst.msk [vmem:[#allocation3 + $0x70] sm:$0xff] %vm880, %v717
      %896 = vst.msk [vmem:[#allocation3 + $0x78] sm:$0xff] %vm880, %v719
      %897 = vst.msk [vmem:[#allocation3 + $0x80] sm:$0xff] %vm880, %v721
      %898 = vst.msk [vmem:[#allocation3 + $0x88] sm:$0xff] %vm880, %v723
      %899 = vst.msk [vmem:[#allocation3 + $0x90] sm:$0xff] %vm880, %v725
      %900 = vst.msk [vmem:[#allocation3 + $0x98] sm:$0xff] %vm880, %v727
      %901 = vst.msk [vmem:[#allocation3 + $0xa0] sm:$0xff] %vm880, %v729
      %902 = vst.msk [vmem:[#allocation3 + $0xa8] sm:$0xff] %vm880, %v731
      %903 = vst.msk [vmem:[#allocation3 + $0xb0] sm:$0xff] %vm880, %v733
      %904 = vst.msk [vmem:[#allocation3 + $0xb8] sm:$0xff] %vm880, %v735
      %905 = vst.msk [vmem:[#allocation3 + $0xc0] sm:$0xff] %vm880, %v737
      %906 = vst.msk [vmem:[#allocation3 + $0xc8] sm:$0xff] %vm880, %v739
      %907 = vst.msk [vmem:[#allocation3 + $0xd0] sm:$0xff] %vm880, %v741
      %908 = vst.msk [vmem:[#allocation3 + $0xd8] sm:$0xff] %vm880, %v743
      %909 = vst.msk [vmem:[#allocation3 + $0xe0] sm:$0xff] %vm880, %v745
      %910 = vst.msk [vmem:[#allocation3 + $0xe8] sm:$0xff] %vm880, %v747
      %911 = vst.msk [vmem:[#allocation3 + $0xf0] sm:$0xff] %vm880, %v749
      %912 = vst.msk [vmem:[#allocation3 + $0xf8] sm:$0xff] %vm880, %v751
      %913 = vst.msk [vmem:[#allocation3 + $0x100] sm:$0xff] %vm880, %v753
      %914 = vst.msk [vmem:[#allocation3 + $0x108] sm:$0xff] %vm880, %v755
      %915 = vst.msk [vmem:[#allocation3 + $0x110] sm:$0xff] %vm880, %v757
      %916 = vst.msk [vmem:[#allocation3 + $0x118] sm:$0xff] %vm880, %v759
      %917 = vst.msk [vmem:[#allocation3 + $0x120] sm:$0xff] %vm880, %v761
      %918 = vst.msk [vmem:[#allocation3 + $0x128] sm:$0xff] %vm880, %v763
      %919 = vst.msk [vmem:[#allocation3 + $0x130] sm:$0xff] %vm880, %v765
      %920 = vst.msk [vmem:[#allocation3 + $0x138] sm:$0xff] %vm880, %v767
      %921 = vst.msk [vmem:[#allocation3 + $0x140] sm:$0xff] %vm880, %v769
      %922 = vst.msk [vmem:[#allocation3 + $0x148] sm:$0xff] %vm880, %v771
      %923 = vst.msk [vmem:[#allocation3 + $0x150] sm:$0xff] %vm880, %v773
      %924 = vst.msk [vmem:[#allocation3 + $0x158] sm:$0xff] %vm880, %v775
      %925 = vst.msk [vmem:[#allocation3 + $0x160] sm:$0xff] %vm880, %v777
      %926 = vst.msk [vmem:[#allocation3 + $0x168] sm:$0xff] %vm880, %v779
      %927 = vst.msk [vmem:[#allocation3 + $0x170] sm:$0xff] %vm880, %v781
      %928 = vst.msk [vmem:[#allocation3 + $0x178] sm:$0xff] %vm880, %v783
      %929 = vst.msk [vmem:[#allocation3 + $0x180] sm:$0xff] %vm880, %v785
      %930 = vst.msk [vmem:[#allocation3 + $0x188] sm:$0xff] %vm880, %v787
      %931 = vst.msk [vmem:[#allocation3 + $0x190] sm:$0xff] %vm880, %v789
      %932 = vst.msk [vmem:[#allocation3 + $0x198] sm:$0xff] %vm880, %v791
      %933 = vst.msk [vmem:[#allocation3 + $0x1a0] sm:$0xff] %vm880, %v793
      %934 = vst.msk [vmem:[#allocation3 + $0x1a8] sm:$0xff] %vm880, %v795
      %935 = vst.msk [vmem:[#allocation3 + $0x1b0] sm:$0xff] %vm880, %v797
      %936 = vst.msk [vmem:[#allocation3 + $0x1b8] sm:$0xff] %vm880, %v799
      %937 = vst.msk [vmem:[#allocation3 + $0x1c0] sm:$0xff] %vm880, %v801
      %938 = vst.msk [vmem:[#allocation3 + $0x1c8] sm:$0xff] %vm880, %v803
      %939 = vst.msk [vmem:[#allocation3 + $0x1d0] sm:$0xff] %vm880, %v805
      %940 = vst.msk [vmem:[#allocation3 + $0x1d8] sm:$0xff] %vm880, %v807
      %941 = vst.msk [vmem:[#allocation3 + $0x1e0] sm:$0xff] %vm880, %v809
      %942 = vst.msk [vmem:[#allocation3 + $0x1e8] sm:$0xff] %vm880, %v811
      %943 = vst.msk [vmem:[#allocation3 + $0x1f0] sm:$0xff] %vm880, %v813
      %944 = vst.msk [vmem:[#allocation3 + $0x1f8] sm:$0xff] %vm880, %v815
      %v945 = vld [vmem:[#allocation2 + $0x2] sm:$0xff]
      %v946 = vld [vmem:[#allocation2 + $0xa] sm:$0xff]
      %v947 = vld [vmem:[#allocation2 + $0x1a] sm:$0xff]
      %v948 = vld [vmem:[#allocation2 + $0x22] sm:$0xff]
      %v949 = vld [vmem:[#allocation2 + $0x32] sm:$0xff]
      %v950 = vld [vmem:[#allocation2 + $0x3a] sm:$0xff]
      %v951 = vld [vmem:[#allocation2 + $0x4a] sm:$0xff]
      %v952 = vld [vmem:[#allocation2 + $0x52] sm:$0xff]
      %v953 = vld [vmem:[#allocation2 + $0x62] sm:$0xff]
      %v954 = vld [vmem:[#allocation2 + $0x6a] sm:$0xff]
      %v955 = vld [vmem:[#allocation2 + $0x7a] sm:$0xff]
      %v956 = vld [vmem:[#allocation2 + $0x82] sm:$0xff]
      %v957 = vld [vmem:[#allocation2 + $0x92] sm:$0xff]
      %v958 = vld [vmem:[#allocation2 + $0x9a] sm:$0xff]
      %v959 = vld [vmem:[#allocation2 + $0xaa] sm:$0xff]
      %v960 = vld [vmem:[#allocation2 + $0xb2] sm:$0xff]
      %v961 = vld [vmem:[#allocation2 + $0xc2] sm:$0xff]
      %v962 = vld [vmem:[#allocation2 + $0xca] sm:$0xff]
      %v963 = vld [vmem:[#allocation2 + $0xda] sm:$0xff]
      %v964 = vld [vmem:[#allocation2 + $0xe2] sm:$0xff]
      %v965 = vld [vmem:[#allocation2 + $0xf2] sm:$0xff]
      %v966 = vld [vmem:[#allocation2 + $0xfa] sm:$0xff]
      %v967 = vld [vmem:[#allocation2 + $0x10a] sm:$0xff]
      %v968 = vld [vmem:[#allocation2 + $0x112] sm:$0xff]
      %v969 = vld [vmem:[#allocation2 + $0x122] sm:$0xff]
      %v970 = vld [vmem:[#allocation2 + $0x12a] sm:$0xff]
      %v971 = vld [vmem:[#allocation2 + $0x13a] sm:$0xff]
      %v972 = vld [vmem:[#allocation2 + $0x142] sm:$0xff]
      %v973 = vld [vmem:[#allocation2 + $0x152] sm:$0xff]
      %v974 = vld [vmem:[#allocation2 + $0x15a] sm:$0xff]
      %v975 = vld [vmem:[#allocation2 + $0x16a] sm:$0xff]
      %v976 = vld [vmem:[#allocation2 + $0x172] sm:$0xff]
      %v977 = vld [vmem:[#allocation2 + $0x1b2] sm:$0xff]
      %v978 = vld [vmem:[#allocation2 + $0x1ba] sm:$0xff]
      %v979 = vld [vmem:[#allocation2 + $0x1ca] sm:$0xff]
      %v980 = vld [vmem:[#allocation2 + $0x1d2] sm:$0xff]
      %v981 = vld [vmem:[#allocation2 + $0x1e2] sm:$0xff]
      %v982 = vld [vmem:[#allocation2 + $0x1ea] sm:$0xff]
      %v983 = vld [vmem:[#allocation2 + $0x1fa] sm:$0xff]
      %v984 = vld [vmem:[#allocation2 + $0x202] sm:$0xff]
      %v985 = vld [vmem:[#allocation2 + $0x212] sm:$0xff]
      %v986 = vld [vmem:[#allocation2 + $0x21a] sm:$0xff]
      %v987 = vld [vmem:[#allocation2 + $0x22a] sm:$0xff]
      %v988 = vld [vmem:[#allocation2 + $0x232] sm:$0xff]
      %v989 = vld [vmem:[#allocation2 + $0x242] sm:$0xff]
      %v990 = vld [vmem:[#allocation2 + $0x24a] sm:$0xff]
      %v991 = vld [vmem:[#allocation2 + $0x25a] sm:$0xff]
      %v992 = vld [vmem:[#allocation2 + $0x262] sm:$0xff]
      %v993 = vld [vmem:[#allocation2 + $0x272] sm:$0xff]
      %v994 = vld [vmem:[#allocation2 + $0x27a] sm:$0xff]
      %v995 = vld [vmem:[#allocation2 + $0x28a] sm:$0xff]
      %v996 = vld [vmem:[#allocation2 + $0x292] sm:$0xff]
      %v997 = vld [vmem:[#allocation2 + $0x2a2] sm:$0xff]
      %v998 = vld [vmem:[#allocation2 + $0x2aa] sm:$0xff]
      %v999 = vld [vmem:[#allocation2 + $0x2ba] sm:$0xff]
      %v1000 = vld [vmem:[#allocation2 + $0x2c2] sm:$0xff]
      %v1001 = vld [vmem:[#allocation2 + $0x2d2] sm:$0xff]
      %v1002 = vld [vmem:[#allocation2 + $0x2da] sm:$0xff]
      %v1003 = vld [vmem:[#allocation2 + $0x2ea] sm:$0xff]
      %v1004 = vld [vmem:[#allocation2 + $0x2f2] sm:$0xff]
      %v1005 = vld [vmem:[#allocation2 + $0x302] sm:$0xff]
      %v1006 = vld [vmem:[#allocation2 + $0x30a] sm:$0xff]
      %v1007 = vld [vmem:[#allocation2 + $0x31a] sm:$0xff]
      %v1008 = vld [vmem:[#allocation2 + $0x322] sm:$0xff]
      %1073 = vrot.lane.b32.xlu0 %v945, 8
      %v1074 = vpop.permute.xlu0 %1073
      %1075 = vrot.lane.b32.xlu0 %v946, 8
      %v1076 = vpop.permute.xlu0 %1075
      %1077 = vrot.lane.b32.xlu0 %v947, 8
      %v1078 = vpop.permute.xlu0 %1077
      %1079 = vrot.lane.b32.xlu0 %v948, 8
      %v1080 = vpop.permute.xlu0 %1079
      %1081 = vrot.lane.b32.xlu0 %v949, 8
      %v1082 = vpop.permute.xlu0 %1081
      %1083 = vrot.lane.b32.xlu0 %v950, 8
      %v1084 = vpop.permute.xlu0 %1083
      %1085 = vrot.lane.b32.xlu0 %v951, 8
      %v1086 = vpop.permute.xlu0 %1085
      %1087 = vrot.lane.b32.xlu0 %v952, 8
      %v1088 = vpop.permute.xlu0 %1087
      %1089 = vrot.lane.b32.xlu0 %v953, 8
      %v1090 = vpop.permute.xlu0 %1089
      %1091 = vrot.lane.b32.xlu0 %v954, 8
      %v1092 = vpop.permute.xlu0 %1091
      %1093 = vrot.lane.b32.xlu0 %v955, 8
      %v1094 = vpop.permute.xlu0 %1093
      %1095 = vrot.lane.b32.xlu0 %v956, 8
      %v1096 = vpop.permute.xlu0 %1095
      %1097 = vrot.lane.b32.xlu0 %v957, 8
      %v1098 = vpop.permute.xlu0 %1097
      %1099 = vrot.lane.b32.xlu0 %v958, 8
      %v1100 = vpop.permute.xlu0 %1099
      %1101 = vrot.lane.b32.xlu0 %v959, 8
      %v1102 = vpop.permute.xlu0 %1101
      %1103 = vrot.lane.b32.xlu0 %v960, 8
      %v1104 = vpop.permute.xlu0 %1103
      %1105 = vrot.lane.b32.xlu0 %v961, 8
      %v1106 = vpop.permute.xlu0 %1105
      %1107 = vrot.lane.b32.xlu0 %v962, 8
      %v1108 = vpop.permute.xlu0 %1107
      %1109 = vrot.lane.b32.xlu0 %v963, 8
      %v1110 = vpop.permute.xlu0 %1109
      %1111 = vrot.lane.b32.xlu0 %v964, 8
      %v1112 = vpop.permute.xlu0 %1111
      %1113 = vrot.lane.b32.xlu0 %v965, 8
      %v1114 = vpop.permute.xlu0 %1113
      %1115 = vrot.lane.b32.xlu0 %v966, 8
      %v1116 = vpop.permute.xlu0 %1115
      %1117 = vrot.lane.b32.xlu0 %v967, 8
      %v1118 = vpop.permute.xlu0 %1117
      %1119 = vrot.lane.b32.xlu0 %v968, 8
      %v1120 = vpop.permute.xlu0 %1119
      %1121 = vrot.lane.b32.xlu0 %v969, 8
      %v1122 = vpop.permute.xlu0 %1121
      %1123 = vrot.lane.b32.xlu0 %v970, 8
      %v1124 = vpop.permute.xlu0 %1123
      %1125 = vrot.lane.b32.xlu0 %v971, 8
      %v1126 = vpop.permute.xlu0 %1125
      %1127 = vrot.lane.b32.xlu0 %v972, 8
      %v1128 = vpop.permute.xlu0 %1127
      %1129 = vrot.lane.b32.xlu0 %v973, 8
      %v1130 = vpop.permute.xlu0 %1129
      %1131 = vrot.lane.b32.xlu0 %v974, 8
      %v1132 = vpop.permute.xlu0 %1131
      %1133 = vrot.lane.b32.xlu0 %v975, 8
      %v1134 = vpop.permute.xlu0 %1133
      %1135 = vrot.lane.b32.xlu0 %v976, 8
      %v1136 = vpop.permute.xlu0 %1135
      %1137 = vrot.lane.b32.xlu0 %v977, 8
      %v1138 = vpop.permute.xlu0 %1137
      %1139 = vrot.lane.b32.xlu0 %v978, 8
      %v1140 = vpop.permute.xlu0 %1139
      %1141 = vrot.lane.b32.xlu0 %v979, 8
      %v1142 = vpop.permute.xlu0 %1141
      %1143 = vrot.lane.b32.xlu0 %v980, 8
      %v1144 = vpop.permute.xlu0 %1143
      %1145 = vrot.lane.b32.xlu0 %v981, 8
      %v1146 = vpop.permute.xlu0 %1145
      %1147 = vrot.lane.b32.xlu0 %v982, 8
      %v1148 = vpop.permute.xlu0 %1147
      %1149 = vrot.lane.b32.xlu0 %v983, 8
      %v1150 = vpop.permute.xlu0 %1149
      %1151 = vrot.lane.b32.xlu0 %v984, 8
      %v1152 = vpop.permute.xlu0 %1151
      %1153 = vrot.lane.b32.xlu0 %v985, 8
      %v1154 = vpop.permute.xlu0 %1153
      %1155 = vrot.lane.b32.xlu0 %v986, 8
      %v1156 = vpop.permute.xlu0 %1155
      %1157 = vrot.lane.b32.xlu0 %v987, 8
      %v1158 = vpop.permute.xlu0 %1157
      %1159 = vrot.lane.b32.xlu0 %v988, 8
      %v1160 = vpop.permute.xlu0 %1159
      %1161 = vrot.lane.b32.xlu0 %v989, 8
      %v1162 = vpop.permute.xlu0 %1161
      %1163 = vrot.lane.b32.xlu0 %v990, 8
      %v1164 = vpop.permute.xlu0 %1163
      %1165 = vrot.lane.b32.xlu0 %v991, 8
      %v1166 = vpop.permute.xlu0 %1165
      %1167 = vrot.lane.b32.xlu0 %v992, 8
      %v1168 = vpop.permute.xlu0 %1167
      %1169 = vrot.lane.b32.xlu0 %v993, 8
      %v1170 = vpop.permute.xlu0 %1169
      %1171 = vrot.lane.b32.xlu0 %v994, 8
      %v1172 = vpop.permute.xlu0 %1171
      %1173 = vrot.lane.b32.xlu0 %v995, 8
      %v1174 = vpop.permute.xlu0 %1173
      %1175 = vrot.lane.b32.xlu0 %v996, 8
      %v1176 = vpop.permute.xlu0 %1175
      %1177 = vrot.lane.b32.xlu0 %v997, 8
      %v1178 = vpop.permute.xlu0 %1177
      %1179 = vrot.lane.b32.xlu0 %v998, 8
      %v1180 = vpop.permute.xlu0 %1179
      %1181 = vrot.lane.b32.xlu0 %v999, 8
      %v1182 = vpop.permute.xlu0 %1181
      %1183 = vrot.lane.b32.xlu0 %v1000, 8
      %v1184 = vpop.permute.xlu0 %1183
      %1185 = vrot.lane.b32.xlu0 %v1001, 8
      %v1186 = vpop.permute.xlu0 %1185
      %1187 = vrot.lane.b32.xlu0 %v1002, 8
      %v1188 = vpop.permute.xlu0 %1187
      %1189 = vrot.lane.b32.xlu0 %v1003, 8
      %v1190 = vpop.permute.xlu0 %1189
      %1191 = vrot.lane.b32.xlu0 %v1004, 8
      %v1192 = vpop.permute.xlu0 %1191
      %1193 = vrot.lane.b32.xlu0 %v1005, 8
      %v1194 = vpop.permute.xlu0 %1193
      %1195 = vrot.lane.b32.xlu0 %v1006, 8
      %v1196 = vpop.permute.xlu0 %1195
      %1197 = vrot.lane.b32.xlu0 %v1007, 8
      %v1198 = vpop.permute.xlu0 %1197
      %1199 = vrot.lane.b32.xlu0 %v1008, 8
      %v1200 = vpop.permute.xlu0 %1199
      %vm1265 = vcmask 97344
      %1266 = vst.msk [vmem:[#allocation3] sm:$0xff] %vm1265, %v1074
      %1267 = vst.msk [vmem:[#allocation3 + $0x8] sm:$0xff] %vm1265, %v1076
      %1268 = vst.msk [vmem:[#allocation3 + $0x10] sm:$0xff] %vm1265, %v1078
      %1269 = vst.msk [vmem:[#allocation3 + $0x18] sm:$0xff] %vm1265, %v1080
      %1270 = vst.msk [vmem:[#allocation3 + $0x20] sm:$0xff] %vm1265, %v1082
      %1271 = vst.msk [vmem:[#allocation3 + $0x28] sm:$0xff] %vm1265, %v1084
      %1272 = vst.msk [vmem:[#allocation3 + $0x30] sm:$0xff] %vm1265, %v1086
      %1273 = vst.msk [vmem:[#allocation3 + $0x38] sm:$0xff] %vm1265, %v1088
      %1274 = vst.msk [vmem:[#allocation3 + $0x40] sm:$0xff] %vm1265, %v1090
      %1275 = vst.msk [vmem:[#allocation3 + $0x48] sm:$0xff] %vm1265, %v1092
      %1276 = vst.msk [vmem:[#allocation3 + $0x50] sm:$0xff] %vm1265, %v1094
      %1277 = vst.msk [vmem:[#allocation3 + $0x58] sm:$0xff] %vm1265, %v1096
      %1278 = vst.msk [vmem:[#allocation3 + $0x60] sm:$0xff] %vm1265, %v1098
      %1279 = vst.msk [vmem:[#allocation3 + $0x68] sm:$0xff] %vm1265, %v1100
      %1280 = vst.msk [vmem:[#allocation3 + $0x70] sm:$0xff] %vm1265, %v1102
      %1281 = vst.msk [vmem:[#allocation3 + $0x78] sm:$0xff] %vm1265, %v1104
      %1282 = vst.msk [vmem:[#allocation3 + $0x80] sm:$0xff] %vm1265, %v1106
      %1283 = vst.msk [vmem:[#allocation3 + $0x88] sm:$0xff] %vm1265, %v1108
      %1284 = vst.msk [vmem:[#allocation3 + $0x90] sm:$0xff] %vm1265, %v1110
      %1285 = vst.msk [vmem:[#allocation3 + $0x98] sm:$0xff] %vm1265, %v1112
      %1286 = vst.msk [vmem:[#allocation3 + $0xa0] sm:$0xff] %vm1265, %v1114
      %1287 = vst.msk [vmem:[#allocation3 + $0xa8] sm:$0xff] %vm1265, %v1116
      %1288 = vst.msk [vmem:[#allocation3 + $0xb0] sm:$0xff] %vm1265, %v1118
      %1289 = vst.msk [vmem:[#allocation3 + $0xb8] sm:$0xff] %vm1265, %v1120
      %1290 = vst.msk [vmem:[#allocation3 + $0xc0] sm:$0xff] %vm1265, %v1122
      %1291 = vst.msk [vmem:[#allocation3 + $0xc8] sm:$0xff] %vm1265, %v1124
      %1292 = vst.msk [vmem:[#allocation3 + $0xd0] sm:$0xff] %vm1265, %v1126
      %1293 = vst.msk [vmem:[#allocation3 + $0xd8] sm:$0xff] %vm1265, %v1128
      %1294 = vst.msk [vmem:[#allocation3 + $0xe0] sm:$0xff] %vm1265, %v1130
      %1295 = vst.msk [vmem:[#allocation3 + $0xe8] sm:$0xff] %vm1265, %v1132
      %1296 = vst.msk [vmem:[#allocation3 + $0xf0] sm:$0xff] %vm1265, %v1134
      %1297 = vst.msk [vmem:[#allocation3 + $0xf8] sm:$0xff] %vm1265, %v1136
      %1298 = vst.msk [vmem:[#allocation3 + $0x100] sm:$0xff] %vm1265, %v1138
      %1299 = vst.msk [vmem:[#allocation3 + $0x108] sm:$0xff] %vm1265, %v1140
      %1300 = vst.msk [vmem:[#allocation3 + $0x110] sm:$0xff] %vm1265, %v1142
      %1301 = vst.msk [vmem:[#allocation3 + $0x118] sm:$0xff] %vm1265, %v1144
      %1302 = vst.msk [vmem:[#allocation3 + $0x120] sm:$0xff] %vm1265, %v1146
      %1303 = vst.msk [vmem:[#allocation3 + $0x128] sm:$0xff] %vm1265, %v1148
      %1304 = vst.msk [vmem:[#allocation3 + $0x130] sm:$0xff] %vm1265, %v1150
      %1305 = vst.msk [vmem:[#allocation3 + $0x138] sm:$0xff] %vm1265, %v1152
      %1306 = vst.msk [vmem:[#allocation3 + $0x140] sm:$0xff] %vm1265, %v1154
      %1307 = vst.msk [vmem:[#allocation3 + $0x148] sm:$0xff] %vm1265, %v1156
      %1308 = vst.msk [vmem:[#allocation3 + $0x150] sm:$0xff] %vm1265, %v1158
      %1309 = vst.msk [vmem:[#allocation3 + $0x158] sm:$0xff] %vm1265, %v1160
      %1310 = vst.msk [vmem:[#allocation3 + $0x160] sm:$0xff] %vm1265, %v1162
      %1311 = vst.msk [vmem:[#allocation3 + $0x168] sm:$0xff] %vm1265, %v1164
      %1312 = vst.msk [vmem:[#allocation3 + $0x170] sm:$0xff] %vm1265, %v1166
      %1313 = vst.msk [vmem:[#allocation3 + $0x178] sm:$0xff] %vm1265, %v1168
      %1314 = vst.msk [vmem:[#allocation3 + $0x180] sm:$0xff] %vm1265, %v1170
      %1315 = vst.msk [vmem:[#allocation3 + $0x188] sm:$0xff] %vm1265, %v1172
      %1316 = vst.msk [vmem:[#allocation3 + $0x190] sm:$0xff] %vm1265, %v1174
      %1317 = vst.msk [vmem:[#allocation3 + $0x198] sm:$0xff] %vm1265, %v1176
      %1318 = vst.msk [vmem:[#allocation3 + $0x1a0] sm:$0xff] %vm1265, %v1178
      %1319 = vst.msk [vmem:[#allocation3 + $0x1a8] sm:$0xff] %vm1265, %v1180
      %1320 = vst.msk [vmem:[#allocation3 + $0x1b0] sm:$0xff] %vm1265, %v1182
      %1321 = vst.msk [vmem:[#allocation3 + $0x1b8] sm:$0xff] %vm1265, %v1184
      %1322 = vst.msk [vmem:[#allocation3 + $0x1c0] sm:$0xff] %vm1265, %v1186
      %1323 = vst.msk [vmem:[#allocation3 + $0x1c8] sm:$0xff] %vm1265, %v1188
      %1324 = vst.msk [vmem:[#allocation3 + $0x1d0] sm:$0xff] %vm1265, %v1190
      %1325 = vst.msk [vmem:[#allocation3 + $0x1d8] sm:$0xff] %vm1265, %v1192
      %1326 = vst.msk [vmem:[#allocation3 + $0x1e0] sm:$0xff] %vm1265, %v1194
      %1327 = vst.msk [vmem:[#allocation3 + $0x1e8] sm:$0xff] %vm1265, %v1196
      %1328 = vst.msk [vmem:[#allocation3 + $0x1f0] sm:$0xff] %vm1265, %v1198
      %1329 = vst.msk [vmem:[#allocation3 + $0x1f8] sm:$0xff] %vm1265, %v1200
      %v1330 = vld [vmem:[%s367] sm:$0xff]
      %v1331 = vld [vmem:[%s367 + $0x8] sm:$0xff]
      %v1332 = vld [vmem:[%s367 + $0x18] sm:$0xff]
      %v1333 = vld [vmem:[%s367 + $0x20] sm:$0xff]
      %v1334 = vld [vmem:[%s367 + $0x30] sm:$0xff]
      %v1335 = vld [vmem:[%s367 + $0x38] sm:$0xff]
      %v1336 = vld [vmem:[%s367 + $0x48] sm:$0xff]
      %v1337 = vld [vmem:[%s367 + $0x50] sm:$0xff]
      %v1338 = vld [vmem:[%s367 + $0x60] sm:$0xff]
      %v1339 = vld [vmem:[%s367 + $0x68] sm:$0xff]
      %v1340 = vld [vmem:[%s367 + $0x78] sm:$0xff]
      %v1341 = vld [vmem:[%s367 + $0x80] sm:$0xff]
      %v1342 = vld [vmem:[%s367 + $0x90] sm:$0xff]
      %v1343 = vld [vmem:[%s367 + $0x98] sm:$0xff]
      %v1344 = vld [vmem:[%s367 + $0xa8] sm:$0xff]
      %v1345 = vld [vmem:[%s367 + $0xb0] sm:$0xff]
      %v1346 = vld [vmem:[%s367 + $0xc0] sm:$0xff]
      %v1347 = vld [vmem:[%s367 + $0xc8] sm:$0xff]
      %v1348 = vld [vmem:[%s367 + $0xd8] sm:$0xff]
      %v1349 = vld [vmem:[%s367 + $0xe0] sm:$0xff]
      %v1350 = vld [vmem:[%s367 + $0xf0] sm:$0xff]
      %v1351 = vld [vmem:[%s367 + $0xf8] sm:$0xff]
      %v1352 = vld [vmem:[%s367 + $0x108] sm:$0xff]
      %v1353 = vld [vmem:[%s367 + $0x110] sm:$0xff]
      %v1354 = vld [vmem:[%s367 + $0x120] sm:$0xff]
      %v1355 = vld [vmem:[%s367 + $0x128] sm:$0xff]
      %v1356 = vld [vmem:[%s367 + $0x138] sm:$0xff]
      %v1357 = vld [vmem:[%s367 + $0x140] sm:$0xff]
      %v1358 = vld [vmem:[%s367 + $0x150] sm:$0xff]
      %v1359 = vld [vmem:[%s367 + $0x158] sm:$0xff]
      %v1360 = vld [vmem:[%s367 + $0x168] sm:$0xff]
      %v1361 = vld [vmem:[%s367 + $0x170] sm:$0xff]
      %v1362 = vld [vmem:[%s367 + $0x1b0] sm:$0xff]
      %v1363 = vld [vmem:[%s367 + $0x1b8] sm:$0xff]
      %v1364 = vld [vmem:[%s367 + $0x1c8] sm:$0xff]
      %v1365 = vld [vmem:[%s367 + $0x1d0] sm:$0xff]
      %v1366 = vld [vmem:[%s367 + $0x1e0] sm:$0xff]
      %v1367 = vld [vmem:[%s367 + $0x1e8] sm:$0xff]
      %v1368 = vld [vmem:[%s367 + $0x1f8] sm:$0xff]
      %v1369 = vld [vmem:[%s367 + $0x200] sm:$0xff]
      %v1370 = vld [vmem:[%s367 + $0x210] sm:$0xff]
      %v1371 = vld [vmem:[%s367 + $0x218] sm:$0xff]
      %v1372 = vld [vmem:[%s367 + $0x228] sm:$0xff]
      %v1373 = vld [vmem:[%s367 + $0x230] sm:$0xff]
      %v1374 = vld [vmem:[%s367 + $0x240] sm:$0xff]
      %v1375 = vld [vmem:[%s367 + $0x248] sm:$0xff]
      %v1376 = vld [vmem:[%s367 + $0x258] sm:$0xff]
      %v1377 = vld [vmem:[%s367 + $0x260] sm:$0xff]
      %v1378 = vld [vmem:[%s367 + $0x270] sm:$0xff]
      %v1379 = vld [vmem:[%s367 + $0x278] sm:$0xff]
      %v1380 = vld [vmem:[%s367 + $0x288] sm:$0xff]
      %v1381 = vld [vmem:[%s367 + $0x290] sm:$0xff]
      %v1382 = vld [vmem:[%s367 + $0x2a0] sm:$0xff]
      %v1383 = vld [vmem:[%s367 + $0x2a8] sm:$0xff]
      %v1384 = vld [vmem:[%s367 + $0x2b8] sm:$0xff]
      %v1385 = vld [vmem:[%s367 + $0x2c0] sm:$0xff]
      %v1386 = vld [vmem:[%s367 + $0x2d0] sm:$0xff]
      %v1387 = vld [vmem:[%s367 + $0x2d8] sm:$0xff]
      %v1388 = vld [vmem:[%s367 + $0x2e8] sm:$0xff]
      %v1389 = vld [vmem:[%s367 + $0x2f0] sm:$0xff]
      %v1390 = vld [vmem:[%s367 + $0x300] sm:$0xff]
      %v1391 = vld [vmem:[%s367 + $0x308] sm:$0xff]
      %v1392 = vld [vmem:[%s367 + $0x318] sm:$0xff]
      %v1393 = vld [vmem:[%s367 + $0x320] sm:$0xff]
      %1458 = vrot.lane.b32.xlu0 %v1330, 12
      %v1459 = vpop.permute.xlu0 %1458
      %1460 = vrot.lane.b32.xlu0 %v1331, 12
      %v1461 = vpop.permute.xlu0 %1460
      %1462 = vrot.lane.b32.xlu0 %v1332, 12
      %v1463 = vpop.permute.xlu0 %1462
      %1464 = vrot.lane.b32.xlu0 %v1333, 12
      %v1465 = vpop.permute.xlu0 %1464
      %1466 = vrot.lane.b32.xlu0 %v1334, 12
      %v1467 = vpop.permute.xlu0 %1466
      %1468 = vrot.lane.b32.xlu0 %v1335, 12
      %v1469 = vpop.permute.xlu0 %1468
      %1470 = vrot.lane.b32.xlu0 %v1336, 12
      %v1471 = vpop.permute.xlu0 %1470
      %1472 = vrot.lane.b32.xlu0 %v1337, 12
      %v1473 = vpop.permute.xlu0 %1472
      %1474 = vrot.lane.b32.xlu0 %v1338, 12
      %v1475 = vpop.permute.xlu0 %1474
      %1476 = vrot.lane.b32.xlu0 %v1339, 12
      %v1477 = vpop.permute.xlu0 %1476
      %1478 = vrot.lane.b32.xlu0 %v1340, 12
      %v1479 = vpop.permute.xlu0 %1478
      %1480 = vrot.lane.b32.xlu0 %v1341, 12
      %v1481 = vpop.permute.xlu0 %1480
      %1482 = vrot.lane.b32.xlu0 %v1342, 12
      %v1483 = vpop.permute.xlu0 %1482
      %1484 = vrot.lane.b32.xlu0 %v1343, 12
      %v1485 = vpop.permute.xlu0 %1484
      %1486 = vrot.lane.b32.xlu0 %v1344, 12
      %v1487 = vpop.permute.xlu0 %1486
      %1488 = vrot.lane.b32.xlu0 %v1345, 12
      %v1489 = vpop.permute.xlu0 %1488
      %1490 = vrot.lane.b32.xlu0 %v1346, 12
      %v1491 = vpop.permute.xlu0 %1490
      %1492 = vrot.lane.b32.xlu0 %v1347, 12
      %v1493 = vpop.permute.xlu0 %1492
      %1494 = vrot.lane.b32.xlu0 %v1348, 12
      %v1495 = vpop.permute.xlu0 %1494
      %1496 = vrot.lane.b32.xlu0 %v1349, 12
      %v1497 = vpop.permute.xlu0 %1496
      %1498 = vrot.lane.b32.xlu0 %v1350, 12
      %v1499 = vpop.permute.xlu0 %1498
      %1500 = vrot.lane.b32.xlu0 %v1351, 12
      %v1501 = vpop.permute.xlu0 %1500
      %1502 = vrot.lane.b32.xlu0 %v1352, 12
      %v1503 = vpop.permute.xlu0 %1502
      %1504 = vrot.lane.b32.xlu0 %v1353, 12
      %v1505 = vpop.permute.xlu0 %1504
      %1506 = vrot.lane.b32.xlu0 %v1354, 12
      %v1507 = vpop.permute.xlu0 %1506
      %1508 = vrot.lane.b32.xlu0 %v1355, 12
      %v1509 = vpop.permute.xlu0 %1508
      %1510 = vrot.lane.b32.xlu0 %v1356, 12
      %v1511 = vpop.permute.xlu0 %1510
      %1512 = vrot.lane.b32.xlu0 %v1357, 12
      %v1513 = vpop.permute.xlu0 %1512
      %1514 = vrot.lane.b32.xlu0 %v1358, 12
      %v1515 = vpop.permute.xlu0 %1514
      %1516 = vrot.lane.b32.xlu0 %v1359, 12
      %v1517 = vpop.permute.xlu0 %1516
      %1518 = vrot.lane.b32.xlu0 %v1360, 12
      %v1519 = vpop.permute.xlu0 %1518
      %1520 = vrot.lane.b32.xlu0 %v1361, 12
      %v1521 = vpop.permute.xlu0 %1520
      %1522 = vrot.lane.b32.xlu0 %v1362, 12
      %v1523 = vpop.permute.xlu0 %1522
      %1524 = vrot.lane.b32.xlu0 %v1363, 12
      %v1525 = vpop.permute.xlu0 %1524
      %1526 = vrot.lane.b32.xlu0 %v1364, 12
      %v1527 = vpop.permute.xlu0 %1526
      %1528 = vrot.lane.b32.xlu0 %v1365, 12
      %v1529 = vpop.permute.xlu0 %1528
      %1530 = vrot.lane.b32.xlu0 %v1366, 12
      %v1531 = vpop.permute.xlu0 %1530
      %1532 = vrot.lane.b32.xlu0 %v1367, 12
      %v1533 = vpop.permute.xlu0 %1532
      %1534 = vrot.lane.b32.xlu0 %v1368, 12
      %v1535 = vpop.permute.xlu0 %1534
      %1536 = vrot.lane.b32.xlu0 %v1369, 12
      %v1537 = vpop.permute.xlu0 %1536
      %1538 = vrot.lane.b32.xlu0 %v1370, 12
      %v1539 = vpop.permute.xlu0 %1538
      %1540 = vrot.lane.b32.xlu0 %v1371, 12
      %v1541 = vpop.permute.xlu0 %1540
      %1542 = vrot.lane.b32.xlu0 %v1372, 12
      %v1543 = vpop.permute.xlu0 %1542
      %1544 = vrot.lane.b32.xlu0 %v1373, 12
      %v1545 = vpop.permute.xlu0 %1544
      %1546 = vrot.lane.b32.xlu0 %v1374, 12
      %v1547 = vpop.permute.xlu0 %1546
      %1548 = vrot.lane.b32.xlu0 %v1375, 12
      %v1549 = vpop.permute.xlu0 %1548
      %1550 = vrot.lane.b32.xlu0 %v1376, 12
      %v1551 = vpop.permute.xlu0 %1550
      %1552 = vrot.lane.b32.xlu0 %v1377, 12
      %v1553 = vpop.permute.xlu0 %1552
      %1554 = vrot.lane.b32.xlu0 %v1378, 12
      %v1555 = vpop.permute.xlu0 %1554
      %1556 = vrot.lane.b32.xlu0 %v1379, 12
      %v1557 = vpop.permute.xlu0 %1556
      %1558 = vrot.lane.b32.xlu0 %v1380, 12
      %v1559 = vpop.permute.xlu0 %1558
      %1560 = vrot.lane.b32.xlu0 %v1381, 12
      %v1561 = vpop.permute.xlu0 %1560
      %1562 = vrot.lane.b32.xlu0 %v1382, 12
      %v1563 = vpop.permute.xlu0 %1562
      %1564 = vrot.lane.b32.xlu0 %v1383, 12
      %v1565 = vpop.permute.xlu0 %1564
      %1566 = vrot.lane.b32.xlu0 %v1384, 12
      %v1567 = vpop.permute.xlu0 %1566
      %1568 = vrot.lane.b32.xlu0 %v1385, 12
      %v1569 = vpop.permute.xlu0 %1568
      %1570 = vrot.lane.b32.xlu0 %v1386, 12
      %v1571 = vpop.permute.xlu0 %1570
      %1572 = vrot.lane.b32.xlu0 %v1387, 12
      %v1573 = vpop.permute.xlu0 %1572
      %1574 = vrot.lane.b32.xlu0 %v1388, 12
      %v1575 = vpop.permute.xlu0 %1574
      %1576 = vrot.lane.b32.xlu0 %v1389, 12
      %v1577 = vpop.permute.xlu0 %1576
      %1578 = vrot.lane.b32.xlu0 %v1390, 12
      %v1579 = vpop.permute.xlu0 %1578
      %1580 = vrot.lane.b32.xlu0 %v1391, 12
      %v1581 = vpop.permute.xlu0 %1580
      %1582 = vrot.lane.b32.xlu0 %v1392, 12
      %v1583 = vpop.permute.xlu0 %1582
      %1584 = vrot.lane.b32.xlu0 %v1393, 12
      %v1585 = vpop.permute.xlu0 %1584
      %vm1650 = vcmask 130144
      %1651 = vst.msk [vmem:[#allocation3] sm:$0xff] %vm1650, %v1459
      %1652 = vst.msk [vmem:[#allocation3 + $0x8] sm:$0xff] %vm1650, %v1461
      %1653 = vst.msk [vmem:[#allocation3 + $0x10] sm:$0xff] %vm1650, %v1463
      %1654 = vst.msk [vmem:[#allocation3 + $0x18] sm:$0xff] %vm1650, %v1465
      %1655 = vst.msk [vmem:[#allocation3 + $0x20] sm:$0xff] %vm1650, %v1467
      %1656 = vst.msk [vmem:[#allocation3 + $0x28] sm:$0xff] %vm1650, %v1469
      %1657 = vst.msk [vmem:[#allocation3 + $0x30] sm:$0xff] %vm1650, %v1471
      %1658 = vst.msk [vmem:[#allocation3 + $0x38] sm:$0xff] %vm1650, %v1473
      %1659 = vst.msk [vmem:[#allocation3 + $0x40] sm:$0xff] %vm1650, %v1475
      %1660 = vst.msk [vmem:[#allocation3 + $0x48] sm:$0xff] %vm1650, %v1477
      %1661 = vst.msk [vmem:[#allocation3 + $0x50] sm:$0xff] %vm1650, %v1479
      %1662 = vst.msk [vmem:[#allocation3 + $0x58] sm:$0xff] %vm1650, %v1481
      %1663 = vst.msk [vmem:[#allocation3 + $0x60] sm:$0xff] %vm1650, %v1483
      %1664 = vst.msk [vmem:[#allocation3 + $0x68] sm:$0xff] %vm1650, %v1485
      %1665 = vst.msk [vmem:[#allocation3 + $0x70] sm:$0xff] %vm1650, %v1487
      %1666 = vst.msk [vmem:[#allocation3 + $0x78] sm:$0xff] %vm1650, %v1489
      %1667 = vst.msk [vmem:[#allocation3 + $0x80] sm:$0xff] %vm1650, %v1491
      %1668 = vst.msk [vmem:[#allocation3 + $0x88] sm:$0xff] %vm1650, %v1493
      %1669 = vst.msk [vmem:[#allocation3 + $0x90] sm:$0xff] %vm1650, %v1495
      %1670 = vst.msk [vmem:[#allocation3 + $0x98] sm:$0xff] %vm1650, %v1497
      %1671 = vst.msk [vmem:[#allocation3 + $0xa0] sm:$0xff] %vm1650, %v1499
      %1672 = vst.msk [vmem:[#allocation3 + $0xa8] sm:$0xff] %vm1650, %v1501
      %1673 = vst.msk [vmem:[#allocation3 + $0xb0] sm:$0xff] %vm1650, %v1503
      %1674 = vst.msk [vmem:[#allocation3 + $0xb8] sm:$0xff] %vm1650, %v1505
      %1675 = vst.msk [vmem:[#allocation3 + $0xc0] sm:$0xff] %vm1650, %v1507
      %1676 = vst.msk [vmem:[#allocation3 + $0xc8] sm:$0xff] %vm1650, %v1509
      %1677 = vst.msk [vmem:[#allocation3 + $0xd0] sm:$0xff] %vm1650, %v1511
      %1678 = vst.msk [vmem:[#allocation3 + $0xd8] sm:$0xff] %vm1650, %v1513
      %1679 = vst.msk [vmem:[#allocation3 + $0xe0] sm:$0xff] %vm1650, %v1515
      %1680 = vst.msk [vmem:[#allocation3 + $0xe8] sm:$0xff] %vm1650, %v1517
      %1681 = vst.msk [vmem:[#allocation3 + $0xf0] sm:$0xff] %vm1650, %v1519
      %1682 = vst.msk [vmem:[#allocation3 + $0xf8] sm:$0xff] %vm1650, %v1521
      %1683 = vst.msk [vmem:[#allocation3 + $0x100] sm:$0xff] %vm1650, %v1523
      %1684 = vst.msk [vmem:[#allocation3 + $0x108] sm:$0xff] %vm1650, %v1525
      %1685 = vst.msk [vmem:[#allocation3 + $0x110] sm:$0xff] %vm1650, %v1527
      %1686 = vst.msk [vmem:[#allocation3 + $0x118] sm:$0xff] %vm1650, %v1529
      %1687 = vst.msk [vmem:[#allocation3 + $0x120] sm:$0xff] %vm1650, %v1531
      %1688 = vst.msk [vmem:[#allocation3 + $0x128] sm:$0xff] %vm1650, %v1533
      %1689 = vst.msk [vmem:[#allocation3 + $0x130] sm:$0xff] %vm1650, %v1535
      %1690 = vst.msk [vmem:[#allocation3 + $0x138] sm:$0xff] %vm1650, %v1537
      %1691 = vst.msk [vmem:[#allocation3 + $0x140] sm:$0xff] %vm1650, %v1539
      %1692 = vst.msk [vmem:[#allocation3 + $0x148] sm:$0xff] %vm1650, %v1541
      %1693 = vst.msk [vmem:[#allocation3 + $0x150] sm:$0xff] %vm1650, %v1543
      %1694 = vst.msk [vmem:[#allocation3 + $0x158] sm:$0xff] %vm1650, %v1545
      %1695 = vst.msk [vmem:[#allocation3 + $0x160] sm:$0xff] %vm1650, %v1547
      %1696 = vst.msk [vmem:[#allocation3 + $0x168] sm:$0xff] %vm1650, %v1549
      %1697 = vst.msk [vmem:[#allocation3 + $0x170] sm:$0xff] %vm1650, %v1551
      %1698 = vst.msk [vmem:[#allocation3 + $0x178] sm:$0xff] %vm1650, %v1553
      %1699 = vst.msk [vmem:[#allocation3 + $0x180] sm:$0xff] %vm1650, %v1555
      %1700 = vst.msk [vmem:[#allocation3 + $0x188] sm:$0xff] %vm1650, %v1557
      %1701 = vst.msk [vmem:[#allocation3 + $0x190] sm:$0xff] %vm1650, %v1559
      %1702 = vst.msk [vmem:[#allocation3 + $0x198] sm:$0xff] %vm1650, %v1561
      %1703 = vst.msk [vmem:[#allocation3 + $0x1a0] sm:$0xff] %vm1650, %v1563
      %1704 = vst.msk [vmem:[#allocation3 + $0x1a8] sm:$0xff] %vm1650, %v1565
      %1705 = vst.msk [vmem:[#allocation3 + $0x1b0] sm:$0xff] %vm1650, %v1567
      %1706 = vst.msk [vmem:[#allocation3 + $0x1b8] sm:$0xff] %vm1650, %v1569
      %1707 = vst.msk [vmem:[#allocation3 + $0x1c0] sm:$0xff] %vm1650, %v1571
      %1708 = vst.msk [vmem:[#allocation3 + $0x1c8] sm:$0xff] %vm1650, %v1573
      %1709 = vst.msk [vmem:[#allocation3 + $0x1d0] sm:$0xff] %vm1650, %v1575
      %1710 = vst.msk [vmem:[#allocation3 + $0x1d8] sm:$0xff] %vm1650, %v1577
      %1711 = vst.msk [vmem:[#allocation3 + $0x1e0] sm:$0xff] %vm1650, %v1579
      %1712 = vst.msk [vmem:[#allocation3 + $0x1e8] sm:$0xff] %vm1650, %v1581
      %1713 = vst.msk [vmem:[#allocation3 + $0x1f0] sm:$0xff] %vm1650, %v1583
      %1714 = vst.msk [vmem:[#allocation3 + $0x1f8] sm:$0xff] %vm1650, %v1585
      %v1715 = vld [vmem:[%s367 + $0x1] sm:$0xff]
      %v1716 = vld [vmem:[%s367 + $0x9] sm:$0xff]
      %v1717 = vld [vmem:[%s367 + $0x19] sm:$0xff]
      %v1718 = vld [vmem:[%s367 + $0x21] sm:$0xff]
      %v1719 = vld [vmem:[%s367 + $0x31] sm:$0xff]
      %v1720 = vld [vmem:[%s367 + $0x39] sm:$0xff]
      %v1721 = vld [vmem:[%s367 + $0x49] sm:$0xff]
      %v1722 = vld [vmem:[%s367 + $0x51] sm:$0xff]
      %v1723 = vld [vmem:[%s367 + $0x61] sm:$0xff]
      %v1724 = vld [vmem:[%s367 + $0x69] sm:$0xff]
      %v1725 = vld [vmem:[%s367 + $0x79] sm:$0xff]
      %v1726 = vld [vmem:[%s367 + $0x81] sm:$0xff]
      %v1727 = vld [vmem:[%s367 + $0x91] sm:$0xff]
      %v1728 = vld [vmem:[%s367 + $0x99] sm:$0xff]
      %v1729 = vld [vmem:[%s367 + $0xa9] sm:$0xff]
      %v1730 = vld [vmem:[%s367 + $0xb1] sm:$0xff]
      %v1731 = vld [vmem:[%s367 + $0xc1] sm:$0xff]
      %v1732 = vld [vmem:[%s367 + $0xc9] sm:$0xff]
      %v1733 = vld [vmem:[%s367 + $0xd9] sm:$0xff]
      %v1734 = vld [vmem:[%s367 + $0xe1] sm:$0xff]
      %v1735 = vld [vmem:[%s367 + $0xf1] sm:$0xff]
      %v1736 = vld [vmem:[%s367 + $0xf9] sm:$0xff]
      %v1737 = vld [vmem:[%s367 + $0x109] sm:$0xff]
      %v1738 = vld [vmem:[%s367 + $0x111] sm:$0xff]
      %v1739 = vld [vmem:[%s367 + $0x121] sm:$0xff]
      %v1740 = vld [vmem:[%s367 + $0x129] sm:$0xff]
      %v1741 = vld [vmem:[%s367 + $0x139] sm:$0xff]
      %v1742 = vld [vmem:[%s367 + $0x141] sm:$0xff]
      %v1743 = vld [vmem:[%s367 + $0x151] sm:$0xff]
      %v1744 = vld [vmem:[%s367 + $0x159] sm:$0xff]
      %v1745 = vld [vmem:[%s367 + $0x169] sm:$0xff]
      %v1746 = vld [vmem:[%s367 + $0x171] sm:$0xff]
      %v1747 = vld [vmem:[%s367 + $0x1b1] sm:$0xff]
      %v1748 = vld [vmem:[%s367 + $0x1b9] sm:$0xff]
      %v1749 = vld [vmem:[%s367 + $0x1c9] sm:$0xff]
      %v1750 = vld [vmem:[%s367 + $0x1d1] sm:$0xff]
      %v1751 = vld [vmem:[%s367 + $0x1e1] sm:$0xff]
      %v1752 = vld [vmem:[%s367 + $0x1e9] sm:$0xff]
      %v1753 = vld [vmem:[%s367 + $0x1f9] sm:$0xff]
      %v1754 = vld [vmem:[%s367 + $0x201] sm:$0xff]
      %v1755 = vld [vmem:[%s367 + $0x211] sm:$0xff]
      %v1756 = vld [vmem:[%s367 + $0x219] sm:$0xff]
      %v1757 = vld [vmem:[%s367 + $0x229] sm:$0xff]
      %v1758 = vld [vmem:[%s367 + $0x231] sm:$0xff]
      %v1759 = vld [vmem:[%s367 + $0x241] sm:$0xff]
      %v1760 = vld [vmem:[%s367 + $0x249] sm:$0xff]
      %v1761 = vld [vmem:[%s367 + $0x259] sm:$0xff]
      %v1762 = vld [vmem:[%s367 + $0x261] sm:$0xff]
      %v1763 = vld [vmem:[%s367 + $0x271] sm:$0xff]
      %v1764 = vld [vmem:[%s367 + $0x279] sm:$0xff]
      %v1765 = vld [vmem:[%s367 + $0x289] sm:$0xff]
      %v1766 = vld [vmem:[%s367 + $0x291] sm:$0xff]
      %v1767 = vld [vmem:[%s367 + $0x2a1] sm:$0xff]
      %v1768 = vld [vmem:[%s367 + $0x2a9] sm:$0xff]
      %v1769 = vld [vmem:[%s367 + $0x2b9] sm:$0xff]
      %v1770 = vld [vmem:[%s367 + $0x2c1] sm:$0xff]
      %v1771 = vld [vmem:[%s367 + $0x2d1] sm:$0xff]
      %v1772 = vld [vmem:[%s367 + $0x2d9] sm:$0xff]
      %v1773 = vld [vmem:[%s367 + $0x2e9] sm:$0xff]
      %v1774 = vld [vmem:[%s367 + $0x2f1] sm:$0xff]
      %v1775 = vld [vmem:[%s367 + $0x301] sm:$0xff]
      %v1776 = vld [vmem:[%s367 + $0x309] sm:$0xff]
      %v1777 = vld [vmem:[%s367 + $0x319] sm:$0xff]
      %v1778 = vld [vmem:[%s367 + $0x321] sm:$0xff]
      %1843 = vrot.lane.b32.xlu0 %v1715, 16
      %v1844 = vpop.permute.xlu0 %1843
      %1845 = vrot.lane.b32.xlu0 %v1716, 16
      %v1846 = vpop.permute.xlu0 %1845
      %1847 = vrot.lane.b32.xlu0 %v1717, 16
      %v1848 = vpop.permute.xlu0 %1847
      %1849 = vrot.lane.b32.xlu0 %v1718, 16
      %v1850 = vpop.permute.xlu0 %1849
      %1851 = vrot.lane.b32.xlu0 %v1719, 16
      %v1852 = vpop.permute.xlu0 %1851
      %1853 = vrot.lane.b32.xlu0 %v1720, 16
      %v1854 = vpop.permute.xlu0 %1853
      %1855 = vrot.lane.b32.xlu0 %v1721, 16
      %v1856 = vpop.permute.xlu0 %1855
      %1857 = vrot.lane.b32.xlu0 %v1722, 16
      %v1858 = vpop.permute.xlu0 %1857
      %1859 = vrot.lane.b32.xlu0 %v1723, 16
      %v1860 = vpop.permute.xlu0 %1859
      %1861 = vrot.lane.b32.xlu0 %v1724, 16
      %v1862 = vpop.permute.xlu0 %1861
      %1863 = vrot.lane.b32.xlu0 %v1725, 16
      %v1864 = vpop.permute.xlu0 %1863
      %1865 = vrot.lane.b32.xlu0 %v1726, 16
      %v1866 = vpop.permute.xlu0 %1865
      %1867 = vrot.lane.b32.xlu0 %v1727, 16
      %v1868 = vpop.permute.xlu0 %1867
      %1869 = vrot.lane.b32.xlu0 %v1728, 16
      %v1870 = vpop.permute.xlu0 %1869
      %1871 = vrot.lane.b32.xlu0 %v1729, 16
      %v1872 = vpop.permute.xlu0 %1871
      %1873 = vrot.lane.b32.xlu0 %v1730, 16
      %v1874 = vpop.permute.xlu0 %1873
      %1875 = vrot.lane.b32.xlu0 %v1731, 16
      %v1876 = vpop.permute.xlu0 %1875
      %1877 = vrot.lane.b32.xlu0 %v1732, 16
      %v1878 = vpop.permute.xlu0 %1877
      %1879 = vrot.lane.b32.xlu0 %v1733, 16
      %v1880 = vpop.permute.xlu0 %1879
      %1881 = vrot.lane.b32.xlu0 %v1734, 16
      %v1882 = vpop.permute.xlu0 %1881
      %1883 = vrot.lane.b32.xlu0 %v1735, 16
      %v1884 = vpop.permute.xlu0 %1883
      %1885 = vrot.lane.b32.xlu0 %v1736, 16
      %v1886 = vpop.permute.xlu0 %1885
      %1887 = vrot.lane.b32.xlu0 %v1737, 16
      %v1888 = vpop.permute.xlu0 %1887
      %1889 = vrot.lane.b32.xlu0 %v1738, 16
      %v1890 = vpop.permute.xlu0 %1889
      %1891 = vrot.lane.b32.xlu0 %v1739, 16
      %v1892 = vpop.permute.xlu0 %1891
      %1893 = vrot.lane.b32.xlu0 %v1740, 16
      %v1894 = vpop.permute.xlu0 %1893
      %1895 = vrot.lane.b32.xlu0 %v1741, 16
      %v1896 = vpop.permute.xlu0 %1895
      %1897 = vrot.lane.b32.xlu0 %v1742, 16
      %v1898 = vpop.permute.xlu0 %1897
      %1899 = vrot.lane.b32.xlu0 %v1743, 16
      %v1900 = vpop.permute.xlu0 %1899
      %1901 = vrot.lane.b32.xlu0 %v1744, 16
      %v1902 = vpop.permute.xlu0 %1901
      %1903 = vrot.lane.b32.xlu0 %v1745, 16
      %v1904 = vpop.permute.xlu0 %1903
      %1905 = vrot.lane.b32.xlu0 %v1746, 16
      %v1906 = vpop.permute.xlu0 %1905
      %1907 = vrot.lane.b32.xlu0 %v1747, 16
      %v1908 = vpop.permute.xlu0 %1907
      %1909 = vrot.lane.b32.xlu0 %v1748, 16
      %v1910 = vpop.permute.xlu0 %1909
      %1911 = vrot.lane.b32.xlu0 %v1749, 16
      %v1912 = vpop.permute.xlu0 %1911
      %1913 = vrot.lane.b32.xlu0 %v1750, 16
      %v1914 = vpop.permute.xlu0 %1913
      %1915 = vrot.lane.b32.xlu0 %v1751, 16
      %v1916 = vpop.permute.xlu0 %1915
      %1917 = vrot.lane.b32.xlu0 %v1752, 16
      %v1918 = vpop.permute.xlu0 %1917
      %1919 = vrot.lane.b32.xlu0 %v1753, 16
      %v1920 = vpop.permute.xlu0 %1919
      %1921 = vrot.lane.b32.xlu0 %v1754, 16
      %v1922 = vpop.permute.xlu0 %1921
      %1923 = vrot.lane.b32.xlu0 %v1755, 16
      %v1924 = vpop.permute.xlu0 %1923
      %1925 = vrot.lane.b32.xlu0 %v1756, 16
      %v1926 = vpop.permute.xlu0 %1925
      %1927 = vrot.lane.b32.xlu0 %v1757, 16
      %v1928 = vpop.permute.xlu0 %1927
      %1929 = vrot.lane.b32.xlu0 %v1758, 16
      %v1930 = vpop.permute.xlu0 %1929
      %1931 = vrot.lane.b32.xlu0 %v1759, 16
      %v1932 = vpop.permute.xlu0 %1931
      %1933 = vrot.lane.b32.xlu0 %v1760, 16
      %v1934 = vpop.permute.xlu0 %1933
      %1935 = vrot.lane.b32.xlu0 %v1761, 16
      %v1936 = vpop.permute.xlu0 %1935
      %1937 = vrot.lane.b32.xlu0 %v1762, 16
      %v1938 = vpop.permute.xlu0 %1937
      %1939 = vrot.lane.b32.xlu0 %v1763, 16
      %v1940 = vpop.permute.xlu0 %1939
      %1941 = vrot.lane.b32.xlu0 %v1764, 16
      %v1942 = vpop.permute.xlu0 %1941
      %1943 = vrot.lane.b32.xlu0 %v1765, 16
      %v1944 = vpop.permute.xlu0 %1943
      %1945 = vrot.lane.b32.xlu0 %v1766, 16
      %v1946 = vpop.permute.xlu0 %1945
      %1947 = vrot.lane.b32.xlu0 %v1767, 16
      %v1948 = vpop.permute.xlu0 %1947
      %1949 = vrot.lane.b32.xlu0 %v1768, 16
      %v1950 = vpop.permute.xlu0 %1949
      %1951 = vrot.lane.b32.xlu0 %v1769, 16
      %v1952 = vpop.permute.xlu0 %1951
      %1953 = vrot.lane.b32.xlu0 %v1770, 16
      %v1954 = vpop.permute.xlu0 %1953
      %1955 = vrot.lane.b32.xlu0 %v1771, 16
      %v1956 = vpop.permute.xlu0 %1955
      %1957 = vrot.lane.b32.xlu0 %v1772, 16
      %v1958 = vpop.permute.xlu0 %1957
      %1959 = vrot.lane.b32.xlu0 %v1773, 16
      %v1960 = vpop.permute.xlu0 %1959
      %1961 = vrot.lane.b32.xlu0 %v1774, 16
      %v1962 = vpop.permute.xlu0 %1961
      %1963 = vrot.lane.b32.xlu0 %v1775, 16
      %v1964 = vpop.permute.xlu0 %1963
      %1965 = vrot.lane.b32.xlu0 %v1776, 16
      %v1966 = vpop.permute.xlu0 %1965
      %1967 = vrot.lane.b32.xlu0 %v1777, 16
      %v1968 = vpop.permute.xlu0 %1967
      %1969 = vrot.lane.b32.xlu0 %v1778, 16
      %v1970 = vpop.permute.xlu0 %1969
      %vm2035 = vcmask 162944
      %2036 = vst.msk [vmem:[#allocation3] sm:$0xff] %vm2035, %v1844
      %2037 = vst.msk [vmem:[#allocation3 + $0x8] sm:$0xff] %vm2035, %v1846
      %2038 = vst.msk [vmem:[#allocation3 + $0x10] sm:$0xff] %vm2035, %v1848
      %2039 = vst.msk [vmem:[#allocation3 + $0x18] sm:$0xff] %vm2035, %v1850
      %2040 = vst.msk [vmem:[#allocation3 + $0x20] sm:$0xff] %vm2035, %v1852
      %2041 = vst.msk [vmem:[#allocation3 + $0x28] sm:$0xff] %vm2035, %v1854
      %2042 = vst.msk [vmem:[#allocation3 + $0x30] sm:$0xff] %vm2035, %v1856
      %2043 = vst.msk [vmem:[#allocation3 + $0x38] sm:$0xff] %vm2035, %v1858
      %2044 = vst.msk [vmem:[#allocation3 + $0x40] sm:$0xff] %vm2035, %v1860
      %2045 = vst.msk [vmem:[#allocation3 + $0x48] sm:$0xff] %vm2035, %v1862
      %2046 = vst.msk [vmem:[#allocation3 + $0x50] sm:$0xff] %vm2035, %v1864
      %2047 = vst.msk [vmem:[#allocation3 + $0x58] sm:$0xff] %vm2035, %v1866
      %2048 = vst.msk [vmem:[#allocation3 + $0x60] sm:$0xff] %vm2035, %v1868
      %2049 = vst.msk [vmem:[#allocation3 + $0x68] sm:$0xff] %vm2035, %v1870
      %2050 = vst.msk [vmem:[#allocation3 + $0x70] sm:$0xff] %vm2035, %v1872
      %2051 = vst.msk [vmem:[#allocation3 + $0x78] sm:$0xff] %vm2035, %v1874
      %2052 = vst.msk [vmem:[#allocation3 + $0x80] sm:$0xff] %vm2035, %v1876
      %2053 = vst.msk [vmem:[#allocation3 + $0x88] sm:$0xff] %vm2035, %v1878
      %2054 = vst.msk [vmem:[#allocation3 + $0x90] sm:$0xff] %vm2035, %v1880
      %2055 = vst.msk [vmem:[#allocation3 + $0x98] sm:$0xff] %vm2035, %v1882
      %2056 = vst.msk [vmem:[#allocation3 + $0xa0] sm:$0xff] %vm2035, %v1884
      %2057 = vst.msk [vmem:[#allocation3 + $0xa8] sm:$0xff] %vm2035, %v1886
      %2058 = vst.msk [vmem:[#allocation3 + $0xb0] sm:$0xff] %vm2035, %v1888
      %2059 = vst.msk [vmem:[#allocation3 + $0xb8] sm:$0xff] %vm2035, %v1890
      %2060 = vst.msk [vmem:[#allocation3 + $0xc0] sm:$0xff] %vm2035, %v1892
      %2061 = vst.msk [vmem:[#allocation3 + $0xc8] sm:$0xff] %vm2035, %v1894
      %2062 = vst.msk [vmem:[#allocation3 + $0xd0] sm:$0xff] %vm2035, %v1896
      %2063 = vst.msk [vmem:[#allocation3 + $0xd8] sm:$0xff] %vm2035, %v1898
      %2064 = vst.msk [vmem:[#allocation3 + $0xe0] sm:$0xff] %vm2035, %v1900
      %2065 = vst.msk [vmem:[#allocation3 + $0xe8] sm:$0xff] %vm2035, %v1902
      %2066 = vst.msk [vmem:[#allocation3 + $0xf0] sm:$0xff] %vm2035, %v1904
      %2067 = vst.msk [vmem:[#allocation3 + $0xf8] sm:$0xff] %vm2035, %v1906
      %2068 = vst.msk [vmem:[#allocation3 + $0x100] sm:$0xff] %vm2035, %v1908
      %2069 = vst.msk [vmem:[#allocation3 + $0x108] sm:$0xff] %vm2035, %v1910
      %2070 = vst.msk [vmem:[#allocation3 + $0x110] sm:$0xff] %vm2035, %v1912
      %2071 = vst.msk [vmem:[#allocation3 + $0x118] sm:$0xff] %vm2035, %v1914
      %2072 = vst.msk [vmem:[#allocation3 + $0x120] sm:$0xff] %vm2035, %v1916
      %2073 = vst.msk [vmem:[#allocation3 + $0x128] sm:$0xff] %vm2035, %v1918
      %2074 = vst.msk [vmem:[#allocation3 + $0x130] sm:$0xff] %vm2035, %v1920
      %2075 = vst.msk [vmem:[#allocation3 + $0x138] sm:$0xff] %vm2035, %v1922
      %2076 = vst.msk [vmem:[#allocation3 + $0x140] sm:$0xff] %vm2035, %v1924
      %2077 = vst.msk [vmem:[#allocation3 + $0x148] sm:$0xff] %vm2035, %v1926
      %2078 = vst.msk [vmem:[#allocation3 + $0x150] sm:$0xff] %vm2035, %v1928
      %2079 = vst.msk [vmem:[#allocation3 + $0x158] sm:$0xff] %vm2035, %v1930
      %2080 = vst.msk [vmem:[#allocation3 + $0x160] sm:$0xff] %vm2035, %v1932
      %2081 = vst.msk [vmem:[#allocation3 + $0x168] sm:$0xff] %vm2035, %v1934
      %2082 = vst.msk [vmem:[#allocation3 + $0x170] sm:$0xff] %vm2035, %v1936
      %2083 = vst.msk [vmem:[#allocation3 + $0x178] sm:$0xff] %vm2035, %v1938
      %2084 = vst.msk [vmem:[#allocation3 + $0x180] sm:$0xff] %vm2035, %v1940
      %2085 = vst.msk [vmem:[#allocation3 + $0x188] sm:$0xff] %vm2035, %v1942
      %2086 = vst.msk [vmem:[#allocation3 + $0x190] sm:$0xff] %vm2035, %v1944
      %2087 = vst.msk [vmem:[#allocation3 + $0x198] sm:$0xff] %vm2035, %v1946
      %2088 = vst.msk [vmem:[#allocation3 + $0x1a0] sm:$0xff] %vm2035, %v1948
      %2089 = vst.msk [vmem:[#allocation3 + $0x1a8] sm:$0xff] %vm2035, %v1950
      %2090 = vst.msk [vmem:[#allocation3 + $0x1b0] sm:$0xff] %vm2035, %v1952
      %2091 = vst.msk [vmem:[#allocation3 + $0x1b8] sm:$0xff] %vm2035, %v1954
      %2092 = vst.msk [vmem:[#allocation3 + $0x1c0] sm:$0xff] %vm2035, %v1956
      %2093 = vst.msk [vmem:[#allocation3 + $0x1c8] sm:$0xff] %vm2035, %v1958
      %2094 = vst.msk [vmem:[#allocation3 + $0x1d0] sm:$0xff] %vm2035, %v1960
      %2095 = vst.msk [vmem:[#allocation3 + $0x1d8] sm:$0xff] %vm2035, %v1962
      %2096 = vst.msk [vmem:[#allocation3 + $0x1e0] sm:$0xff] %vm2035, %v1964
      %2097 = vst.msk [vmem:[#allocation3 + $0x1e8] sm:$0xff] %vm2035, %v1966
      %2098 = vst.msk [vmem:[#allocation3 + $0x1f0] sm:$0xff] %vm2035, %v1968
      %2099 = vst.msk [vmem:[#allocation3 + $0x1f8] sm:$0xff] %vm2035, %v1970
      %v2100 = vld [vmem:[%s367 + $0x2] sm:$0xff]
      %v2101 = vld [vmem:[%s367 + $0xa] sm:$0xff]
      %v2102 = vld [vmem:[%s367 + $0x1a] sm:$0xff]
      %v2103 = vld [vmem:[%s367 + $0x22] sm:$0xff]
      %v2104 = vld [vmem:[%s367 + $0x32] sm:$0xff]
      %v2105 = vld [vmem:[%s367 + $0x3a] sm:$0xff]
      %v2106 = vld [vmem:[%s367 + $0x4a] sm:$0xff]
      %v2107 = vld [vmem:[%s367 + $0x52] sm:$0xff]
      %v2108 = vld [vmem:[%s367 + $0x62] sm:$0xff]
      %v2109 = vld [vmem:[%s367 + $0x6a] sm:$0xff]
      %v2110 = vld [vmem:[%s367 + $0x7a] sm:$0xff]
      %v2111 = vld [vmem:[%s367 + $0x82] sm:$0xff]
      %v2112 = vld [vmem:[%s367 + $0x92] sm:$0xff]
      %v2113 = vld [vmem:[%s367 + $0x9a] sm:$0xff]
      %v2114 = vld [vmem:[%s367 + $0xaa] sm:$0xff]
      %v2115 = vld [vmem:[%s367 + $0xb2] sm:$0xff]
      %v2116 = vld [vmem:[%s367 + $0xc2] sm:$0xff]
      %v2117 = vld [vmem:[%s367 + $0xca] sm:$0xff]
      %v2118 = vld [vmem:[%s367 + $0xda] sm:$0xff]
      %v2119 = vld [vmem:[%s367 + $0xe2] sm:$0xff]
      %v2120 = vld [vmem:[%s367 + $0xf2] sm:$0xff]
      %v2121 = vld [vmem:[%s367 + $0xfa] sm:$0xff]
      %v2122 = vld [vmem:[%s367 + $0x10a] sm:$0xff]
      %v2123 = vld [vmem:[%s367 + $0x112] sm:$0xff]
      %v2124 = vld [vmem:[%s367 + $0x122] sm:$0xff]
      %v2125 = vld [vmem:[%s367 + $0x12a] sm:$0xff]
      %v2126 = vld [vmem:[%s367 + $0x13a] sm:$0xff]
      %v2127 = vld [vmem:[%s367 + $0x142] sm:$0xff]
      %v2128 = vld [vmem:[%s367 + $0x152] sm:$0xff]
      %v2129 = vld [vmem:[%s367 + $0x15a] sm:$0xff]
      %v2130 = vld [vmem:[%s367 + $0x16a] sm:$0xff]
      %v2131 = vld [vmem:[%s367 + $0x172] sm:$0xff]
      %v2132 = vld [vmem:[%s367 + $0x1b2] sm:$0xff]
      %v2133 = vld [vmem:[%s367 + $0x1ba] sm:$0xff]
      %v2134 = vld [vmem:[%s367 + $0x1ca] sm:$0xff]
      %v2135 = vld [vmem:[%s367 + $0x1d2] sm:$0xff]
      %v2136 = vld [vmem:[%s367 + $0x1e2] sm:$0xff]
      %v2137 = vld [vmem:[%s367 + $0x1ea] sm:$0xff]
      %v2138 = vld [vmem:[%s367 + $0x1fa] sm:$0xff]
      %v2139 = vld [vmem:[%s367 + $0x202] sm:$0xff]
      %v2140 = vld [vmem:[%s367 + $0x212] sm:$0xff]
      %v2141 = vld [vmem:[%s367 + $0x21a] sm:$0xff]
      %v2142 = vld [vmem:[%s367 + $0x22a] sm:$0xff]
      %v2143 = vld [vmem:[%s367 + $0x232] sm:$0xff]
      %v2144 = vld [vmem:[%s367 + $0x242] sm:$0xff]
      %v2145 = vld [vmem:[%s367 + $0x24a] sm:$0xff]
      %v2146 = vld [vmem:[%s367 + $0x25a] sm:$0xff]
      %v2147 = vld [vmem:[%s367 + $0x262] sm:$0xff]
      %v2148 = vld [vmem:[%s367 + $0x272] sm:$0xff]
      %v2149 = vld [vmem:[%s367 + $0x27a] sm:$0xff]
      %v2150 = vld [vmem:[%s367 + $0x28a] sm:$0xff]
      %v2151 = vld [vmem:[%s367 + $0x292] sm:$0xff]
      %v2152 = vld [vmem:[%s367 + $0x2a2] sm:$0xff]
      %v2153 = vld [vmem:[%s367 + $0x2aa] sm:$0xff]
      %v2154 = vld [vmem:[%s367 + $0x2ba] sm:$0xff]
      %v2155 = vld [vmem:[%s367 + $0x2c2] sm:$0xff]
      %v2156 = vld [vmem:[%s367 + $0x2d2] sm:$0xff]
      %v2157 = vld [vmem:[%s367 + $0x2da] sm:$0xff]
      %v2158 = vld [vmem:[%s367 + $0x2ea] sm:$0xff]
      %v2159 = vld [vmem:[%s367 + $0x2f2] sm:$0xff]
      %v2160 = vld [vmem:[%s367 + $0x302] sm:$0xff]
      %v2161 = vld [vmem:[%s367 + $0x30a] sm:$0xff]
      %v2162 = vld [vmem:[%s367 + $0x31a] sm:$0xff]
      %v2163 = vld [vmem:[%s367 + $0x322] sm:$0xff]
      %2228 = vrot.lane.b32.xlu0 %v2100, 20
      %v2229 = vpop.permute.xlu0 %2228
      %2230 = vrot.lane.b32.xlu0 %v2101, 20
      %v2231 = vpop.permute.xlu0 %2230
      %2232 = vrot.lane.b32.xlu0 %v2102, 20
      %v2233 = vpop.permute.xlu0 %2232
      %2234 = vrot.lane.b32.xlu0 %v2103, 20
      %v2235 = vpop.permute.xlu0 %2234
      %2236 = vrot.lane.b32.xlu0 %v2104, 20
      %v2237 = vpop.permute.xlu0 %2236
      %2238 = vrot.lane.b32.xlu0 %v2105, 20
      %v2239 = vpop.permute.xlu0 %2238
      %2240 = vrot.lane.b32.xlu0 %v2106, 20
      %v2241 = vpop.permute.xlu0 %2240
      %2242 = vrot.lane.b32.xlu0 %v2107, 20
      %v2243 = vpop.permute.xlu0 %2242
      %2244 = vrot.lane.b32.xlu0 %v2108, 20
      %v2245 = vpop.permute.xlu0 %2244
      %2246 = vrot.lane.b32.xlu0 %v2109, 20
      %v2247 = vpop.permute.xlu0 %2246
      %2248 = vrot.lane.b32.xlu0 %v2110, 20
      %v2249 = vpop.permute.xlu0 %2248
      %2250 = vrot.lane.b32.xlu0 %v2111, 20
      %v2251 = vpop.permute.xlu0 %2250
      %2252 = vrot.lane.b32.xlu0 %v2112, 20
      %v2253 = vpop.permute.xlu0 %2252
      %2254 = vrot.lane.b32.xlu0 %v2113, 20
      %v2255 = vpop.permute.xlu0 %2254
      %2256 = vrot.lane.b32.xlu0 %v2114, 20
      %v2257 = vpop.permute.xlu0 %2256
      %2258 = vrot.lane.b32.xlu0 %v2115, 20
      %v2259 = vpop.permute.xlu0 %2258
      %2260 = vrot.lane.b32.xlu0 %v2116, 20
      %v2261 = vpop.permute.xlu0 %2260
      %2262 = vrot.lane.b32.xlu0 %v2117, 20
      %v2263 = vpop.permute.xlu0 %2262
      %2264 = vrot.lane.b32.xlu0 %v2118, 20
      %v2265 = vpop.permute.xlu0 %2264
      %2266 = vrot.lane.b32.xlu0 %v2119, 20
      %v2267 = vpop.permute.xlu0 %2266
      %2268 = vrot.lane.b32.xlu0 %v2120, 20
      %v2269 = vpop.permute.xlu0 %2268
      %2270 = vrot.lane.b32.xlu0 %v2121, 20
      %v2271 = vpop.permute.xlu0 %2270
      %2272 = vrot.lane.b32.xlu0 %v2122, 20
      %v2273 = vpop.permute.xlu0 %2272
      %2274 = vrot.lane.b32.xlu0 %v2123, 20
      %v2275 = vpop.permute.xlu0 %2274
      %2276 = vrot.lane.b32.xlu0 %v2124, 20
      %v2277 = vpop.permute.xlu0 %2276
      %2278 = vrot.lane.b32.xlu0 %v2125, 20
      %v2279 = vpop.permute.xlu0 %2278
      %2280 = vrot.lane.b32.xlu0 %v2126, 20
      %v2281 = vpop.permute.xlu0 %2280
      %2282 = vrot.lane.b32.xlu0 %v2127, 20
      %v2283 = vpop.permute.xlu0 %2282
      %2284 = vrot.lane.b32.xlu0 %v2128, 20
      %v2285 = vpop.permute.xlu0 %2284
      %2286 = vrot.lane.b32.xlu0 %v2129, 20
      %v2287 = vpop.permute.xlu0 %2286
      %2288 = vrot.lane.b32.xlu0 %v2130, 20
      %v2289 = vpop.permute.xlu0 %2288
      %2290 = vrot.lane.b32.xlu0 %v2131, 20
      %v2291 = vpop.permute.xlu0 %2290
      %2292 = vrot.lane.b32.xlu0 %v2132, 20
      %v2293 = vpop.permute.xlu0 %2292
      %2294 = vrot.lane.b32.xlu0 %v2133, 20
      %v2295 = vpop.permute.xlu0 %2294
      %2296 = vrot.lane.b32.xlu0 %v2134, 20
      %v2297 = vpop.permute.xlu0 %2296
      %2298 = vrot.lane.b32.xlu0 %v2135, 20
      %v2299 = vpop.permute.xlu0 %2298
      %2300 = vrot.lane.b32.xlu0 %v2136, 20
      %v2301 = vpop.permute.xlu0 %2300
      %2302 = vrot.lane.b32.xlu0 %v2137, 20
      %v2303 = vpop.permute.xlu0 %2302
      %2304 = vrot.lane.b32.xlu0 %v2138, 20
      %v2305 = vpop.permute.xlu0 %2304
      %2306 = vrot.lane.b32.xlu0 %v2139, 20
      %v2307 = vpop.permute.xlu0 %2306
      %2308 = vrot.lane.b32.xlu0 %v2140, 20
      %v2309 = vpop.permute.xlu0 %2308
      %2310 = vrot.lane.b32.xlu0 %v2141, 20
      %v2311 = vpop.permute.xlu0 %2310
      %2312 = vrot.lane.b32.xlu0 %v2142, 20
      %v2313 = vpop.permute.xlu0 %2312
      %2314 = vrot.lane.b32.xlu0 %v2143, 20
      %v2315 = vpop.permute.xlu0 %2314
      %2316 = vrot.lane.b32.xlu0 %v2144, 20
      %v2317 = vpop.permute.xlu0 %2316
      %2318 = vrot.lane.b32.xlu0 %v2145, 20
      %v2319 = vpop.permute.xlu0 %2318
      %2320 = vrot.lane.b32.xlu0 %v2146, 20
      %v2321 = vpop.permute.xlu0 %2320
      %2322 = vrot.lane.b32.xlu0 %v2147, 20
      %v2323 = vpop.permute.xlu0 %2322
      %2324 = vrot.lane.b32.xlu0 %v2148, 20
      %v2325 = vpop.permute.xlu0 %2324
      %2326 = vrot.lane.b32.xlu0 %v2149, 20
      %v2327 = vpop.permute.xlu0 %2326
      %2328 = vrot.lane.b32.xlu0 %v2150, 20
      %v2329 = vpop.permute.xlu0 %2328
      %2330 = vrot.lane.b32.xlu0 %v2151, 20
      %v2331 = vpop.permute.xlu0 %2330
      %2332 = vrot.lane.b32.xlu0 %v2152, 20
      %v2333 = vpop.permute.xlu0 %2332
      %2334 = vrot.lane.b32.xlu0 %v2153, 20
      %v2335 = vpop.permute.xlu0 %2334
      %2336 = vrot.lane.b32.xlu0 %v2154, 20
      %v2337 = vpop.permute.xlu0 %2336
      %2338 = vrot.lane.b32.xlu0 %v2155, 20
      %v2339 = vpop.permute.xlu0 %2338
      %2340 = vrot.lane.b32.xlu0 %v2156, 20
      %v2341 = vpop.permute.xlu0 %2340
      %2342 = vrot.lane.b32.xlu0 %v2157, 20
      %v2343 = vpop.permute.xlu0 %2342
      %2344 = vrot.lane.b32.xlu0 %v2158, 20
      %v2345 = vpop.permute.xlu0 %2344
      %2346 = vrot.lane.b32.xlu0 %v2159, 20
      %v2347 = vpop.permute.xlu0 %2346
      %2348 = vrot.lane.b32.xlu0 %v2160, 20
      %v2349 = vpop.permute.xlu0 %2348
      %2350 = vrot.lane.b32.xlu0 %v2161, 20
      %v2351 = vpop.permute.xlu0 %2350
      %2352 = vrot.lane.b32.xlu0 %v2162, 20
      %v2353 = vpop.permute.xlu0 %2352
      %2354 = vrot.lane.b32.xlu0 %v2163, 20
      %v2355 = vpop.permute.xlu0 %2354
      %vm2420 = vcmask 195744
      %2421 = vst.msk [vmem:[#allocation3] sm:$0xff] %vm2420, %v2229
      %2422 = vst.msk [vmem:[#allocation3 + $0x8] sm:$0xff] %vm2420, %v2231
      %2423 = vst.msk [vmem:[#allocation3 + $0x10] sm:$0xff] %vm2420, %v2233
      %2424 = vst.msk [vmem:[#allocation3 + $0x18] sm:$0xff] %vm2420, %v2235
      %2425 = vst.msk [vmem:[#allocation3 + $0x20] sm:$0xff] %vm2420, %v2237
      %2426 = vst.msk [vmem:[#allocation3 + $0x28] sm:$0xff] %vm2420, %v2239
      %2427 = vst.msk [vmem:[#allocation3 + $0x30] sm:$0xff] %vm2420, %v2241
      %2428 = vst.msk [vmem:[#allocation3 + $0x38] sm:$0xff] %vm2420, %v2243
      %2429 = vst.msk [vmem:[#allocation3 + $0x40] sm:$0xff] %vm2420, %v2245
      %2430 = vst.msk [vmem:[#allocation3 + $0x48] sm:$0xff] %vm2420, %v2247
      %2431 = vst.msk [vmem:[#allocation3 + $0x50] sm:$0xff] %vm2420, %v2249
      %2432 = vst.msk [vmem:[#allocation3 + $0x58] sm:$0xff] %vm2420, %v2251
      %2433 = vst.msk [vmem:[#allocation3 + $0x60] sm:$0xff] %vm2420, %v2253
      %2434 = vst.msk [vmem:[#allocation3 + $0x68] sm:$0xff] %vm2420, %v2255
      %2435 = vst.msk [vmem:[#allocation3 + $0x70] sm:$0xff] %vm2420, %v2257
      %2436 = vst.msk [vmem:[#allocation3 + $0x78] sm:$0xff] %vm2420, %v2259
      %2437 = vst.msk [vmem:[#allocation3 + $0x80] sm:$0xff] %vm2420, %v2261
      %2438 = vst.msk [vmem:[#allocation3 + $0x88] sm:$0xff] %vm2420, %v2263
      %2439 = vst.msk [vmem:[#allocation3 + $0x90] sm:$0xff] %vm2420, %v2265
      %2440 = vst.msk [vmem:[#allocation3 + $0x98] sm:$0xff] %vm2420, %v2267
      %2441 = vst.msk [vmem:[#allocation3 + $0xa0] sm:$0xff] %vm2420, %v2269
      %2442 = vst.msk [vmem:[#allocation3 + $0xa8] sm:$0xff] %vm2420, %v2271
      %2443 = vst.msk [vmem:[#allocation3 + $0xb0] sm:$0xff] %vm2420, %v2273
      %2444 = vst.msk [vmem:[#allocation3 + $0xb8] sm:$0xff] %vm2420, %v2275
      %2445 = vst.msk [vmem:[#allocation3 + $0xc0] sm:$0xff] %vm2420, %v2277
      %2446 = vst.msk [vmem:[#allocation3 + $0xc8] sm:$0xff] %vm2420, %v2279
      %2447 = vst.msk [vmem:[#allocation3 + $0xd0] sm:$0xff] %vm2420, %v2281
      %2448 = vst.msk [vmem:[#allocation3 + $0xd8] sm:$0xff] %vm2420, %v2283
      %2449 = vst.msk [vmem:[#allocation3 + $0xe0] sm:$0xff] %vm2420, %v2285
      %2450 = vst.msk [vmem:[#allocation3 + $0xe8] sm:$0xff] %vm2420, %v2287
      %2451 = vst.msk [vmem:[#allocation3 + $0xf0] sm:$0xff] %vm2420, %v2289
      %2452 = vst.msk [vmem:[#allocation3 + $0xf8] sm:$0xff] %vm2420, %v2291
      %2453 = vst.msk [vmem:[#allocation3 + $0x100] sm:$0xff] %vm2420, %v2293
      %2454 = vst.msk [vmem:[#allocation3 + $0x108] sm:$0xff] %vm2420, %v2295
      %2455 = vst.msk [vmem:[#allocation3 + $0x110] sm:$0xff] %vm2420, %v2297
      %2456 = vst.msk [vmem:[#allocation3 + $0x118] sm:$0xff] %vm2420, %v2299
      %2457 = vst.msk [vmem:[#allocation3 + $0x120] sm:$0xff] %vm2420, %v2301
      %2458 = vst.msk [vmem:[#allocation3 + $0x128] sm:$0xff] %vm2420, %v2303
      %2459 = vst.msk [vmem:[#allocation3 + $0x130] sm:$0xff] %vm2420, %v2305
      %2460 = vst.msk [vmem:[#allocation3 + $0x138] sm:$0xff] %vm2420, %v2307
      %2461 = vst.msk [vmem:[#allocation3 + $0x140] sm:$0xff] %vm2420, %v2309
      %2462 = vst.msk [vmem:[#allocation3 + $0x148] sm:$0xff] %vm2420, %v2311
      %2463 = vst.msk [vmem:[#allocation3 + $0x150] sm:$0xff] %vm2420, %v2313
      %2464 = vst.msk [vmem:[#allocation3 + $0x158] sm:$0xff] %vm2420, %v2315
      %2465 = vst.msk [vmem:[#allocation3 + $0x160] sm:$0xff] %vm2420, %v2317
      %2466 = vst.msk [vmem:[#allocation3 + $0x168] sm:$0xff] %vm2420, %v2319
      %2467 = vst.msk [vmem:[#allocation3 + $0x170] sm:$0xff] %vm2420, %v2321
      %2468 = vst.msk [vmem:[#allocation3 + $0x178] sm:$0xff] %vm2420, %v2323
      %2469 = vst.msk [vmem:[#allocation3 + $0x180] sm:$0xff] %vm2420, %v2325
      %2470 = vst.msk [vmem:[#allocation3 + $0x188] sm:$0xff] %vm2420, %v2327
      %2471 = vst.msk [vmem:[#allocation3 + $0x190] sm:$0xff] %vm2420, %v2329
      %2472 = vst.msk [vmem:[#allocation3 + $0x198] sm:$0xff] %vm2420, %v2331
      %2473 = vst.msk [vmem:[#allocation3 + $0x1a0] sm:$0xff] %vm2420, %v2333
      %2474 = vst.msk [vmem:[#allocation3 + $0x1a8] sm:$0xff] %vm2420, %v2335
      %2475 = vst.msk [vmem:[#allocation3 + $0x1b0] sm:$0xff] %vm2420, %v2337
      %2476 = vst.msk [vmem:[#allocation3 + $0x1b8] sm:$0xff] %vm2420, %v2339
      %2477 = vst.msk [vmem:[#allocation3 + $0x1c0] sm:$0xff] %vm2420, %v2341
      %2478 = vst.msk [vmem:[#allocation3 + $0x1c8] sm:$0xff] %vm2420, %v2343
      %2479 = vst.msk [vmem:[#allocation3 + $0x1d0] sm:$0xff] %vm2420, %v2345
      %2480 = vst.msk [vmem:[#allocation3 + $0x1d8] sm:$0xff] %vm2420, %v2347
      %2481 = vst.msk [vmem:[#allocation3 + $0x1e0] sm:$0xff] %vm2420, %v2349
      %2482 = vst.msk [vmem:[#allocation3 + $0x1e8] sm:$0xff] %vm2420, %v2351
      %2483 = vst.msk [vmem:[#allocation3 + $0x1f0] sm:$0xff] %vm2420, %v2353
      %2484 = vst.msk [vmem:[#allocation3 + $0x1f8] sm:$0xff] %vm2420, %v2355
      %s2485 = scalar_lea.vmem [#allocation2], 48
      %v2486 = vld [vmem:[%s2485] sm:$0xff]
      %v2487 = vld [vmem:[%s2485 + $0x8] sm:$0xff]
      %v2488 = vld [vmem:[%s2485 + $0x18] sm:$0xff]
      %v2489 = vld [vmem:[%s2485 + $0x20] sm:$0xff]
      %v2490 = vld [vmem:[%s2485 + $0x30] sm:$0xff]
      %v2491 = vld [vmem:[%s2485 + $0x38] sm:$0xff]
      %v2492 = vld [vmem:[%s2485 + $0x48] sm:$0xff]
      %v2493 = vld [vmem:[%s2485 + $0x50] sm:$0xff]
      %v2494 = vld [vmem:[%s2485 + $0x60] sm:$0xff]
      %v2495 = vld [vmem:[%s2485 + $0x68] sm:$0xff]
      %v2496 = vld [vmem:[%s2485 + $0x78] sm:$0xff]
      %v2497 = vld [vmem:[%s2485 + $0x80] sm:$0xff]
      %v2498 = vld [vmem:[%s2485 + $0x90] sm:$0xff]
      %v2499 = vld [vmem:[%s2485 + $0x98] sm:$0xff]
      %v2500 = vld [vmem:[%s2485 + $0xa8] sm:$0xff]
      %v2501 = vld [vmem:[%s2485 + $0xb0] sm:$0xff]
      %v2502 = vld [vmem:[%s2485 + $0xc0] sm:$0xff]
      %v2503 = vld [vmem:[%s2485 + $0xc8] sm:$0xff]
      %v2504 = vld [vmem:[%s2485 + $0xd8] sm:$0xff]
      %v2505 = vld [vmem:[%s2485 + $0xe0] sm:$0xff]
      %v2506 = vld [vmem:[%s2485 + $0xf0] sm:$0xff]
      %v2507 = vld [vmem:[%s2485 + $0xf8] sm:$0xff]
      %v2508 = vld [vmem:[%s2485 + $0x108] sm:$0xff]
      %v2509 = vld [vmem:[%s2485 + $0x110] sm:$0xff]
      %v2510 = vld [vmem:[%s2485 + $0x120] sm:$0xff]
      %v2511 = vld [vmem:[%s2485 + $0x128] sm:$0xff]
      %v2512 = vld [vmem:[%s2485 + $0x138] sm:$0xff]
      %v2513 = vld [vmem:[%s2485 + $0x140] sm:$0xff]
      %v2514 = vld [vmem:[%s2485 + $0x150] sm:$0xff]
      %v2515 = vld [vmem:[%s2485 + $0x158] sm:$0xff]
      %v2516 = vld [vmem:[%s2485 + $0x168] sm:$0xff]
      %v2517 = vld [vmem:[%s2485 + $0x170] sm:$0xff]
      %v2518 = vld [vmem:[%s2485 + $0x1b0] sm:$0xff]
      %v2519 = vld [vmem:[%s2485 + $0x1b8] sm:$0xff]
      %v2520 = vld [vmem:[%s2485 + $0x1c8] sm:$0xff]
      %v2521 = vld [vmem:[%s2485 + $0x1d0] sm:$0xff]
      %v2522 = vld [vmem:[%s2485 + $0x1e0] sm:$0xff]
      %v2523 = vld [vmem:[%s2485 + $0x1e8] sm:$0xff]
      %v2524 = vld [vmem:[%s2485 + $0x1f8] sm:$0xff]
      %v2525 = vld [vmem:[%s2485 + $0x200] sm:$0xff]
      %v2526 = vld [vmem:[%s2485 + $0x210] sm:$0xff]
      %v2527 = vld [vmem:[%s2485 + $0x218] sm:$0xff]
      %v2528 = vld [vmem:[%s2485 + $0x228] sm:$0xff]
      %v2529 = vld [vmem:[%s2485 + $0x230] sm:$0xff]
      %v2530 = vld [vmem:[%s2485 + $0x240] sm:$0xff]
      %v2531 = vld [vmem:[%s2485 + $0x248] sm:$0xff]
      %v2532 = vld [vmem:[%s2485 + $0x258] sm:$0xff]
      %v2533 = vld [vmem:[%s2485 + $0x260] sm:$0xff]
      %v2534 = vld [vmem:[%s2485 + $0x270] sm:$0xff]
      %v2535 = vld [vmem:[%s2485 + $0x278] sm:$0xff]
      %v2536 = vld [vmem:[%s2485 + $0x288] sm:$0xff]
      %v2537 = vld [vmem:[%s2485 + $0x290] sm:$0xff]
      %v2538 = vld [vmem:[%s2485 + $0x2a0] sm:$0xff]
      %v2539 = vld [vmem:[%s2485 + $0x2a8] sm:$0xff]
      %v2540 = vld [vmem:[%s2485 + $0x2b8] sm:$0xff]
      %v2541 = vld [vmem:[%s2485 + $0x2c0] sm:$0xff]
      %v2542 = vld [vmem:[%s2485 + $0x2d0] sm:$0xff]
      %v2543 = vld [vmem:[%s2485 + $0x2d8] sm:$0xff]
      %v2544 = vld [vmem:[%s2485 + $0x2e8] sm:$0xff]
      %v2545 = vld [vmem:[%s2485 + $0x2f0] sm:$0xff]
      %v2546 = vld [vmem:[%s2485 + $0x300] sm:$0xff]
      %v2547 = vld [vmem:[%s2485 + $0x308] sm:$0xff]
      %v2548 = vld [vmem:[%s2485 + $0x318] sm:$0xff]
      %v2549 = vld [vmem:[%s2485 + $0x320] sm:$0xff]
      %2614 = vrot.lane.b32.xlu0 %v2486, 24
      %v2615 = vpop.permute.xlu0 %2614
      %2616 = vrot.lane.b32.xlu0 %v2487, 24
      %v2617 = vpop.permute.xlu0 %2616
      %2618 = vrot.lane.b32.xlu0 %v2488, 24
      %v2619 = vpop.permute.xlu0 %2618
      %2620 = vrot.lane.b32.xlu0 %v2489, 24
      %v2621 = vpop.permute.xlu0 %2620
      %2622 = vrot.lane.b32.xlu0 %v2490, 24
      %v2623 = vpop.permute.xlu0 %2622
      %2624 = vrot.lane.b32.xlu0 %v2491, 24
      %v2625 = vpop.permute.xlu0 %2624
      %2626 = vrot.lane.b32.xlu0 %v2492, 24
      %v2627 = vpop.permute.xlu0 %2626
      %2628 = vrot.lane.b32.xlu0 %v2493, 24
      %v2629 = vpop.permute.xlu0 %2628
      %2630 = vrot.lane.b32.xlu0 %v2494, 24
      %v2631 = vpop.permute.xlu0 %2630
      %2632 = vrot.lane.b32.xlu0 %v2495, 24
      %v2633 = vpop.permute.xlu0 %2632
      %2634 = vrot.lane.b32.xlu0 %v2496, 24
      %v2635 = vpop.permute.xlu0 %2634
      %2636 = vrot.lane.b32.xlu0 %v2497, 24
      %v2637 = vpop.permute.xlu0 %2636
      %2638 = vrot.lane.b32.xlu0 %v2498, 24
      %v2639 = vpop.permute.xlu0 %2638
      %2640 = vrot.lane.b32.xlu0 %v2499, 24
      %v2641 = vpop.permute.xlu0 %2640
      %2642 = vrot.lane.b32.xlu0 %v2500, 24
      %v2643 = vpop.permute.xlu0 %2642
      %2644 = vrot.lane.b32.xlu0 %v2501, 24
      %v2645 = vpop.permute.xlu0 %2644
      %2646 = vrot.lane.b32.xlu0 %v2502, 24
      %v2647 = vpop.permute.xlu0 %2646
      %2648 = vrot.lane.b32.xlu0 %v2503, 24
      %v2649 = vpop.permute.xlu0 %2648
      %2650 = vrot.lane.b32.xlu0 %v2504, 24
      %v2651 = vpop.permute.xlu0 %2650
      %2652 = vrot.lane.b32.xlu0 %v2505, 24
      %v2653 = vpop.permute.xlu0 %2652
      %2654 = vrot.lane.b32.xlu0 %v2506, 24
      %v2655 = vpop.permute.xlu0 %2654
      %2656 = vrot.lane.b32.xlu0 %v2507, 24
      %v2657 = vpop.permute.xlu0 %2656
      %2658 = vrot.lane.b32.xlu0 %v2508, 24
      %v2659 = vpop.permute.xlu0 %2658
      %2660 = vrot.lane.b32.xlu0 %v2509, 24
      %v2661 = vpop.permute.xlu0 %2660
      %2662 = vrot.lane.b32.xlu0 %v2510, 24
      %v2663 = vpop.permute.xlu0 %2662
      %2664 = vrot.lane.b32.xlu0 %v2511, 24
      %v2665 = vpop.permute.xlu0 %2664
      %2666 = vrot.lane.b32.xlu0 %v2512, 24
      %v2667 = vpop.permute.xlu0 %2666
      %2668 = vrot.lane.b32.xlu0 %v2513, 24
      %v2669 = vpop.permute.xlu0 %2668
      %2670 = vrot.lane.b32.xlu0 %v2514, 24
      %v2671 = vpop.permute.xlu0 %2670
      %2672 = vrot.lane.b32.xlu0 %v2515, 24
      %v2673 = vpop.permute.xlu0 %2672
      %2674 = vrot.lane.b32.xlu0 %v2516, 24
      %v2675 = vpop.permute.xlu0 %2674
      %2676 = vrot.lane.b32.xlu0 %v2517, 24
      %v2677 = vpop.permute.xlu0 %2676
      %2678 = vrot.lane.b32.xlu0 %v2518, 24
      %v2679 = vpop.permute.xlu0 %2678
      %2680 = vrot.lane.b32.xlu0 %v2519, 24
      %v2681 = vpop.permute.xlu0 %2680
      %2682 = vrot.lane.b32.xlu0 %v2520, 24
      %v2683 = vpop.permute.xlu0 %2682
      %2684 = vrot.lane.b32.xlu0 %v2521, 24
      %v2685 = vpop.permute.xlu0 %2684
      %2686 = vrot.lane.b32.xlu0 %v2522, 24
      %v2687 = vpop.permute.xlu0 %2686
      %2688 = vrot.lane.b32.xlu0 %v2523, 24
      %v2689 = vpop.permute.xlu0 %2688
      %2690 = vrot.lane.b32.xlu0 %v2524, 24
      %v2691 = vpop.permute.xlu0 %2690
      %2692 = vrot.lane.b32.xlu0 %v2525, 24
      %v2693 = vpop.permute.xlu0 %2692
      %2694 = vrot.lane.b32.xlu0 %v2526, 24
      %v2695 = vpop.permute.xlu0 %2694
      %2696 = vrot.lane.b32.xlu0 %v2527, 24
      %v2697 = vpop.permute.xlu0 %2696
      %2698 = vrot.lane.b32.xlu0 %v2528, 24
      %v2699 = vpop.permute.xlu0 %2698
      %2700 = vrot.lane.b32.xlu0 %v2529, 24
      %v2701 = vpop.permute.xlu0 %2700
      %2702 = vrot.lane.b32.xlu0 %v2530, 24
      %v2703 = vpop.permute.xlu0 %2702
      %2704 = vrot.lane.b32.xlu0 %v2531, 24
      %v2705 = vpop.permute.xlu0 %2704
      %2706 = vrot.lane.b32.xlu0 %v2532, 24
      %v2707 = vpop.permute.xlu0 %2706
      %2708 = vrot.lane.b32.xlu0 %v2533, 24
      %v2709 = vpop.permute.xlu0 %2708
      %2710 = vrot.lane.b32.xlu0 %v2534, 24
      %v2711 = vpop.permute.xlu0 %2710
      %2712 = vrot.lane.b32.xlu0 %v2535, 24
      %v2713 = vpop.permute.xlu0 %2712
      %2714 = vrot.lane.b32.xlu0 %v2536, 24
      %v2715 = vpop.permute.xlu0 %2714
      %2716 = vrot.lane.b32.xlu0 %v2537, 24
      %v2717 = vpop.permute.xlu0 %2716
      %2718 = vrot.lane.b32.xlu0 %v2538, 24
      %v2719 = vpop.permute.xlu0 %2718
      %2720 = vrot.lane.b32.xlu0 %v2539, 24
      %v2721 = vpop.permute.xlu0 %2720
      %2722 = vrot.lane.b32.xlu0 %v2540, 24
      %v2723 = vpop.permute.xlu0 %2722
      %2724 = vrot.lane.b32.xlu0 %v2541, 24
      %v2725 = vpop.permute.xlu0 %2724
      %2726 = vrot.lane.b32.xlu0 %v2542, 24
      %v2727 = vpop.permute.xlu0 %2726
      %2728 = vrot.lane.b32.xlu0 %v2543, 24
      %v2729 = vpop.permute.xlu0 %2728
      %2730 = vrot.lane.b32.xlu0 %v2544, 24
      %v2731 = vpop.permute.xlu0 %2730
      %2732 = vrot.lane.b32.xlu0 %v2545, 24
      %v2733 = vpop.permute.xlu0 %2732
      %2734 = vrot.lane.b32.xlu0 %v2546, 24
      %v2735 = vpop.permute.xlu0 %2734
      %2736 = vrot.lane.b32.xlu0 %v2547, 24
      %v2737 = vpop.permute.xlu0 %2736
      %2738 = vrot.lane.b32.xlu0 %v2548, 24
      %v2739 = vpop.permute.xlu0 %2738
      %2740 = vrot.lane.b32.xlu0 %v2549, 24
      %v2741 = vpop.permute.xlu0 %2740
      %vm2806 = vcmask 228544
      %2807 = vst.msk [vmem:[#allocation3] sm:$0xff] %vm2806, %v2615
      %2808 = vst.msk [vmem:[#allocation3 + $0x8] sm:$0xff] %vm2806, %v2617
      %2809 = vst.msk [vmem:[#allocation3 + $0x10] sm:$0xff] %vm2806, %v2619
      %2810 = vst.msk [vmem:[#allocation3 + $0x18] sm:$0xff] %vm2806, %v2621
      %2811 = vst.msk [vmem:[#allocation3 + $0x20] sm:$0xff] %vm2806, %v2623
      %2812 = vst.msk [vmem:[#allocation3 + $0x28] sm:$0xff] %vm2806, %v2625
      %2813 = vst.msk [vmem:[#allocation3 + $0x30] sm:$0xff] %vm2806, %v2627
      %2814 = vst.msk [vmem:[#allocation3 + $0x38] sm:$0xff] %vm2806, %v2629
      %2815 = vst.msk [vmem:[#allocation3 + $0x40] sm:$0xff] %vm2806, %v2631
      %2816 = vst.msk [vmem:[#allocation3 + $0x48] sm:$0xff] %vm2806, %v2633
      %2817 = vst.msk [vmem:[#allocation3 + $0x50] sm:$0xff] %vm2806, %v2635
      %2818 = vst.msk [vmem:[#allocation3 + $0x58] sm:$0xff] %vm2806, %v2637
      %2819 = vst.msk [vmem:[#allocation3 + $0x60] sm:$0xff] %vm2806, %v2639
      %2820 = vst.msk [vmem:[#allocation3 + $0x68] sm:$0xff] %vm2806, %v2641
      %2821 = vst.msk [vmem:[#allocation3 + $0x70] sm:$0xff] %vm2806, %v2643
      %2822 = vst.msk [vmem:[#allocation3 + $0x78] sm:$0xff] %vm2806, %v2645
      %2823 = vst.msk [vmem:[#allocation3 + $0x80] sm:$0xff] %vm2806, %v2647
      %2824 = vst.msk [vmem:[#allocation3 + $0x88] sm:$0xff] %vm2806, %v2649
      %2825 = vst.msk [vmem:[#allocation3 + $0x90] sm:$0xff] %vm2806, %v2651
      %2826 = vst.msk [vmem:[#allocation3 + $0x98] sm:$0xff] %vm2806, %v2653
      %2827 = vst.msk [vmem:[#allocation3 + $0xa0] sm:$0xff] %vm2806, %v2655
      %2828 = vst.msk [vmem:[#allocation3 + $0xa8] sm:$0xff] %vm2806, %v2657
      %2829 = vst.msk [vmem:[#allocation3 + $0xb0] sm:$0xff] %vm2806, %v2659
      %2830 = vst.msk [vmem:[#allocation3 + $0xb8] sm:$0xff] %vm2806, %v2661
      %2831 = vst.msk [vmem:[#allocation3 + $0xc0] sm:$0xff] %vm2806, %v2663
      %2832 = vst.msk [vmem:[#allocation3 + $0xc8] sm:$0xff] %vm2806, %v2665
      %2833 = vst.msk [vmem:[#allocation3 + $0xd0] sm:$0xff] %vm2806, %v2667
      %2834 = vst.msk [vmem:[#allocation3 + $0xd8] sm:$0xff] %vm2806, %v2669
      %2835 = vst.msk [vmem:[#allocation3 + $0xe0] sm:$0xff] %vm2806, %v2671
      %2836 = vst.msk [vmem:[#allocation3 + $0xe8] sm:$0xff] %vm2806, %v2673
      %2837 = vst.msk [vmem:[#allocation3 + $0xf0] sm:$0xff] %vm2806, %v2675
      %2838 = vst.msk [vmem:[#allocation3 + $0xf8] sm:$0xff] %vm2806, %v2677
      %2839 = vst.msk [vmem:[#allocation3 + $0x100] sm:$0xff] %vm2806, %v2679
      %2840 = vst.msk [vmem:[#allocation3 + $0x108] sm:$0xff] %vm2806, %v2681
      %2841 = vst.msk [vmem:[#allocation3 + $0x110] sm:$0xff] %vm2806, %v2683
      %2842 = vst.msk [vmem:[#allocation3 + $0x118] sm:$0xff] %vm2806, %v2685
      %2843 = vst.msk [vmem:[#allocation3 + $0x120] sm:$0xff] %vm2806, %v2687
      %2844 = vst.msk [vmem:[#allocation3 + $0x128] sm:$0xff] %vm2806, %v2689
      %2845 = vst.msk [vmem:[#allocation3 + $0x130] sm:$0xff] %vm2806, %v2691
      %2846 = vst.msk [vmem:[#allocation3 + $0x138] sm:$0xff] %vm2806, %v2693
      %2847 = vst.msk [vmem:[#allocation3 + $0x140] sm:$0xff] %vm2806, %v2695
      %2848 = vst.msk [vmem:[#allocation3 + $0x148] sm:$0xff] %vm2806, %v2697
      %2849 = vst.msk [vmem:[#allocation3 + $0x150] sm:$0xff] %vm2806, %v2699
      %2850 = vst.msk [vmem:[#allocation3 + $0x158] sm:$0xff] %vm2806, %v2701
      %2851 = vst.msk [vmem:[#allocation3 + $0x160] sm:$0xff] %vm2806, %v2703
      %2852 = vst.msk [vmem:[#allocation3 + $0x168] sm:$0xff] %vm2806, %v2705
      %2853 = vst.msk [vmem:[#allocation3 + $0x170] sm:$0xff] %vm2806, %v2707
      %2854 = vst.msk [vmem:[#allocation3 + $0x178] sm:$0xff] %vm2806, %v2709
      %2855 = vst.msk [vmem:[#allocation3 + $0x180] sm:$0xff] %vm2806, %v2711
      %2856 = vst.msk [vmem:[#allocation3 + $0x188] sm:$0xff] %vm2806, %v2713
      %2857 = vst.msk [vmem:[#allocation3 + $0x190] sm:$0xff] %vm2806, %v2715
      %2858 = vst.msk [vmem:[#allocation3 + $0x198] sm:$0xff] %vm2806, %v2717
      %2859 = vst.msk [vmem:[#allocation3 + $0x1a0] sm:$0xff] %vm2806, %v2719
      %2860 = vst.msk [vmem:[#allocation3 + $0x1a8] sm:$0xff] %vm2806, %v2721
      %2861 = vst.msk [vmem:[#allocation3 + $0x1b0] sm:$0xff] %vm2806, %v2723
      %2862 = vst.msk [vmem:[#allocation3 + $0x1b8] sm:$0xff] %vm2806, %v2725
      %2863 = vst.msk [vmem:[#allocation3 + $0x1c0] sm:$0xff] %vm2806, %v2727
      %2864 = vst.msk [vmem:[#allocation3 + $0x1c8] sm:$0xff] %vm2806, %v2729
      %2865 = vst.msk [vmem:[#allocation3 + $0x1d0] sm:$0xff] %vm2806, %v2731
      %2866 = vst.msk [vmem:[#allocation3 + $0x1d8] sm:$0xff] %vm2806, %v2733
      %2867 = vst.msk [vmem:[#allocation3 + $0x1e0] sm:$0xff] %vm2806, %v2735
      %2868 = vst.msk [vmem:[#allocation3 + $0x1e8] sm:$0xff] %vm2806, %v2737
      %2869 = vst.msk [vmem:[#allocation3 + $0x1f0] sm:$0xff] %vm2806, %v2739
      %2870 = vst.msk [vmem:[#allocation3 + $0x1f8] sm:$0xff] %vm2806, %v2741
      %v2871 = vld [vmem:[%s2485 + $0x1] sm:$0xff]
      %v2872 = vld [vmem:[%s2485 + $0x9] sm:$0xff]
      %v2873 = vld [vmem:[%s2485 + $0x19] sm:$0xff]
      %v2874 = vld [vmem:[%s2485 + $0x21] sm:$0xff]
      %v2875 = vld [vmem:[%s2485 + $0x31] sm:$0xff]
      %v2876 = vld [vmem:[%s2485 + $0x39] sm:$0xff]
      %v2877 = vld [vmem:[%s2485 + $0x49] sm:$0xff]
      %v2878 = vld [vmem:[%s2485 + $0x51] sm:$0xff]
      %v2879 = vld [vmem:[%s2485 + $0x61] sm:$0xff]
      %v2880 = vld [vmem:[%s2485 + $0x69] sm:$0xff]
      %v2881 = vld [vmem:[%s2485 + $0x79] sm:$0xff]
      %v2882 = vld [vmem:[%s2485 + $0x81] sm:$0xff]
      %v2883 = vld [vmem:[%s2485 + $0x91] sm:$0xff]
      %v2884 = vld [vmem:[%s2485 + $0x99] sm:$0xff]
      %v2885 = vld [vmem:[%s2485 + $0xa9] sm:$0xff]
      %v2886 = vld [vmem:[%s2485 + $0xb1] sm:$0xff]
      %v2887 = vld [vmem:[%s2485 + $0xc1] sm:$0xff]
      %v2888 = vld [vmem:[%s2485 + $0xc9] sm:$0xff]
      %v2889 = vld [vmem:[%s2485 + $0xd9] sm:$0xff]
      %v2890 = vld [vmem:[%s2485 + $0xe1] sm:$0xff]
      %v2891 = vld [vmem:[%s2485 + $0xf1] sm:$0xff]
      %v2892 = vld [vmem:[%s2485 + $0xf9] sm:$0xff]
      %v2893 = vld [vmem:[%s2485 + $0x109] sm:$0xff]
      %v2894 = vld [vmem:[%s2485 + $0x111] sm:$0xff]
      %v2895 = vld [vmem:[%s2485 + $0x121] sm:$0xff]
      %v2896 = vld [vmem:[%s2485 + $0x129] sm:$0xff]
      %v2897 = vld [vmem:[%s2485 + $0x139] sm:$0xff]
      %v2898 = vld [vmem:[%s2485 + $0x141] sm:$0xff]
      %v2899 = vld [vmem:[%s2485 + $0x151] sm:$0xff]
      %v2900 = vld [vmem:[%s2485 + $0x159] sm:$0xff]
      %v2901 = vld [vmem:[%s2485 + $0x169] sm:$0xff]
      %v2902 = vld [vmem:[%s2485 + $0x171] sm:$0xff]
      %v2903 = vld [vmem:[%s2485 + $0x1b1] sm:$0xff]
      %v2904 = vld [vmem:[%s2485 + $0x1b9] sm:$0xff]
      %v2905 = vld [vmem:[%s2485 + $0x1c9] sm:$0xff]
      %v2906 = vld [vmem:[%s2485 + $0x1d1] sm:$0xff]
      %v2907 = vld [vmem:[%s2485 + $0x1e1] sm:$0xff]
      %v2908 = vld [vmem:[%s2485 + $0x1e9] sm:$0xff]
      %v2909 = vld [vmem:[%s2485 + $0x1f9] sm:$0xff]
      %v2910 = vld [vmem:[%s2485 + $0x201] sm:$0xff]
      %v2911 = vld [vmem:[%s2485 + $0x211] sm:$0xff]
      %v2912 = vld [vmem:[%s2485 + $0x219] sm:$0xff]
      %v2913 = vld [vmem:[%s2485 + $0x229] sm:$0xff]
      %v2914 = vld [vmem:[%s2485 + $0x231] sm:$0xff]
      %v2915 = vld [vmem:[%s2485 + $0x241] sm:$0xff]
      %v2916 = vld [vmem:[%s2485 + $0x249] sm:$0xff]
      %v2917 = vld [vmem:[%s2485 + $0x259] sm:$0xff]
      %v2918 = vld [vmem:[%s2485 + $0x261] sm:$0xff]
      %v2919 = vld [vmem:[%s2485 + $0x271] sm:$0xff]
      %v2920 = vld [vmem:[%s2485 + $0x279] sm:$0xff]
      %v2921 = vld [vmem:[%s2485 + $0x289] sm:$0xff]
      %v2922 = vld [vmem:[%s2485 + $0x291] sm:$0xff]
      %v2923 = vld [vmem:[%s2485 + $0x2a1] sm:$0xff]
      %v2924 = vld [vmem:[%s2485 + $0x2a9] sm:$0xff]
      %v2925 = vld [vmem:[%s2485 + $0x2b9] sm:$0xff]
      %v2926 = vld [vmem:[%s2485 + $0x2c1] sm:$0xff]
      %v2927 = vld [vmem:[%s2485 + $0x2d1] sm:$0xff]
      %v2928 = vld [vmem:[%s2485 + $0x2d9] sm:$0xff]
      %v2929 = vld [vmem:[%s2485 + $0x2e9] sm:$0xff]
      %v2930 = vld [vmem:[%s2485 + $0x2f1] sm:$0xff]
      %v2931 = vld [vmem:[%s2485 + $0x301] sm:$0xff]
      %v2932 = vld [vmem:[%s2485 + $0x309] sm:$0xff]
      %v2933 = vld [vmem:[%s2485 + $0x319] sm:$0xff]
      %v2934 = vld [vmem:[%s2485 + $0x321] sm:$0xff]
      %2999 = vrot.lane.b32.xlu0 %v2871, 28
      %v3000 = vpop.permute.xlu0 %2999
      %3001 = vrot.lane.b32.xlu0 %v2872, 28
      %v3002 = vpop.permute.xlu0 %3001
      %3003 = vrot.lane.b32.xlu0 %v2873, 28
      %v3004 = vpop.permute.xlu0 %3003
      %3005 = vrot.lane.b32.xlu0 %v2874, 28
      %v3006 = vpop.permute.xlu0 %3005
      %3007 = vrot.lane.b32.xlu0 %v2875, 28
      %v3008 = vpop.permute.xlu0 %3007
      %3009 = vrot.lane.b32.xlu0 %v2876, 28
      %v3010 = vpop.permute.xlu0 %3009
      %3011 = vrot.lane.b32.xlu0 %v2877, 28
      %v3012 = vpop.permute.xlu0 %3011
      %3013 = vrot.lane.b32.xlu0 %v2878, 28
      %v3014 = vpop.permute.xlu0 %3013
      %3015 = vrot.lane.b32.xlu0 %v2879, 28
      %v3016 = vpop.permute.xlu0 %3015
      %3017 = vrot.lane.b32.xlu0 %v2880, 28
      %v3018 = vpop.permute.xlu0 %3017
      %3019 = vrot.lane.b32.xlu0 %v2881, 28
      %v3020 = vpop.permute.xlu0 %3019
      %3021 = vrot.lane.b32.xlu0 %v2882, 28
      %v3022 = vpop.permute.xlu0 %3021
      %3023 = vrot.lane.b32.xlu0 %v2883, 28
      %v3024 = vpop.permute.xlu0 %3023
      %3025 = vrot.lane.b32.xlu0 %v2884, 28
      %v3026 = vpop.permute.xlu0 %3025
      %3027 = vrot.lane.b32.xlu0 %v2885, 28
      %v3028 = vpop.permute.xlu0 %3027
      %3029 = vrot.lane.b32.xlu0 %v2886, 28
      %v3030 = vpop.permute.xlu0 %3029
      %3031 = vrot.lane.b32.xlu0 %v2887, 28
      %v3032 = vpop.permute.xlu0 %3031
      %3033 = vrot.lane.b32.xlu0 %v2888, 28
      %v3034 = vpop.permute.xlu0 %3033
      %3035 = vrot.lane.b32.xlu0 %v2889, 28
      %v3036 = vpop.permute.xlu0 %3035
      %3037 = vrot.lane.b32.xlu0 %v2890, 28
      %v3038 = vpop.permute.xlu0 %3037
      %3039 = vrot.lane.b32.xlu0 %v2891, 28
      %v3040 = vpop.permute.xlu0 %3039
      %3041 = vrot.lane.b32.xlu0 %v2892, 28
      %v3042 = vpop.permute.xlu0 %3041
      %3043 = vrot.lane.b32.xlu0 %v2893, 28
      %v3044 = vpop.permute.xlu0 %3043
      %3045 = vrot.lane.b32.xlu0 %v2894, 28
      %v3046 = vpop.permute.xlu0 %3045
      %3047 = vrot.lane.b32.xlu0 %v2895, 28
      %v3048 = vpop.permute.xlu0 %3047
      %3049 = vrot.lane.b32.xlu0 %v2896, 28
      %v3050 = vpop.permute.xlu0 %3049
      %3051 = vrot.lane.b32.xlu0 %v2897, 28
      %v3052 = vpop.permute.xlu0 %3051
      %3053 = vrot.lane.b32.xlu0 %v2898, 28
      %v3054 = vpop.permute.xlu0 %3053
      %3055 = vrot.lane.b32.xlu0 %v2899, 28
      %v3056 = vpop.permute.xlu0 %3055
      %3057 = vrot.lane.b32.xlu0 %v2900, 28
      %v3058 = vpop.permute.xlu0 %3057
      %3059 = vrot.lane.b32.xlu0 %v2901, 28
      %v3060 = vpop.permute.xlu0 %3059
      %3061 = vrot.lane.b32.xlu0 %v2902, 28
      %v3062 = vpop.permute.xlu0 %3061
      %3063 = vrot.lane.b32.xlu0 %v2903, 28
      %v3064 = vpop.permute.xlu0 %3063
      %3065 = vrot.lane.b32.xlu0 %v2904, 28
      %v3066 = vpop.permute.xlu0 %3065
      %3067 = vrot.lane.b32.xlu0 %v2905, 28
      %v3068 = vpop.permute.xlu0 %3067
      %3069 = vrot.lane.b32.xlu0 %v2906, 28
      %v3070 = vpop.permute.xlu0 %3069
      %3071 = vrot.lane.b32.xlu0 %v2907, 28
      %v3072 = vpop.permute.xlu0 %3071
      %3073 = vrot.lane.b32.xlu0 %v2908, 28
      %v3074 = vpop.permute.xlu0 %3073
      %3075 = vrot.lane.b32.xlu0 %v2909, 28
      %v3076 = vpop.permute.xlu0 %3075
      %3077 = vrot.lane.b32.xlu0 %v2910, 28
      %v3078 = vpop.permute.xlu0 %3077
      %3079 = vrot.lane.b32.xlu0 %v2911, 28
      %v3080 = vpop.permute.xlu0 %3079
      %3081 = vrot.lane.b32.xlu0 %v2912, 28
      %v3082 = vpop.permute.xlu0 %3081
      %3083 = vrot.lane.b32.xlu0 %v2913, 28
      %v3084 = vpop.permute.xlu0 %3083
      %3085 = vrot.lane.b32.xlu0 %v2914, 28
      %v3086 = vpop.permute.xlu0 %3085
      %3087 = vrot.lane.b32.xlu0 %v2915, 28
      %v3088 = vpop.permute.xlu0 %3087
      %3089 = vrot.lane.b32.xlu0 %v2916, 28
      %v3090 = vpop.permute.xlu0 %3089
      %3091 = vrot.lane.b32.xlu0 %v2917, 28
      %v3092 = vpop.permute.xlu0 %3091
      %3093 = vrot.lane.b32.xlu0 %v2918, 28
      %v3094 = vpop.permute.xlu0 %3093
      %3095 = vrot.lane.b32.xlu0 %v2919, 28
      %v3096 = vpop.permute.xlu0 %3095
      %3097 = vrot.lane.b32.xlu0 %v2920, 28
      %v3098 = vpop.permute.xlu0 %3097
      %3099 = vrot.lane.b32.xlu0 %v2921, 28
      %v3100 = vpop.permute.xlu0 %3099
      %3101 = vrot.lane.b32.xlu0 %v2922, 28
      %v3102 = vpop.permute.xlu0 %3101
      %3103 = vrot.lane.b32.xlu0 %v2923, 28
      %v3104 = vpop.permute.xlu0 %3103
      %3105 = vrot.lane.b32.xlu0 %v2924, 28
      %v3106 = vpop.permute.xlu0 %3105
      %3107 = vrot.lane.b32.xlu0 %v2925, 28
      %v3108 = vpop.permute.xlu0 %3107
      %3109 = vrot.lane.b32.xlu0 %v2926, 28
      %v3110 = vpop.permute.xlu0 %3109
      %3111 = vrot.lane.b32.xlu0 %v2927, 28
      %v3112 = vpop.permute.xlu0 %3111
      %3113 = vrot.lane.b32.xlu0 %v2928, 28
      %v3114 = vpop.permute.xlu0 %3113
      %3115 = vrot.lane.b32.xlu0 %v2929, 28
      %v3116 = vpop.permute.xlu0 %3115
      %3117 = vrot.lane.b32.xlu0 %v2930, 28
      %v3118 = vpop.permute.xlu0 %3117
      %3119 = vrot.lane.b32.xlu0 %v2931, 28
      %v3120 = vpop.permute.xlu0 %3119
      %3121 = vrot.lane.b32.xlu0 %v2932, 28
      %v3122 = vpop.permute.xlu0 %3121
      %3123 = vrot.lane.b32.xlu0 %v2933, 28
      %v3124 = vpop.permute.xlu0 %3123
      %3125 = vrot.lane.b32.xlu0 %v2934, 28
      %v3126 = vpop.permute.xlu0 %3125
      %vm3191 = vcmask 261344
      %3192 = vst.msk [vmem:[#allocation3] sm:$0xff] %vm3191, %v3000
      %3193 = vst.msk [vmem:[#allocation3 + $0x8] sm:$0xff] %vm3191, %v3002
      %3194 = vst.msk [vmem:[#allocation3 + $0x10] sm:$0xff] %vm3191, %v3004
      %3195 = vst.msk [vmem:[#allocation3 + $0x18] sm:$0xff] %vm3191, %v3006
      %3196 = vst.msk [vmem:[#allocation3 + $0x20] sm:$0xff] %vm3191, %v3008
      %3197 = vst.msk [vmem:[#allocation3 + $0x28] sm:$0xff] %vm3191, %v3010
      %3198 = vst.msk [vmem:[#allocation3 + $0x30] sm:$0xff] %vm3191, %v3012
      %3199 = vst.msk [vmem:[#allocation3 + $0x38] sm:$0xff] %vm3191, %v3014
      %3200 = vst.msk [vmem:[#allocation3 + $0x40] sm:$0xff] %vm3191, %v3016
      %3201 = vst.msk [vmem:[#allocation3 + $0x48] sm:$0xff] %vm3191, %v3018
      %3202 = vst.msk [vmem:[#allocation3 + $0x50] sm:$0xff] %vm3191, %v3020
      %3203 = vst.msk [vmem:[#allocation3 + $0x58] sm:$0xff] %vm3191, %v3022
      %3204 = vst.msk [vmem:[#allocation3 + $0x60] sm:$0xff] %vm3191, %v3024
      %3205 = vst.msk [vmem:[#allocation3 + $0x68] sm:$0xff] %vm3191, %v3026
      %3206 = vst.msk [vmem:[#allocation3 + $0x70] sm:$0xff] %vm3191, %v3028
      %3207 = vst.msk [vmem:[#allocation3 + $0x78] sm:$0xff] %vm3191, %v3030
      %3208 = vst.msk [vmem:[#allocation3 + $0x80] sm:$0xff] %vm3191, %v3032
      %3209 = vst.msk [vmem:[#allocation3 + $0x88] sm:$0xff] %vm3191, %v3034
      %3210 = vst.msk [vmem:[#allocation3 + $0x90] sm:$0xff] %vm3191, %v3036
      %3211 = vst.msk [vmem:[#allocation3 + $0x98] sm:$0xff] %vm3191, %v3038
      %3212 = vst.msk [vmem:[#allocation3 + $0xa0] sm:$0xff] %vm3191, %v3040
      %3213 = vst.msk [vmem:[#allocation3 + $0xa8] sm:$0xff] %vm3191, %v3042
      %3214 = vst.msk [vmem:[#allocation3 + $0xb0] sm:$0xff] %vm3191, %v3044
      %3215 = vst.msk [vmem:[#allocation3 + $0xb8] sm:$0xff] %vm3191, %v3046
      %3216 = vst.msk [vmem:[#allocation3 + $0xc0] sm:$0xff] %vm3191, %v3048
      %3217 = vst.msk [vmem:[#allocation3 + $0xc8] sm:$0xff] %vm3191, %v3050
      %3218 = vst.msk [vmem:[#allocation3 + $0xd0] sm:$0xff] %vm3191, %v3052
      %3219 = vst.msk [vmem:[#allocation3 + $0xd8] sm:$0xff] %vm3191, %v3054
      %3220 = vst.msk [vmem:[#allocation3 + $0xe0] sm:$0xff] %vm3191, %v3056
      %3221 = vst.msk [vmem:[#allocation3 + $0xe8] sm:$0xff] %vm3191, %v3058
      %3222 = vst.msk [vmem:[#allocation3 + $0xf0] sm:$0xff] %vm3191, %v3060
      %3223 = vst.msk [vmem:[#allocation3 + $0xf8] sm:$0xff] %vm3191, %v3062
      %3224 = vst.msk [vmem:[#allocation3 + $0x100] sm:$0xff] %vm3191, %v3064
      %3225 = vst.msk [vmem:[#allocation3 + $0x108] sm:$0xff] %vm3191, %v3066
      %3226 = vst.msk [vmem:[#allocation3 + $0x110] sm:$0xff] %vm3191, %v3068
      %3227 = vst.msk [vmem:[#allocation3 + $0x118] sm:$0xff] %vm3191, %v3070
      %3228 = vst.msk [vmem:[#allocation3 + $0x120] sm:$0xff] %vm3191, %v3072
      %3229 = vst.msk [vmem:[#allocation3 + $0x128] sm:$0xff] %vm3191, %v3074
      %3230 = vst.msk [vmem:[#allocation3 + $0x130] sm:$0xff] %vm3191, %v3076
      %3231 = vst.msk [vmem:[#allocation3 + $0x138] sm:$0xff] %vm3191, %v3078
      %3232 = vst.msk [vmem:[#allocation3 + $0x140] sm:$0xff] %vm3191, %v3080
      %3233 = vst.msk [vmem:[#allocation3 + $0x148] sm:$0xff] %vm3191, %v3082
      %3234 = vst.msk [vmem:[#allocation3 + $0x150] sm:$0xff] %vm3191, %v3084
      %3235 = vst.msk [vmem:[#allocation3 + $0x158] sm:$0xff] %vm3191, %v3086
      %3236 = vst.msk [vmem:[#allocation3 + $0x160] sm:$0xff] %vm3191, %v3088
      %3237 = vst.msk [vmem:[#allocation3 + $0x168] sm:$0xff] %vm3191, %v3090
      %3238 = vst.msk [vmem:[#allocation3 + $0x170] sm:$0xff] %vm3191, %v3092
      %3239 = vst.msk [vmem:[#allocation3 + $0x178] sm:$0xff] %vm3191, %v3094
      %3240 = vst.msk [vmem:[#allocation3 + $0x180] sm:$0xff] %vm3191, %v3096
      %3241 = vst.msk [vmem:[#allocation3 + $0x188] sm:$0xff] %vm3191, %v3098
      %3242 = vst.msk [vmem:[#allocation3 + $0x190] sm:$0xff] %vm3191, %v3100
      %3243 = vst.msk [vmem:[#allocation3 + $0x198] sm:$0xff] %vm3191, %v3102
      %3244 = vst.msk [vmem:[#allocation3 + $0x1a0] sm:$0xff] %vm3191, %v3104
      %3245 = vst.msk [vmem:[#allocation3 + $0x1a8] sm:$0xff] %vm3191, %v3106
      %3246 = vst.msk [vmem:[#allocation3 + $0x1b0] sm:$0xff] %vm3191, %v3108
      %3247 = vst.msk [vmem:[#allocation3 + $0x1b8] sm:$0xff] %vm3191, %v3110
      %3248 = vst.msk [vmem:[#allocation3 + $0x1c0] sm:$0xff] %vm3191, %v3112
      %3249 = vst.msk [vmem:[#allocation3 + $0x1c8] sm:$0xff] %vm3191, %v3114
      %3250 = vst.msk [vmem:[#allocation3 + $0x1d0] sm:$0xff] %vm3191, %v3116
      %3251 = vst.msk [vmem:[#allocation3 + $0x1d8] sm:$0xff] %vm3191, %v3118
      %3252 = vst.msk [vmem:[#allocation3 + $0x1e0] sm:$0xff] %vm3191, %v3120
      %3253 = vst.msk [vmem:[#allocation3 + $0x1e8] sm:$0xff] %vm3191, %v3122
      %3254 = vst.msk [vmem:[#allocation3 + $0x1f0] sm:$0xff] %vm3191, %v3124
      %3255 = vst.msk [vmem:[#allocation3 + $0x1f8] sm:$0xff] %vm3191, %v3126
      %v3256 = vld [vmem:[%s2485 + $0x2] sm:$0xff]
      %v3257 = vld [vmem:[%s2485 + $0xa] sm:$0xff]
      %v3258 = vld [vmem:[%s2485 + $0x1a] sm:$0xff]
      %v3259 = vld [vmem:[%s2485 + $0x22] sm:$0xff]
      %v3260 = vld [vmem:[%s2485 + $0x32] sm:$0xff]
      %v3261 = vld [vmem:[%s2485 + $0x3a] sm:$0xff]
      %v3262 = vld [vmem:[%s2485 + $0x4a] sm:$0xff]
      %v3263 = vld [vmem:[%s2485 + $0x52] sm:$0xff]
      %v3264 = vld [vmem:[%s2485 + $0x62] sm:$0xff]
      %v3265 = vld [vmem:[%s2485 + $0x6a] sm:$0xff]
      %v3266 = vld [vmem:[%s2485 + $0x7a] sm:$0xff]
      %v3267 = vld [vmem:[%s2485 + $0x82] sm:$0xff]
      %v3268 = vld [vmem:[%s2485 + $0x92] sm:$0xff]
      %v3269 = vld [vmem:[%s2485 + $0x9a] sm:$0xff]
      %v3270 = vld [vmem:[%s2485 + $0xaa] sm:$0xff]
      %v3271 = vld [vmem:[%s2485 + $0xb2] sm:$0xff]
      %v3272 = vld [vmem:[%s2485 + $0xc2] sm:$0xff]
      %v3273 = vld [vmem:[%s2485 + $0xca] sm:$0xff]
      %v3274 = vld [vmem:[%s2485 + $0xda] sm:$0xff]
      %v3275 = vld [vmem:[%s2485 + $0xe2] sm:$0xff]
      %v3276 = vld [vmem:[%s2485 + $0xf2] sm:$0xff]
      %v3277 = vld [vmem:[%s2485 + $0xfa] sm:$0xff]
      %v3278 = vld [vmem:[%s2485 + $0x10a] sm:$0xff]
      %v3279 = vld [vmem:[%s2485 + $0x112] sm:$0xff]
      %v3280 = vld [vmem:[%s2485 + $0x122] sm:$0xff]
      %v3281 = vld [vmem:[%s2485 + $0x12a] sm:$0xff]
      %v3282 = vld [vmem:[%s2485 + $0x13a] sm:$0xff]
      %v3283 = vld [vmem:[%s2485 + $0x142] sm:$0xff]
      %v3284 = vld [vmem:[%s2485 + $0x152] sm:$0xff]
      %v3285 = vld [vmem:[%s2485 + $0x15a] sm:$0xff]
      %v3286 = vld [vmem:[%s2485 + $0x16a] sm:$0xff]
      %v3287 = vld [vmem:[%s2485 + $0x172] sm:$0xff]
      %v3288 = vld [vmem:[%s2485 + $0x1b2] sm:$0xff]
      %v3289 = vld [vmem:[%s2485 + $0x1ba] sm:$0xff]
      %v3290 = vld [vmem:[%s2485 + $0x1ca] sm:$0xff]
      %v3291 = vld [vmem:[%s2485 + $0x1d2] sm:$0xff]
      %v3292 = vld [vmem:[%s2485 + $0x1e2] sm:$0xff]
      %v3293 = vld [vmem:[%s2485 + $0x1ea] sm:$0xff]
      %v3294 = vld [vmem:[%s2485 + $0x1fa] sm:$0xff]
      %v3295 = vld [vmem:[%s2485 + $0x202] sm:$0xff]
      %v3296 = vld [vmem:[%s2485 + $0x212] sm:$0xff]
      %v3297 = vld [vmem:[%s2485 + $0x21a] sm:$0xff]
      %v3298 = vld [vmem:[%s2485 + $0x22a] sm:$0xff]
      %v3299 = vld [vmem:[%s2485 + $0x232] sm:$0xff]
      %v3300 = vld [vmem:[%s2485 + $0x242] sm:$0xff]
      %v3301 = vld [vmem:[%s2485 + $0x24a] sm:$0xff]
      %v3302 = vld [vmem:[%s2485 + $0x25a] sm:$0xff]
      %v3303 = vld [vmem:[%s2485 + $0x262] sm:$0xff]
      %v3304 = vld [vmem:[%s2485 + $0x272] sm:$0xff]
      %v3305 = vld [vmem:[%s2485 + $0x27a] sm:$0xff]
      %v3306 = vld [vmem:[%s2485 + $0x28a] sm:$0xff]
      %v3307 = vld [vmem:[%s2485 + $0x292] sm:$0xff]
      %v3308 = vld [vmem:[%s2485 + $0x2a2] sm:$0xff]
      %v3309 = vld [vmem:[%s2485 + $0x2aa] sm:$0xff]
      %v3310 = vld [vmem:[%s2485 + $0x2ba] sm:$0xff]
      %v3311 = vld [vmem:[%s2485 + $0x2c2] sm:$0xff]
      %v3312 = vld [vmem:[%s2485 + $0x2d2] sm:$0xff]
      %v3313 = vld [vmem:[%s2485 + $0x2da] sm:$0xff]
      %v3314 = vld [vmem:[%s2485 + $0x2ea] sm:$0xff]
      %v3315 = vld [vmem:[%s2485 + $0x2f2] sm:$0xff]
      %v3316 = vld [vmem:[%s2485 + $0x302] sm:$0xff]
      %v3317 = vld [vmem:[%s2485 + $0x30a] sm:$0xff]
      %v3318 = vld [vmem:[%s2485 + $0x31a] sm:$0xff]
      %v3319 = vld [vmem:[%s2485 + $0x322] sm:$0xff]
      %3384 = vrot.lane.b32.xlu0 %v3256, 32
      %v3385 = vpop.permute.xlu0 %3384
      %3386 = vrot.lane.b32.xlu0 %v3257, 32
      %v3387 = vpop.permute.xlu0 %3386
      %3388 = vrot.lane.b32.xlu0 %v3258, 32
      %v3389 = vpop.permute.xlu0 %3388
      %3390 = vrot.lane.b32.xlu0 %v3259, 32
      %v3391 = vpop.permute.xlu0 %3390
      %3392 = vrot.lane.b32.xlu0 %v3260, 32
      %v3393 = vpop.permute.xlu0 %3392
      %3394 = vrot.lane.b32.xlu0 %v3261, 32
      %v3395 = vpop.permute.xlu0 %3394
      %3396 = vrot.lane.b32.xlu0 %v3262, 32
      %v3397 = vpop.permute.xlu0 %3396
      %3398 = vrot.lane.b32.xlu0 %v3263, 32
      %v3399 = vpop.permute.xlu0 %3398
      %3400 = vrot.lane.b32.xlu0 %v3264, 32
      %v3401 = vpop.permute.xlu0 %3400
      %3402 = vrot.lane.b32.xlu0 %v3265, 32
      %v3403 = vpop.permute.xlu0 %3402
      %3404 = vrot.lane.b32.xlu0 %v3266, 32
      %v3405 = vpop.permute.xlu0 %3404
      %3406 = vrot.lane.b32.xlu0 %v3267, 32
      %v3407 = vpop.permute.xlu0 %3406
      %3408 = vrot.lane.b32.xlu0 %v3268, 32
      %v3409 = vpop.permute.xlu0 %3408
      %3410 = vrot.lane.b32.xlu0 %v3269, 32
      %v3411 = vpop.permute.xlu0 %3410
      %3412 = vrot.lane.b32.xlu0 %v3270, 32
      %v3413 = vpop.permute.xlu0 %3412
      %3414 = vrot.lane.b32.xlu0 %v3271, 32
      %v3415 = vpop.permute.xlu0 %3414
      %3416 = vrot.lane.b32.xlu0 %v3272, 32
      %v3417 = vpop.permute.xlu0 %3416
      %3418 = vrot.lane.b32.xlu0 %v3273, 32
      %v3419 = vpop.permute.xlu0 %3418
      %3420 = vrot.lane.b32.xlu0 %v3274, 32
      %v3421 = vpop.permute.xlu0 %3420
      %3422 = vrot.lane.b32.xlu0 %v3275, 32
      %v3423 = vpop.permute.xlu0 %3422
      %3424 = vrot.lane.b32.xlu0 %v3276, 32
      %v3425 = vpop.permute.xlu0 %3424
      %3426 = vrot.lane.b32.xlu0 %v3277, 32
      %v3427 = vpop.permute.xlu0 %3426
      %3428 = vrot.lane.b32.xlu0 %v3278, 32
      %v3429 = vpop.permute.xlu0 %3428
      %3430 = vrot.lane.b32.xlu0 %v3279, 32
      %v3431 = vpop.permute.xlu0 %3430
      %3432 = vrot.lane.b32.xlu0 %v3280, 32
      %v3433 = vpop.permute.xlu0 %3432
      %3434 = vrot.lane.b32.xlu0 %v3281, 32
      %v3435 = vpop.permute.xlu0 %3434
      %3436 = vrot.lane.b32.xlu0 %v3282, 32
      %v3437 = vpop.permute.xlu0 %3436
      %3438 = vrot.lane.b32.xlu0 %v3283, 32
      %v3439 = vpop.permute.xlu0 %3438
      %3440 = vrot.lane.b32.xlu0 %v3284, 32
      %v3441 = vpop.permute.xlu0 %3440
      %3442 = vrot.lane.b32.xlu0 %v3285, 32
      %v3443 = vpop.permute.xlu0 %3442
      %3444 = vrot.lane.b32.xlu0 %v3286, 32
      %v3445 = vpop.permute.xlu0 %3444
      %3446 = vrot.lane.b32.xlu0 %v3287, 32
      %v3447 = vpop.permute.xlu0 %3446
      %3448 = vrot.lane.b32.xlu0 %v3288, 32
      %v3449 = vpop.permute.xlu0 %3448
      %3450 = vrot.lane.b32.xlu0 %v3289, 32
      %v3451 = vpop.permute.xlu0 %3450
      %3452 = vrot.lane.b32.xlu0 %v3290, 32
      %v3453 = vpop.permute.xlu0 %3452
      %3454 = vrot.lane.b32.xlu0 %v3291, 32
      %v3455 = vpop.permute.xlu0 %3454
      %3456 = vrot.lane.b32.xlu0 %v3292, 32
      %v3457 = vpop.permute.xlu0 %3456
      %3458 = vrot.lane.b32.xlu0 %v3293, 32
      %v3459 = vpop.permute.xlu0 %3458
      %3460 = vrot.lane.b32.xlu0 %v3294, 32
      %v3461 = vpop.permute.xlu0 %3460
      %3462 = vrot.lane.b32.xlu0 %v3295, 32
      %v3463 = vpop.permute.xlu0 %3462
      %3464 = vrot.lane.b32.xlu0 %v3296, 32
      %v3465 = vpop.permute.xlu0 %3464
      %3466 = vrot.lane.b32.xlu0 %v3297, 32
      %v3467 = vpop.permute.xlu0 %3466
      %3468 = vrot.lane.b32.xlu0 %v3298, 32
      %v3469 = vpop.permute.xlu0 %3468
      %3470 = vrot.lane.b32.xlu0 %v3299, 32
      %v3471 = vpop.permute.xlu0 %3470
      %3472 = vrot.lane.b32.xlu0 %v3300, 32
      %v3473 = vpop.permute.xlu0 %3472
      %3474 = vrot.lane.b32.xlu0 %v3301, 32
      %v3475 = vpop.permute.xlu0 %3474
      %3476 = vrot.lane.b32.xlu0 %v3302, 32
      %v3477 = vpop.permute.xlu0 %3476
      %3478 = vrot.lane.b32.xlu0 %v3303, 32
      %v3479 = vpop.permute.xlu0 %3478
      %3480 = vrot.lane.b32.xlu0 %v3304, 32
      %v3481 = vpop.permute.xlu0 %3480
      %3482 = vrot.lane.b32.xlu0 %v3305, 32
      %v3483 = vpop.permute.xlu0 %3482
      %3484 = vrot.lane.b32.xlu0 %v3306, 32
      %v3485 = vpop.permute.xlu0 %3484
      %3486 = vrot.lane.b32.xlu0 %v3307, 32
      %v3487 = vpop.permute.xlu0 %3486
      %3488 = vrot.lane.b32.xlu0 %v3308, 32
      %v3489 = vpop.permute.xlu0 %3488
      %3490 = vrot.lane.b32.xlu0 %v3309, 32
      %v3491 = vpop.permute.xlu0 %3490
      %3492 = vrot.lane.b32.xlu0 %v3310, 32
      %v3493 = vpop.permute.xlu0 %3492
      %3494 = vrot.lane.b32.xlu0 %v3311, 32
      %v3495 = vpop.permute.xlu0 %3494
      %3496 = vrot.lane.b32.xlu0 %v3312, 32
      %v3497 = vpop.permute.xlu0 %3496
      %3498 = vrot.lane.b32.xlu0 %v3313, 32
      %v3499 = vpop.permute.xlu0 %3498
      %3500 = vrot.lane.b32.xlu0 %v3314, 32
      %v3501 = vpop.permute.xlu0 %3500
      %3502 = vrot.lane.b32.xlu0 %v3315, 32
      %v3503 = vpop.permute.xlu0 %3502
      %3504 = vrot.lane.b32.xlu0 %v3316, 32
      %v3505 = vpop.permute.xlu0 %3504
      %3506 = vrot.lane.b32.xlu0 %v3317, 32
      %v3507 = vpop.permute.xlu0 %3506
      %3508 = vrot.lane.b32.xlu0 %v3318, 32
      %v3509 = vpop.permute.xlu0 %3508
      %3510 = vrot.lane.b32.xlu0 %v3319, 32
      %v3511 = vpop.permute.xlu0 %3510
      %vm3576 = vcmask 294144
      %3577 = vst.msk [vmem:[#allocation3] sm:$0xff] %vm3576, %v3385
      %3578 = vst.msk [vmem:[#allocation3 + $0x8] sm:$0xff] %vm3576, %v3387
      %3579 = vst.msk [vmem:[#allocation3 + $0x10] sm:$0xff] %vm3576, %v3389
      %3580 = vst.msk [vmem:[#allocation3 + $0x18] sm:$0xff] %vm3576, %v3391
      %3581 = vst.msk [vmem:[#allocation3 + $0x20] sm:$0xff] %vm3576, %v3393
      %3582 = vst.msk [vmem:[#allocation3 + $0x28] sm:$0xff] %vm3576, %v3395
      %3583 = vst.msk [vmem:[#allocation3 + $0x30] sm:$0xff] %vm3576, %v3397
      %3584 = vst.msk [vmem:[#allocation3 + $0x38] sm:$0xff] %vm3576, %v3399
      %3585 = vst.msk [vmem:[#allocation3 + $0x40] sm:$0xff] %vm3576, %v3401
      %3586 = vst.msk [vmem:[#allocation3 + $0x48] sm:$0xff] %vm3576, %v3403
      %3587 = vst.msk [vmem:[#allocation3 + $0x50] sm:$0xff] %vm3576, %v3405
      %3588 = vst.msk [vmem:[#allocation3 + $0x58] sm:$0xff] %vm3576, %v3407
      %3589 = vst.msk [vmem:[#allocation3 + $0x60] sm:$0xff] %vm3576, %v3409
      %3590 = vst.msk [vmem:[#allocation3 + $0x68] sm:$0xff] %vm3576, %v3411
      %3591 = vst.msk [vmem:[#allocation3 + $0x70] sm:$0xff] %vm3576, %v3413
      %3592 = vst.msk [vmem:[#allocation3 + $0x78] sm:$0xff] %vm3576, %v3415
      %3593 = vst.msk [vmem:[#allocation3 + $0x80] sm:$0xff] %vm3576, %v3417
      %3594 = vst.msk [vmem:[#allocation3 + $0x88] sm:$0xff] %vm3576, %v3419
      %3595 = vst.msk [vmem:[#allocation3 + $0x90] sm:$0xff] %vm3576, %v3421
      %3596 = vst.msk [vmem:[#allocation3 + $0x98] sm:$0xff] %vm3576, %v3423
      %3597 = vst.msk [vmem:[#allocation3 + $0xa0] sm:$0xff] %vm3576, %v3425
      %3598 = vst.msk [vmem:[#allocation3 + $0xa8] sm:$0xff] %vm3576, %v3427
      %3599 = vst.msk [vmem:[#allocation3 + $0xb0] sm:$0xff] %vm3576, %v3429
      %3600 = vst.msk [vmem:[#allocation3 + $0xb8] sm:$0xff] %vm3576, %v3431
      %3601 = vst.msk [vmem:[#allocation3 + $0xc0] sm:$0xff] %vm3576, %v3433
      %3602 = vst.msk [vmem:[#allocation3 + $0xc8] sm:$0xff] %vm3576, %v3435
      %3603 = vst.msk [vmem:[#allocation3 + $0xd0] sm:$0xff] %vm3576, %v3437
      %3604 = vst.msk [vmem:[#allocation3 + $0xd8] sm:$0xff] %vm3576, %v3439
      %3605 = vst.msk [vmem:[#allocation3 + $0xe0] sm:$0xff] %vm3576, %v3441
      %3606 = vst.msk [vmem:[#allocation3 + $0xe8] sm:$0xff] %vm3576, %v3443
      %3607 = vst.msk [vmem:[#allocation3 + $0xf0] sm:$0xff] %vm3576, %v3445
      %3608 = vst.msk [vmem:[#allocation3 + $0xf8] sm:$0xff] %vm3576, %v3447
      %3609 = vst.msk [vmem:[#allocation3 + $0x100] sm:$0xff] %vm3576, %v3449
      %3610 = vst.msk [vmem:[#allocation3 + $0x108] sm:$0xff] %vm3576, %v3451
      %3611 = vst.msk [vmem:[#allocation3 + $0x110] sm:$0xff] %vm3576, %v3453
      %3612 = vst.msk [vmem:[#allocation3 + $0x118] sm:$0xff] %vm3576, %v3455
      %3613 = vst.msk [vmem:[#allocation3 + $0x120] sm:$0xff] %vm3576, %v3457
      %3614 = vst.msk [vmem:[#allocation3 + $0x128] sm:$0xff] %vm3576, %v3459
      %3615 = vst.msk [vmem:[#allocation3 + $0x130] sm:$0xff] %vm3576, %v3461
      %3616 = vst.msk [vmem:[#allocation3 + $0x138] sm:$0xff] %vm3576, %v3463
      %3617 = vst.msk [vmem:[#allocation3 + $0x140] sm:$0xff] %vm3576, %v3465
      %3618 = vst.msk [vmem:[#allocation3 + $0x148] sm:$0xff] %vm3576, %v3467
      %3619 = vst.msk [vmem:[#allocation3 + $0x150] sm:$0xff] %vm3576, %v3469
      %3620 = vst.msk [vmem:[#allocation3 + $0x158] sm:$0xff] %vm3576, %v3471
      %3621 = vst.msk [vmem:[#allocation3 + $0x160] sm:$0xff] %vm3576, %v3473
      %3622 = vst.msk [vmem:[#allocation3 + $0x168] sm:$0xff] %vm3576, %v3475
      %3623 = vst.msk [vmem:[#allocation3 + $0x170] sm:$0xff] %vm3576, %v3477
      %3624 = vst.msk [vmem:[#allocation3 + $0x178] sm:$0xff] %vm3576, %v3479
      %3625 = vst.msk [vmem:[#allocation3 + $0x180] sm:$0xff] %vm3576, %v3481
      %3626 = vst.msk [vmem:[#allocation3 + $0x188] sm:$0xff] %vm3576, %v3483
      %3627 = vst.msk [vmem:[#allocation3 + $0x190] sm:$0xff] %vm3576, %v3485
      %3628 = vst.msk [vmem:[#allocation3 + $0x198] sm:$0xff] %vm3576, %v3487
      %3629 = vst.msk [vmem:[#allocation3 + $0x1a0] sm:$0xff] %vm3576, %v3489
      %3630 = vst.msk [vmem:[#allocation3 + $0x1a8] sm:$0xff] %vm3576, %v3491
      %3631 = vst.msk [vmem:[#allocation3 + $0x1b0] sm:$0xff] %vm3576, %v3493
      %3632 = vst.msk [vmem:[#allocation3 + $0x1b8] sm:$0xff] %vm3576, %v3495
      %3633 = vst.msk [vmem:[#allocation3 + $0x1c0] sm:$0xff] %vm3576, %v3497
      %3634 = vst.msk [vmem:[#allocation3 + $0x1c8] sm:$0xff] %vm3576, %v3499
      %3635 = vst.msk [vmem:[#allocation3 + $0x1d0] sm:$0xff] %vm3576, %v3501
      %3636 = vst.msk [vmem:[#allocation3 + $0x1d8] sm:$0xff] %vm3576, %v3503
      %3637 = vst.msk [vmem:[#allocation3 + $0x1e0] sm:$0xff] %vm3576, %v3505
      %3638 = vst.msk [vmem:[#allocation3 + $0x1e8] sm:$0xff] %vm3576, %v3507
      %3639 = vst.msk [vmem:[#allocation3 + $0x1f0] sm:$0xff] %vm3576, %v3509
      %3640 = vst.msk [vmem:[#allocation3 + $0x1f8] sm:$0xff] %vm3576, %v3511
      %v3641 = vld [vmem:[#allocation3] sm:$0xff]
      %v3642 = vld [vmem:[#allocation3 + $0x8] sm:$0xff]
      %v3643 = vld [vmem:[#allocation3 + $0x10] sm:$0xff]
      %v3644 = vld [vmem:[#allocation3 + $0x18] sm:$0xff]
      %v3645 = vld [vmem:[#allocation3 + $0x20] sm:$0xff]
      %v3646 = vld [vmem:[#allocation3 + $0x28] sm:$0xff]
      %v3647 = vld [vmem:[#allocation3 + $0x30] sm:$0xff]
      %v3648 = vld [vmem:[#allocation3 + $0x38] sm:$0xff]
      %v3649 = vld [vmem:[#allocation3 + $0x40] sm:$0xff]
      %v3650 = vld [vmem:[#allocation3 + $0x48] sm:$0xff]
      %v3651 = vld [vmem:[#allocation3 + $0x50] sm:$0xff]
      %v3652 = vld [vmem:[#allocation3 + $0x58] sm:$0xff]
      %v3653 = vld [vmem:[#allocation3 + $0x60] sm:$0xff]
      %v3654 = vld [vmem:[#allocation3 + $0x68] sm:$0xff]
      %v3655 = vld [vmem:[#allocation3 + $0x70] sm:$0xff]
      %v3656 = vld [vmem:[#allocation3 + $0x78] sm:$0xff]
      %v3657 = vld [vmem:[#allocation3 + $0x80] sm:$0xff]
      %v3658 = vld [vmem:[#allocation3 + $0x88] sm:$0xff]
      %v3659 = vld [vmem:[#allocation3 + $0x90] sm:$0xff]
      %v3660 = vld [vmem:[#allocation3 + $0x98] sm:$0xff]
      %v3661 = vld [vmem:[#allocation3 + $0xa0] sm:$0xff]
      %v3662 = vld [vmem:[#allocation3 + $0xa8] sm:$0xff]
      %v3663 = vld [vmem:[#allocation3 + $0xb0] sm:$0xff]
      %v3664 = vld [vmem:[#allocation3 + $0xb8] sm:$0xff]
      %v3665 = vld [vmem:[#allocation3 + $0xc0] sm:$0xff]
      %v3666 = vld [vmem:[#allocation3 + $0xc8] sm:$0xff]
      %v3667 = vld [vmem:[#allocation3 + $0xd0] sm:$0xff]
      %v3668 = vld [vmem:[#allocation3 + $0xd8] sm:$0xff]
      %v3669 = vld [vmem:[#allocation3 + $0xe0] sm:$0xff]
      %v3670 = vld [vmem:[#allocation3 + $0xe8] sm:$0xff]
      %v3671 = vld [vmem:[#allocation3 + $0xf0] sm:$0xff]
      %v3672 = vld [vmem:[#allocation3 + $0xf8] sm:$0xff]
      %v3673 = vld [vmem:[#allocation3 + $0x100] sm:$0xff]
      %v3674 = vld [vmem:[#allocation3 + $0x108] sm:$0xff]
      %v3675 = vld [vmem:[#allocation3 + $0x110] sm:$0xff]
      %v3676 = vld [vmem:[#allocation3 + $0x118] sm:$0xff]
      %v3677 = vld [vmem:[#allocation3 + $0x120] sm:$0xff]
      %v3678 = vld [vmem:[#allocation3 + $0x128] sm:$0xff]
      %v3679 = vld [vmem:[#allocation3 + $0x130] sm:$0xff]
      %v3680 = vld [vmem:[#allocation3 + $0x138] sm:$0xff]
      %v3681 = vld [vmem:[#allocation3 + $0x140] sm:$0xff]
      %v3682 = vld [vmem:[#allocation3 + $0x148] sm:$0xff]
      %v3683 = vld [vmem:[#allocation3 + $0x150] sm:$0xff]
      %v3684 = vld [vmem:[#allocation3 + $0x158] sm:$0xff]
      %v3685 = vld [vmem:[#allocation3 + $0x160] sm:$0xff]
      %v3686 = vld [vmem:[#allocation3 + $0x168] sm:$0xff]
      %v3687 = vld [vmem:[#allocation3 + $0x170] sm:$0xff]
      %v3688 = vld [vmem:[#allocation3 + $0x178] sm:$0xff]
      %v3689 = vld [vmem:[#allocation3 + $0x180] sm:$0xff]
      %v3690 = vld [vmem:[#allocation3 + $0x188] sm:$0xff]
      %v3691 = vld [vmem:[#allocation3 + $0x190] sm:$0xff]
      %v3692 = vld [vmem:[#allocation3 + $0x198] sm:$0xff]
      %v3693 = vld [vmem:[#allocation3 + $0x1a0] sm:$0xff]
      %v3694 = vld [vmem:[#allocation3 + $0x1a8] sm:$0xff]
      %v3695 = vld [vmem:[#allocation3 + $0x1b0] sm:$0xff]
      %v3696 = vld [vmem:[#allocation3 + $0x1b8] sm:$0xff]
      %v3697 = vld [vmem:[#allocation3 + $0x1c0] sm:$0xff]
      %v3698 = vld [vmem:[#allocation3 + $0x1c8] sm:$0xff]
      %v3699 = vld [vmem:[#allocation3 + $0x1d0] sm:$0xff]
      %v3700 = vld [vmem:[#allocation3 + $0x1d8] sm:$0xff]
      %v3701 = vld [vmem:[#allocation3 + $0x1e0] sm:$0xff]
      %v3702 = vld [vmem:[#allocation3 + $0x1e8] sm:$0xff]
      %v3703 = vld [vmem:[#allocation3 + $0x1f0] sm:$0xff]
      %v3704 = vld [vmem:[#allocation3 + $0x1f8] sm:$0xff]
      %v3705 = vld [vmem:[%s1] sm:$0xff]
      %v3706 = vld [vmem:[%s1 + $0x8] sm:$0xff]
      %v3707 = vld [vmem:[%s1 + $0x10] sm:$0xff]
      %v3708 = vld [vmem:[%s1 + $0x18] sm:$0xff]
      %v3709 = vld [vmem:[%s1 + $0x20] sm:$0xf]
      %v3710 = vld [vmem:[%s2] sm:$0x1]
      %v3712 = vperm.slane %v3710, 0
      %vm3714 = vcmask 293888
      %v3716 = vsel %vm3714, %v3641, 0
      %v3719 = vsel %vm3714, %v3642, 0
      %v3722 = vsel %vm3714, %v3643, 0
      %v3725 = vsel %vm3714, %v3644, 0
      %v3728 = vsel %vm3714, %v3645, 0
      %v3731 = vsel %vm3714, %v3646, 0
      %v3734 = vsel %vm3714, %v3647, 0
      %v3737 = vsel %vm3714, %v3648, 0
      %v3740 = vsel %vm3714, %v3649, 0
      %v3743 = vsel %vm3714, %v3650, 0
      %v3746 = vsel %vm3714, %v3651, 0
      %v3749 = vsel %vm3714, %v3652, 0
      %v3752 = vsel %vm3714, %v3653, 0
      %v3755 = vsel %vm3714, %v3654, 0
      %v3758 = vsel %vm3714, %v3655, 0
      %v3761 = vsel %vm3714, %v3656, 0
      %v3764 = vsel %vm3714, %v3657, 0
      %v3767 = vsel %vm3714, %v3658, 0
      %v3770 = vsel %vm3714, %v3659, 0
      %v3773 = vsel %vm3714, %v3660, 0
      %v3776 = vsel %vm3714, %v3661, 0
      %v3779 = vsel %vm3714, %v3662, 0
      %v3782 = vsel %vm3714, %v3663, 0
      %v3785 = vsel %vm3714, %v3664, 0
      %v3788 = vsel %vm3714, %v3665, 0
      %v3791 = vsel %vm3714, %v3666, 0
      %v3794 = vsel %vm3714, %v3667, 0
      %v3797 = vsel %vm3714, %v3668, 0
      %v3800 = vsel %vm3714, %v3669, 0
      %v3803 = vsel %vm3714, %v3670, 0
      %v3806 = vsel %vm3714, %v3671, 0
      %v3809 = vsel %vm3714, %v3672, 0
      %v3812 = vsel %vm3714, %v3673, 0
      %v3815 = vsel %vm3714, %v3674, 0
      %v3818 = vsel %vm3714, %v3675, 0
      %v3821 = vsel %vm3714, %v3676, 0
      %v3824 = vsel %vm3714, %v3677, 0
      %v3827 = vsel %vm3714, %v3678, 0
      %v3830 = vsel %vm3714, %v3679, 0
      %v3833 = vsel %vm3714, %v3680, 0
      %v3836 = vsel %vm3714, %v3681, 0
      %v3839 = vsel %vm3714, %v3682, 0
      %v3842 = vsel %vm3714, %v3683, 0
      %v3845 = vsel %vm3714, %v3684, 0
      %v3848 = vsel %vm3714, %v3685, 0
      %v3851 = vsel %vm3714, %v3686, 0
      %v3854 = vsel %vm3714, %v3687, 0
      %v3857 = vsel %vm3714, %v3688, 0
      %v3860 = vsel %vm3714, %v3689, 0
      %v3863 = vsel %vm3714, %v3690, 0
      %v3866 = vsel %vm3714, %v3691, 0
      %v3869 = vsel %vm3714, %v3692, 0
      %v3872 = vsel %vm3714, %v3693, 0
      %v3875 = vsel %vm3714, %v3694, 0
      %v3878 = vsel %vm3714, %v3695, 0
      %v3881 = vsel %vm3714, %v3696, 0
      %v3884 = vsel %vm3714, %v3697, 0
      %v3887 = vsel %vm3714, %v3698, 0
      %v3890 = vsel %vm3714, %v3699, 0
      %v3893 = vsel %vm3714, %v3700, 0
      %v3896 = vsel %vm3714, %v3701, 0
      %v3899 = vsel %vm3714, %v3702, 0
      %v3902 = vsel %vm3714, %v3703, 0
      %v3905 = vsel %vm3714, %v3704, 0
      %vm3907 = vcmask 1043456
      %v3909 = vsel %vm3907, %v3709, 0
      %3911 = vmatpush.msra.mxu0 0.0
      %3912 = vmatpush.msra.mxu0 0.0
      %3913 = vmatpush.msra.mxu0 0.0
      %3914 = vmatpush.msra.mxu0 0.0
      %3915 = vmatpush.msra.mxu0 0.0
      %3916 = vmatpush.msra.mxu0 0.0
      %3917 = vmatpush.msra.mxu0 0.0
      %3918 = vmatpush.msra.mxu0 0.0
      %3919 = vmatpush.msra.mxu0 0.0
      %3920 = vmatpush.msra.mxu0 0.0
      %3921 = vmatpush.msra.mxu0 0.0
      %3922 = vmatpush.msra.mxu0 %v3909
      %3923 = vmatpush.msra.mxu0 %v3708
      %3924 = vmatpush.msra.mxu0 %v3707
      %3925 = vmatpush.msra.mxu0 %v3706
      %3926 = vmatpush.msra.mxu0 %v3705
      %3927 = vmatmul.f32.gmra.mxu0 %v3716
      %v3928 = vpop.f32.mrf.mxu0
      %v3929 = vadd.f32 %v3712, %v3928
      %3930 = vmatmul.f32.gmra.mxu0 %v3719
      %v3931 = vpop.f32.mrf.mxu0
      %v3932 = vadd.f32 %v3712, %v3931
      %3933 = vmatmul.f32.gmra.mxu0 %v3722
      %v3934 = vpop.f32.mrf.mxu0
      %v3935 = vadd.f32 %v3712, %v3934
      %3936 = vmatmul.f32.gmra.mxu0 %v3725
      %v3937 = vpop.f32.mrf.mxu0
      %v3938 = vadd.f32 %v3712, %v3937
      %3939 = vmatmul.f32.gmra.mxu0 %v3728
      %v3940 = vpop.f32.mrf.mxu0
      %v3941 = vadd.f32 %v3712, %v3940
      %3942 = vmatmul.f32.gmra.mxu0 %v3731
      %v3943 = vpop.f32.mrf.mxu0
      %v3944 = vadd.f32 %v3712, %v3943
      %3945 = vmatmul.f32.gmra.mxu0 %v3734
      %v3946 = vpop.f32.mrf.mxu0
      %v3947 = vadd.f32 %v3712, %v3946
      %3948 = vmatmul.f32.gmra.mxu0 %v3737
      %v3949 = vpop.f32.mrf.mxu0
      %v3950 = vadd.f32 %v3712, %v3949
      %3951 = vmatmul.f32.gmra.mxu0 %v3740
      %v3952 = vpop.f32.mrf.mxu0
      %v3953 = vadd.f32 %v3712, %v3952
      %3954 = vmatmul.f32.gmra.mxu0 %v3743
      %v3955 = vpop.f32.mrf.mxu0
      %v3956 = vadd.f32 %v3712, %v3955
      %3957 = vmatmul.f32.gmra.mxu0 %v3746
      %v3958 = vpop.f32.mrf.mxu0
      %v3959 = vadd.f32 %v3712, %v3958
      %3960 = vmatmul.f32.gmra.mxu0 %v3749
      %v3961 = vpop.f32.mrf.mxu0
      %v3962 = vadd.f32 %v3712, %v3961
      %3963 = vmatmul.f32.gmra.mxu0 %v3752
      %v3964 = vpop.f32.mrf.mxu0
      %v3965 = vadd.f32 %v3712, %v3964
      %3966 = vmatmul.f32.gmra.mxu0 %v3755
      %v3967 = vpop.f32.mrf.mxu0
      %v3968 = vadd.f32 %v3712, %v3967
      %3969 = vmatmul.f32.gmra.mxu0 %v3758
      %v3970 = vpop.f32.mrf.mxu0
      %v3971 = vadd.f32 %v3712, %v3970
      %3972 = vmatmul.f32.gmra.mxu0 %v3761
      %v3973 = vpop.f32.mrf.mxu0
      %v3974 = vadd.f32 %v3712, %v3973
      %3975 = vmatmul.f32.gmra.mxu0 %v3764
      %v3976 = vpop.f32.mrf.mxu0
      %v3977 = vadd.f32 %v3712, %v3976
      %3978 = vmatmul.f32.gmra.mxu0 %v3767
      %v3979 = vpop.f32.mrf.mxu0
      %v3980 = vadd.f32 %v3712, %v3979
      %3981 = vmatmul.f32.gmra.mxu0 %v3770
      %v3982 = vpop.f32.mrf.mxu0
      %v3983 = vadd.f32 %v3712, %v3982
      %3984 = vmatmul.f32.gmra.mxu0 %v3773
      %v3985 = vpop.f32.mrf.mxu0
      %v3986 = vadd.f32 %v3712, %v3985
      %3987 = vmatmul.f32.gmra.mxu0 %v3776
      %v3988 = vpop.f32.mrf.mxu0
      %v3989 = vadd.f32 %v3712, %v3988
      %3990 = vmatmul.f32.gmra.mxu0 %v3779
      %v3991 = vpop.f32.mrf.mxu0
      %v3992 = vadd.f32 %v3712, %v3991
      %3993 = vmatmul.f32.gmra.mxu0 %v3782
      %v3994 = vpop.f32.mrf.mxu0
      %v3995 = vadd.f32 %v3712, %v3994
      %3996 = vmatmul.f32.gmra.mxu0 %v3785
      %v3997 = vpop.f32.mrf.mxu0
      %v3998 = vadd.f32 %v3712, %v3997
      %3999 = vmatmul.f32.gmra.mxu0 %v3788
      %v4000 = vpop.f32.mrf.mxu0
      %v4001 = vadd.f32 %v3712, %v4000
      %4002 = vmatmul.f32.gmra.mxu0 %v3791
      %v4003 = vpop.f32.mrf.mxu0
      %v4004 = vadd.f32 %v3712, %v4003
      %4005 = vmatmul.f32.gmra.mxu0 %v3794
      %v4006 = vpop.f32.mrf.mxu0
      %v4007 = vadd.f32 %v3712, %v4006
      %4008 = vmatmul.f32.gmra.mxu0 %v3797
      %v4009 = vpop.f32.mrf.mxu0
      %v4010 = vadd.f32 %v3712, %v4009
      %4011 = vmatmul.f32.gmra.mxu0 %v3800
      %v4012 = vpop.f32.mrf.mxu0
      %v4013 = vadd.f32 %v3712, %v4012
      %4014 = vmatmul.f32.gmra.mxu0 %v3803
      %v4015 = vpop.f32.mrf.mxu0
      %v4016 = vadd.f32 %v3712, %v4015
      %4017 = vmatmul.f32.gmra.mxu0 %v3806
      %v4018 = vpop.f32.mrf.mxu0
      %v4019 = vadd.f32 %v3712, %v4018
      %4020 = vmatmul.f32.gmra.mxu0 %v3809
      %v4021 = vpop.f32.mrf.mxu0
      %v4022 = vadd.f32 %v3712, %v4021
      %4023 = vmatmul.f32.gmra.mxu0 %v3812
      %v4024 = vpop.f32.mrf.mxu0
      %v4025 = vadd.f32 %v3712, %v4024
      %4026 = vmatmul.f32.gmra.mxu0 %v3815
      %v4027 = vpop.f32.mrf.mxu0
      %v4028 = vadd.f32 %v3712, %v4027
      %4029 = vmatmul.f32.gmra.mxu0 %v3818
      %v4030 = vpop.f32.mrf.mxu0
      %v4031 = vadd.f32 %v3712, %v4030
      %4032 = vmatmul.f32.gmra.mxu0 %v3821
      %v4033 = vpop.f32.mrf.mxu0
      %v4034 = vadd.f32 %v3712, %v4033
      %4035 = vmatmul.f32.gmra.mxu0 %v3824
      %v4036 = vpop.f32.mrf.mxu0
      %v4037 = vadd.f32 %v3712, %v4036
      %4038 = vmatmul.f32.gmra.mxu0 %v3827
      %v4039 = vpop.f32.mrf.mxu0
      %v4040 = vadd.f32 %v3712, %v4039
      %4041 = vmatmul.f32.gmra.mxu0 %v3830
      %v4042 = vpop.f32.mrf.mxu0
      %v4043 = vadd.f32 %v3712, %v4042
      %4044 = vmatmul.f32.gmra.mxu0 %v3833
      %v4045 = vpop.f32.mrf.mxu0
      %v4046 = vadd.f32 %v3712, %v4045
      %4047 = vmatmul.f32.gmra.mxu0 %v3836
      %v4048 = vpop.f32.mrf.mxu0
      %v4049 = vadd.f32 %v3712, %v4048
      %4050 = vmatmul.f32.gmra.mxu0 %v3839
      %v4051 = vpop.f32.mrf.mxu0
      %v4052 = vadd.f32 %v3712, %v4051
      %4053 = vmatmul.f32.gmra.mxu0 %v3842
      %v4054 = vpop.f32.mrf.mxu0
      %v4055 = vadd.f32 %v3712, %v4054
      %4056 = vmatmul.f32.gmra.mxu0 %v3845
      %v4057 = vpop.f32.mrf.mxu0
      %v4058 = vadd.f32 %v3712, %v4057
      %4059 = vmatmul.f32.gmra.mxu0 %v3848
      %v4060 = vpop.f32.mrf.mxu0
      %v4061 = vadd.f32 %v3712, %v4060
      %4062 = vmatmul.f32.gmra.mxu0 %v3851
      %v4063 = vpop.f32.mrf.mxu0
      %v4064 = vadd.f32 %v3712, %v4063
      %4065 = vmatmul.f32.gmra.mxu0 %v3854
      %v4066 = vpop.f32.mrf.mxu0
      %v4067 = vadd.f32 %v3712, %v4066
      %4068 = vmatmul.f32.gmra.mxu0 %v3857
      %v4069 = vpop.f32.mrf.mxu0
      %v4070 = vadd.f32 %v3712, %v4069
      %4071 = vmatmul.f32.gmra.mxu0 %v3860
      %v4072 = vpop.f32.mrf.mxu0
      %v4073 = vadd.f32 %v3712, %v4072
      %4074 = vmatmul.f32.gmra.mxu0 %v3863
      %v4075 = vpop.f32.mrf.mxu0
      %v4076 = vadd.f32 %v3712, %v4075
      %4077 = vmatmul.f32.gmra.mxu0 %v3866
      %v4078 = vpop.f32.mrf.mxu0
      %v4079 = vadd.f32 %v3712, %v4078
      %4080 = vmatmul.f32.gmra.mxu0 %v3869
      %v4081 = vpop.f32.mrf.mxu0
      %v4082 = vadd.f32 %v3712, %v4081
      %4083 = vmatmul.f32.gmra.mxu0 %v3872
      %v4084 = vpop.f32.mrf.mxu0
      %v4085 = vadd.f32 %v3712, %v4084
      %4086 = vmatmul.f32.gmra.mxu0 %v3875
      %v4087 = vpop.f32.mrf.mxu0
      %v4088 = vadd.f32 %v3712, %v4087
      %4089 = vmatmul.f32.gmra.mxu0 %v3878
      %v4090 = vpop.f32.mrf.mxu0
      %v4091 = vadd.f32 %v3712, %v4090
      %4092 = vmatmul.f32.gmra.mxu0 %v3881
      %v4093 = vpop.f32.mrf.mxu0
      %v4094 = vadd.f32 %v3712, %v4093
      %4095 = vmatmul.f32.gmra.mxu0 %v3884
      %v4096 = vpop.f32.mrf.mxu0
      %v4097 = vadd.f32 %v3712, %v4096
      %4098 = vmatmul.f32.gmra.mxu0 %v3887
      %v4099 = vpop.f32.mrf.mxu0
      %v4100 = vadd.f32 %v3712, %v4099
      %4101 = vmatmul.f32.gmra.mxu0 %v3890
      %v4102 = vpop.f32.mrf.mxu0
      %v4103 = vadd.f32 %v3712, %v4102
      %4104 = vmatmul.f32.gmra.mxu0 %v3893
      %v4105 = vpop.f32.mrf.mxu0
      %v4106 = vadd.f32 %v3712, %v4105
      %4107 = vmatmul.f32.gmra.mxu0 %v3896
      %v4108 = vpop.f32.mrf.mxu0
      %v4109 = vadd.f32 %v3712, %v4108
      %4110 = vmatmul.f32.gmra.mxu0 %v3899
      %v4111 = vpop.f32.mrf.mxu0
      %v4112 = vadd.f32 %v3712, %v4111
      %4113 = vmatmul.f32.gmra.mxu0 %v3902
      %v4114 = vpop.f32.mrf.mxu0
      %v4115 = vadd.f32 %v3712, %v4114
      %4116 = vmatmul.f32.gmra.mxu0 %v3905
      %v4117 = vpop.f32.mrf.mxu0
      %v4118 = vadd.f32 %v3712, %v4117
      %4119 = vdwg.mxu0
      %vm4120 = vcmask 97280
      %4121 = vst.msk [vmem:[%s213] sm:$0xff] %vm4120, %v3929
      %4122 = vst.msk [vmem:[%s213 + $0x8] sm:$0xff] %vm4120, %v3932
      %4123 = vst.msk [vmem:[%s213 + $0x10] sm:$0xff] %vm4120, %v3935
      %4124 = vst.msk [vmem:[%s213 + $0x18] sm:$0xff] %vm4120, %v3938
      %4125 = vst.msk [vmem:[%s213 + $0x20] sm:$0xff] %vm4120, %v3941
      %4126 = vst.msk [vmem:[%s213 + $0x28] sm:$0xff] %vm4120, %v3944
      %4127 = vst.msk [vmem:[%s213 + $0x30] sm:$0xff] %vm4120, %v3947
      %4128 = vst.msk [vmem:[%s213 + $0x38] sm:$0xff] %vm4120, %v3950
      %4129 = vst.msk [vmem:[%s213 + $0x40] sm:$0xff] %vm4120, %v3953
      %4130 = vst.msk [vmem:[%s213 + $0x48] sm:$0xff] %vm4120, %v3956
      %4131 = vst.msk [vmem:[%s213 + $0x50] sm:$0xff] %vm4120, %v3959
      %4132 = vst.msk [vmem:[%s213 + $0x58] sm:$0xff] %vm4120, %v3962
      %4133 = vst.msk [vmem:[%s213 + $0x60] sm:$0xff] %vm4120, %v3965
      %4134 = vst.msk [vmem:[%s213 + $0x68] sm:$0xff] %vm4120, %v3968
      %4135 = vst.msk [vmem:[%s213 + $0x70] sm:$0xff] %vm4120, %v3971
      %4136 = vst.msk [vmem:[%s213 + $0x78] sm:$0xff] %vm4120, %v3974
      %4137 = vst.msk [vmem:[%s213 + $0x80] sm:$0xff] %vm4120, %v3977
      %4138 = vst.msk [vmem:[%s213 + $0x88] sm:$0xff] %vm4120, %v3980
      %4139 = vst.msk [vmem:[%s213 + $0x90] sm:$0xff] %vm4120, %v3983
      %4140 = vst.msk [vmem:[%s213 + $0x98] sm:$0xff] %vm4120, %v3986
      %4141 = vst.msk [vmem:[%s213 + $0xa0] sm:$0xff] %vm4120, %v3989
      %4142 = vst.msk [vmem:[%s213 + $0xa8] sm:$0xff] %vm4120, %v3992
      %4143 = vst.msk [vmem:[%s213 + $0xb0] sm:$0xff] %vm4120, %v3995
      %4144 = vst.msk [vmem:[%s213 + $0xb8] sm:$0xff] %vm4120, %v3998
      %4145 = vst.msk [vmem:[%s213 + $0xc0] sm:$0xff] %vm4120, %v4001
      %4146 = vst.msk [vmem:[%s213 + $0xc8] sm:$0xff] %vm4120, %v4004
      %4147 = vst.msk [vmem:[%s213 + $0xd0] sm:$0xff] %vm4120, %v4007
      %4148 = vst.msk [vmem:[%s213 + $0xd8] sm:$0xff] %vm4120, %v4010
      %4149 = vst.msk [vmem:[%s213 + $0xe0] sm:$0xff] %vm4120, %v4013
      %4150 = vst.msk [vmem:[%s213 + $0xe8] sm:$0xff] %vm4120, %v4016
      %4151 = vst.msk [vmem:[%s213 + $0xf0] sm:$0xff] %vm4120, %v4019
      %4152 = vst.msk [vmem:[%s213 + $0xf8] sm:$0xff] %vm4120, %v4022
      %4153 = vst.msk [vmem:[%s213 + $0x100] sm:$0xff] %vm4120, %v4025
      %4154 = vst.msk [vmem:[%s213 + $0x108] sm:$0xff] %vm4120, %v4028
      %4155 = vst.msk [vmem:[%s213 + $0x110] sm:$0xff] %vm4120, %v4031
      %4156 = vst.msk [vmem:[%s213 + $0x118] sm:$0xff] %vm4120, %v4034
      %4157 = vst.msk [vmem:[%s213 + $0x120] sm:$0xff] %vm4120, %v4037
      %4158 = vst.msk [vmem:[%s213 + $0x128] sm:$0xff] %vm4120, %v4040
      %4159 = vst.msk [vmem:[%s213 + $0x130] sm:$0xff] %vm4120, %v4043
      %4160 = vst.msk [vmem:[%s213 + $0x138] sm:$0xff] %vm4120, %v4046
      %4161 = vst.msk [vmem:[%s213 + $0x140] sm:$0xff] %vm4120, %v4049
      %4162 = vst.msk [vmem:[%s213 + $0x148] sm:$0xff] %vm4120, %v4052
      %4163 = vst.msk [vmem:[%s213 + $0x150] sm:$0xff] %vm4120, %v4055
      %4164 = vst.msk [vmem:[%s213 + $0x158] sm:$0xff] %vm4120, %v4058
      %4165 = vst.msk [vmem:[%s213 + $0x160] sm:$0xff] %vm4120, %v4061
      %4166 = vst.msk [vmem:[%s213 + $0x168] sm:$0xff] %vm4120, %v4064
      %4167 = vst.msk [vmem:[%s213 + $0x170] sm:$0xff] %vm4120, %v4067
      %4168 = vst.msk [vmem:[%s213 + $0x178] sm:$0xff] %vm4120, %v4070
      %4169 = vst.msk [vmem:[%s213 + $0x180] sm:$0xff] %vm4120, %v4073
      %4170 = vst.msk [vmem:[%s213 + $0x188] sm:$0xff] %vm4120, %v4076
      %4171 = vst.msk [vmem:[%s213 + $0x190] sm:$0xff] %vm4120, %v4079
      %4172 = vst.msk [vmem:[%s213 + $0x198] sm:$0xff] %vm4120, %v4082
      %4173 = vst.msk [vmem:[%s213 + $0x1a0] sm:$0xff] %vm4120, %v4085
      %4174 = vst.msk [vmem:[%s213 + $0x1a8] sm:$0xff] %vm4120, %v4088
      %4175 = vst.msk [vmem:[%s213 + $0x1b0] sm:$0xff] %vm4120, %v4091
      %4176 = vst.msk [vmem:[%s213 + $0x1b8] sm:$0xff] %vm4120, %v4094
      %4177 = vst.msk [vmem:[%s213 + $0x1c0] sm:$0xff] %vm4120, %v4097
      %4178 = vst.msk [vmem:[%s213 + $0x1c8] sm:$0xff] %vm4120, %v4100
      %4179 = vst.msk [vmem:[%s213 + $0x1d0] sm:$0xff] %vm4120, %v4103
      %4180 = vst.msk [vmem:[%s213 + $0x1d8] sm:$0xff] %vm4120, %v4106
      %4181 = vst.msk [vmem:[%s213 + $0x1e0] sm:$0xff] %vm4120, %v4109
      %4182 = vst.msk [vmem:[%s213 + $0x1e8] sm:$0xff] %vm4120, %v4112
      %4183 = vst.msk [vmem:[%s213 + $0x1f0] sm:$0xff] %vm4120, %v4115
      %4184 = vst.msk [vmem:[%s213 + $0x1f8] sm:$0xff] %vm4120, %v4118
      %s4185 = smul.u32 2, %s19
      %p4186 = scmp.lt.s32.totalorder %s18, 7
      %s4187 = scalar_select %p4186, %s18, 7
      %p4188 = scmp.lt.s32.totalorder %s4185, 1
      %s4189 = scalar_select %p4188, %s4185, 1
      %s4190 = smul.addr %s4189, 32
      %s4191 = smul.addr %s4187, 64
      %s4192 = sadd.s32 %s4190, %s4191
      %s4193 = smul.addr %s4192, 8
      %s4194 = scalar_lea.vmem %s3, %s4193
      // Predicated region
      $region33: #{tpu_custom_call.1} parent=31 // pred_check
        %p4195 = pneg %p116
      $region34: #{tpu_custom_call.1} parent=31 // pred_check_branch
        %4197 = sbr.rel (%p4195) target = $region36
      $region35: #{tpu_custom_call.1} parent=31 // pred_region
        %s4198 = smul.u32 2, %s19
      $region36: #{tpu_custom_call.1} parent=31 // pred_fallthru
        _
    $region32: #{tpu_custom_call.1} parent=5 // pred_fallthru
      _
    %p4199 = scmp.le.s32.totalorder 2, %s9
    // Predicated region
    $region37: #{tpu_custom_call.1} parent=5 // pred_check
      %p4200 = pneg %p4199
    $region38: #{tpu_custom_call.1} parent=5 // pred_check_branch
      %4202 = sbr.rel (%p4200) target = $region40
    $region39: #{tpu_custom_call.1} parent=5 // pred_region
      %s4203 = ssub.s32 %s9, 2
      // Predicated region
      $region41: #{tpu_custom_call.1} parent=39 // pred_check
        %p4204 = pneg %p122
      $region42: #{tpu_custom_call.1} parent=39 // pred_check_branch
        %4206 = sbr.rel (%p4204) target = $region44
      $region43: #{tpu_custom_call.1} parent=39 // pred_region
        %s4207 = smul.u32 2, %s21
        %p4208 = scmp.lt.s32.totalorder %s20, 7
        %s4209 = scalar_select %p4208, %s20, 7
        %p4210 = scmp.lt.s32.totalorder %s4207, 1
        %s4211 = scalar_select %p4210, %s4207, 1
        %s4212 = smul.addr %s4211, 32
        %s4213 = smul.addr %s4209, 64
        %s4214 = sadd.s32 %s4212, %s4213
        %s4215 = smul.addr %s4214, 8
        %s4216 = scalar_lea.vmem %s3, %s4215
      $region44: #{tpu_custom_call.1} parent=39 // pred_fallthru
        _
    $region40: #{tpu_custom_call.1} parent=5 // pred_fallthru
      _
  $region6: #{tpu_custom_call.1} parent=0 // loop_footer
    %s13 = sadd.s32 1, %s9
  $region7: #{tpu_custom_call.1} parent=0 // loop_footer_branch
    %8 = sbr.rel target = $region3
  $region8: #{tpu_custom_call.1} parent=0 // loop_exit
    _

</llo_original>
